<compile_context>
chip_gen: v7x
topology: tpu7x:2x2x1
jax: 0.10.0
libtpu: 0.0.40
codegen_flags: <defaults>
</compile_context>

<pallas_src>
import jax
import jax.numpy as jnp
from jax.experimental import pallas as pl
from jax.experimental.pallas import tpu as pltpu


def _fcv_kernel(x_ref, w1_ref, b1_ref, w2_ref, b2_ref, w3_ref, b3_ref, o_ref):
    x = x_ref[...]                                        # (TILE_B, D) f32
    h1 = jnp.dot(x, w1_ref[...], preferred_element_type=jnp.float32) + b1_ref[...]
    h1 = jnp.maximum(h1, 0.0)                             # relu
    h2 = jnp.dot(h1, w2_ref[...], preferred_element_type=jnp.float32) + b2_ref[...]
    h2 = jnp.maximum(h2, 0.0)                             # (TILE_B, H)

    # Final Linear(H, 1) on the VPU (multiply) + XLU (lane reduction); result
    # lands as a lane-dense (TILE_B/128, 128) slab -> one unmasked store.
    rows, lanes = o_ref.shape                             # (TILE_B//128, 128)
    hidden = h2.shape[-1]
    prod = h2 * w3_ref[...]                               # (TILE_B, H)
    prod = prod.reshape(rows, lanes, hidden)              # tile-aligned reshape
    o_ref[...] = jnp.sum(prod, axis=-1) + b3_ref[...]


def fcv_forward(x, w1, b1, w2, b2, w3, b3, *, tile_b=8192):
    """x: [B, input_dim] f32  ->  [B, 1] f32."""
    B, D = x.shape
    assert tile_b % 1024 == 0, "tile_b must be a multiple of 1024"
    # Don't over-tile tiny batches; keep TILE_B a multiple of 1024 so the
    # lane-dense output block (TILE_B//128, 128) has a sublane dim % 8 == 0.
    tile_b = min(tile_b, pl.cdiv(B, 1024) * 1024)
    b_pad = pl.cdiv(B, tile_b) * tile_b
    if b_pad != B:
        x = jnp.pad(x, ((0, b_pad - B), (0, 0)))
    num_tiles = b_pad // tile_b
    rows = tile_b // 128

    # Whole-array, VMEM-resident spec for the (tiny) weights / biases.
    def full(a):
        return pl.BlockSpec(a.shape, lambda i: (0,) * a.ndim)

    out2d = pl.pallas_call(
        _fcv_kernel,
        out_shape=jax.ShapeDtypeStruct((b_pad // 128, 128), jnp.float32),
        grid=(num_tiles,),
        in_specs=[
            pl.BlockSpec((tile_b, D), lambda i: (i, 0)),   # streamed x tiles
            full(w1), full(b1), full(w2), full(b2), full(w3), full(b3),
        ],
        out_specs=pl.BlockSpec((rows, 128), lambda i: (i, 0)),
        compiler_params=pltpu.CompilerParams(
            dimension_semantics=("parallel",),             # v7x: 2 TCs share grid
        ),
    )(x, w1, b1, w2, b2, w3, b3)

    # Lane-dense slab -> [B, 1] (row-major flattening preserves row order).
    return out2d.reshape(b_pad)[:B].reshape(B, 1)


def init_fcv_params(key, input_dim, hidden=32):
    """PyTorch-style (Kaiming-uniform-ish) Linear init.

    W1/W2 stored as [in, out]; the output layer is stored as a [1, hidden]
    row (w3) plus a [1, 1] bias so the kernel can run the 32->1 layer on the
    VPU.  Biases are [1, out] for clean in-kernel broadcasting.
    """
    ks = jax.random.split(key, 6)

    def uniform(k, shape, fan_in):
        bound = 1.0 / jnp.sqrt(jnp.float32(fan_in))
        return jax.random.uniform(k, shape, jnp.float32, -bound, bound)

    w1 = uniform(ks[0], (input_dim, hidden), input_dim)   # nn.Linear(input_dim, 32)
    b1 = uniform(ks[1], (1, hidden), input_dim)
    w2 = uniform(ks[2], (hidden, hidden), hidden)         # nn.Linear(32, 32)
    b2 = uniform(ks[3], (1, hidden), hidden)
    w3 = uniform(ks[4], (1, hidden), hidden)               # nn.Linear(32, 1) weight row
    b3 = uniform(ks[5], (1, 1), hidden)
    return w1, b1, w2, b2, w3, b3


def fcv_reference(x, w1, b1, w2, b2, w3, b3):
    h = jnp.maximum(x @ w1 + b1, 0.0)
    h = jnp.maximum(h @ w2 + b2, 0.0)
    return h @ w3.T + b3


if __name__ == "__main__":
    key = jax.random.PRNGKey(0)
    k_param, k_x1, k_x2 = jax.random.split(key, 3)

    input_dim, hidden = 8, 32
    params = init_fcv_params(k_param, input_dim, hidden)

    # Small smoke test (batch=2).
    x_small = jax.random.normal(k_x1, (2, input_dim), dtype=jnp.float32)
    out_small = jax.block_until_ready(fcv_forward(x_small, *params))
    ref_small = fcv_reference(x_small, *params)
    assert out_small.shape == (2, 1)
    assert jnp.allclose(out_small, ref_small, atol=1e-5, rtol=1e-5)

    # Larger ragged batch to exercise the pipelined batch grid
    # (3 tiles of 1024 rows, last tile zero-padded in the wrapper).
    x_big = jax.random.normal(k_x2, (2500, input_dim), dtype=jnp.float32)
    out_big = jax.block_until_ready(fcv_forward(x_big, *params, tile_b=1024))
    ref_big = fcv_reference(x_big, *params)
    assert out_big.shape == (2500, 1)
    assert jnp.allclose(out_big, ref_big, atol=1e-5, rtol=1e-5)

    print("KERNEL_OK")
</pallas_src>

<mosaic_0001>
module attributes {stable_mosaic.version = 11 : i64} {
  func.func @_fcv_kernel(%arg0: i32, %arg1: memref<1024x8xf32, #tpu.memory_space<vmem>>, %arg2: memref<8x32xf32, #tpu.memory_space<vmem>>, %arg3: memref<1x32xf32, #tpu.memory_space<vmem>>, %arg4: memref<32x32xf32, #tpu.memory_space<vmem>>, %arg5: memref<1x32xf32, #tpu.memory_space<vmem>>, %arg6: memref<1x32xf32, #tpu.memory_space<vmem>>, %arg7: memref<1x1xf32, #tpu.memory_space<vmem>>, %arg8: memref<8x128xf32, #tpu.memory_space<vmem>>) attributes {dimension_semantics = [#tpu.dimension_semantics<parallel>], iteration_bounds = array<i64: 1>, scalar_prefetch = 0 : i64, scratch_operands = 0 : i64, tpu.core_type = #tpu.core_type<tc>, window_params = [{transform_indices = @transform_0, window_bounds = array<i64: 1024, 8>}, {pipeline_mode = #tpu.pipeline_mode<synchronous>, transform_indices = @transform_1, window_bounds = array<i64: 8, 32>}, {pipeline_mode = #tpu.pipeline_mode<synchronous>, transform_indices = @transform_2, window_bounds = array<i64: 1, 32>}, {pipeline_mode = #tpu.pipeline_mode<synchronous>, transform_indices = @transform_3, window_bounds = array<i64: 32, 32>}, {pipeline_mode = #tpu.pipeline_mode<synchronous>, transform_indices = @transform_4, window_bounds = array<i64: 1, 32>}, {pipeline_mode = #tpu.pipeline_mode<synchronous>, transform_indices = @transform_5, window_bounds = array<i64: 1, 32>}, {pipeline_mode = #tpu.pipeline_mode<synchronous>, transform_indices = @transform_6, window_bounds = array<i64: 1, 1>}, {transform_indices = @transform_7, window_bounds = array<i64: 8, 128>}]} {
    %c0 = arith.constant 0 : index
    %c0_0 = arith.constant 0 : index
    %0 = vector.load %arg1[%c0, %c0_0] : memref<1024x8xf32, #tpu.memory_space<vmem>>, vector<1024x8xf32>
    %c0_1 = arith.constant 0 : index
    %c0_2 = arith.constant 0 : index
    %1 = vector.load %arg2[%c0_1, %c0_2] : memref<8x32xf32, #tpu.memory_space<vmem>>, vector<8x32xf32>
    %cst = arith.constant dense<0.000000e+00> : vector<1024x32xf32>
    %2 = tpu.matmul %0, %1, %cst {dimension_numbers = #tpu.dot_dimension_numbers<[1], [0], [0], [1], [0, 0, 1, 1], [], []>} : vector<1024x8xf32>, vector<8x32xf32>, vector<1024x32xf32> -> vector<1024x32xf32>
    %c0_3 = arith.constant 0 : index
    %c0_4 = arith.constant 0 : index
    %3 = vector.load %arg3[%c0_3, %c0_4] : memref<1x32xf32, #tpu.memory_space<vmem>>, vector<1x32xf32>
    %4 = vector.broadcast %3 : vector<1x32xf32> to vector<1024x32xf32>
    %5 = arith.addf %2, %4 : vector<1024x32xf32>
    %cst_5 = arith.constant 0.000000e+00 : f32
    %6 = vector.broadcast %cst_5 : f32 to vector<1024x32xf32>
    %7 = arith.maximumf %5, %6 : vector<1024x32xf32>
    %c0_6 = arith.constant 0 : index
    %c0_7 = arith.constant 0 : index
    %8 = vector.load %arg4[%c0_6, %c0_7] : memref<32x32xf32, #tpu.memory_space<vmem>>, vector<32x32xf32>
    %cst_8 = arith.constant dense<0.000000e+00> : vector<1024x32xf32>
    %9 = tpu.matmul %7, %8, %cst_8 {dimension_numbers = #tpu.dot_dimension_numbers<[1], [0], [0], [1], [0, 0, 1, 1], [], []>} : vector<1024x32xf32>, vector<32x32xf32>, vector<1024x32xf32> -> vector<1024x32xf32>
    %c0_9 = arith.constant 0 : index
    %c0_10 = arith.constant 0 : index
    %10 = vector.load %arg5[%c0_9, %c0_10] : memref<1x32xf32, #tpu.memory_space<vmem>>, vector<1x32xf32>
    %11 = vector.broadcast %10 : vector<1x32xf32> to vector<1024x32xf32>
    %12 = arith.addf %9, %11 : vector<1024x32xf32>
    %cst_11 = arith.constant 0.000000e+00 : f32
    %13 = vector.broadcast %cst_11 : f32 to vector<1024x32xf32>
    %14 = arith.maximumf %12, %13 : vector<1024x32xf32>
    %c0_12 = arith.constant 0 : index
    %c0_13 = arith.constant 0 : index
    %15 = vector.load %arg6[%c0_12, %c0_13] : memref<1x32xf32, #tpu.memory_space<vmem>>, vector<1x32xf32>
    %16 = vector.broadcast %15 : vector<1x32xf32> to vector<1024x32xf32>
    %17 = arith.mulf %14, %16 : vector<1024x32xf32>
    %18 = vector.shape_cast %17 : vector<1024x32xf32> to vector<8x128x32xf32>
    %cst_14 = arith.constant dense<0.000000e+00> : vector<8x128xf32>
    %19 = vector.multi_reduction <add>, %18, %cst_14 [2] : vector<8x128x32xf32> to vector<8x128xf32>
    %c0_15 = arith.constant 0 : index
    %c0_16 = arith.constant 0 : index
    %20 = vector.load %arg7[%c0_15, %c0_16] : memref<1x1xf32, #tpu.memory_space<vmem>>, vector<1x1xf32>
    %21 = vector.broadcast %20 : vector<1x1xf32> to vector<8x128xf32>
    %22 = arith.addf %19, %21 : vector<8x128xf32>
    %c0_17 = arith.constant 0 : index
    %c0_18 = arith.constant 0 : index
    %23 = vector.load %arg8[%c0_17, %c0_18] : memref<8x128xf32, #tpu.memory_space<vmem>>, vector<8x128xf32>
    tpu.vector_store %arg8[%c0_17, %c0_18], %22 {strides = array<i32>} : memref<8x128xf32, #tpu.memory_space<vmem>>, vector<8x128xf32>,
    return
  }
  func.func @transform_0(%arg0: i32) -> (i32, i32) {
    %c0_i32 = arith.constant 0 : i32
    %c0_i32_0 = arith.constant 0 : i32
    return %arg0, %c0_i32 : i32, i32
  }
  func.func @transform_1(%arg0: i32) -> (i32, i32) {
    %c0_i32 = arith.constant 0 : i32
    %c0_i32_0 = arith.constant 0 : i32
    %c0_i32_1 = arith.constant 0 : i32
    return %c0_i32, %c0_i32_0 : i32, i32
  }
  func.func @transform_2(%arg0: i32) -> (i32, i32) {
    %c0_i32 = arith.constant 0 : i32
    %c0_i32_0 = arith.constant 0 : i32
    %c0_i32_1 = arith.constant 0 : i32
    return %c0_i32, %c0_i32_0 : i32, i32
  }
  func.func @transform_3(%arg0: i32) -> (i32, i32) {
    %c0_i32 = arith.constant 0 : i32
    %c0_i32_0 = arith.constant 0 : i32
    %c0_i32_1 = arith.constant 0 : i32
    return %c0_i32, %c0_i32_0 : i32, i32
  }
  func.func @transform_4(%arg0: i32) -> (i32, i32) {
    %c0_i32 = arith.constant 0 : i32
    %c0_i32_0 = arith.constant 0 : i32
    %c0_i32_1 = arith.constant 0 : i32
    return %c0_i32, %c0_i32_0 : i32, i32
  }
  func.func @transform_5(%arg0: i32) -> (i32, i32) {
    %c0_i32 = arith.constant 0 : i32
    %c0_i32_0 = arith.constant 0 : i32
    %c0_i32_1 = arith.constant 0 : i32
    return %c0_i32, %c0_i32_0 : i32, i32
  }
  func.func @transform_6(%arg0: i32) -> (i32, i32) {
    %c0_i32 = arith.constant 0 : i32
    %c0_i32_0 = arith.constant 0 : i32
    %c0_i32_1 = arith.constant 0 : i32
    return %c0_i32, %c0_i32_0 : i32, i32
  }
  func.func @transform_7(%arg0: i32) -> (i32, i32) {
    %c0_i32 = arith.constant 0 : i32
    %c0_i32_0 = arith.constant 0 : i32
    return %arg0, %c0_i32 : i32, i32
  }
}

</mosaic_0001>

<llo_original>
// kernel: tpu_custom_call.1
$region0: #{tpu_custom_call.1}
  #allocation0 [shape = 'u32[]', space=smem, size = 0x4, offset = 0x4, fixed_abs, tag = 'smem constant byte address 0x4 - core index']
  #allocation1 [shape = 'u32[144,128]{1,0:T(1,128)}', space=vmem, size = 0x12000, scoped, tag = 'internal scratch']
  #allocation2 [shape = 'f32[1,1]{1,0:T(1,128)S(1)}', space=vmem, size = 0x200, scoped, tag = 'scoped memory for tpu_custom_call.1']
  %s0 = inlined_call_operand.vmem [shape: f32[1024,8], index: 0, kind: input, shape index: {}]
  %s1 = inlined_call_operand.vmem [shape: f32[8,32], index: 1, kind: input, shape index: {}]
  %s2 = inlined_call_operand.vmem [shape: f32[1,32], index: 2, kind: input, shape index: {}]
  %s3 = inlined_call_operand.vmem [shape: f32[32,32], index: 3, kind: input, shape index: {}]
  %s4 = inlined_call_operand.vmem [shape: f32[1,32], index: 4, kind: input, shape index: {}]
  %s5 = inlined_call_operand.vmem [shape: f32[1,32], index: 5, kind: input, shape index: {}]
  %s6 = inlined_call_operand.<no memory space> [shape: f32[1,1], index: 6, kind: input, shape index: {}]
  %s7 = inlined_call_operand.hbm [shape: f32[8,128], index: 7, kind: output, shape index: {}]
  %s8 = sld [smem:[#allocation0]]
  $region38: #{tpu_custom_call.1} parent=0
    _
  %s10 = ssub.s32 1, %s8
  %s11 = scalar_select 0, %s10, %s8
  %v12 = vstv %s6
  %13 = vst [vmem:[#allocation2] sm:$0x1] %v12
  $region1: #{tpu_custom_call.1} parent=0
    #allocation3 [shape = 'u8[4096]{0}', space=vmem, size = 0x1000, scoped, tag = 'output window, operand 0, single buffered']
    #allocation4 [shape = 's32[1]{0}', space=sflag, size = 0x4, scoped, tag = 'scoped memory for tpu_custom_call.1']
    %14 = vsyncpa [#allocation4], 0
    // Predicated region
    $region2: #{tpu_custom_call.1} parent=1 // pred_check
      _
    $region3: #{tpu_custom_call.1} parent=1 // pred_check_branch
      %16 = sbr.rel (0) target = $region5
    $region4: #{tpu_custom_call.1} parent=1 // pred_region
      _
    $region5: #{tpu_custom_call.1} parent=1 // pred_fallthru
      _
    // Predicated region
    $region6: #{tpu_custom_call.1} parent=1 // pred_check
      _
    $region7: #{tpu_custom_call.1} parent=1 // pred_check_branch
      %18 = sbr.rel (0) target = $region9
    $region8: #{tpu_custom_call.1} parent=1 // pred_region
      _
    $region9: #{tpu_custom_call.1} parent=1 // pred_fallthru
      _
    // Predicated region
    $region10: #{tpu_custom_call.1} parent=1 // pred_check
      _
    $region11: #{tpu_custom_call.1} parent=1 // pred_check_branch
      %20 = sbr.rel (0) target = $region13
    $region12: #{tpu_custom_call.1} parent=1 // pred_region
      _
    $region13: #{tpu_custom_call.1} parent=1 // pred_fallthru
      _
    // Predicated region
    $region14: #{tpu_custom_call.1} parent=1 // pred_check
      _
    $region15: #{tpu_custom_call.1} parent=1 // pred_check_branch
      %22 = sbr.rel (0) target = $region17
    $region16: #{tpu_custom_call.1} parent=1 // pred_region
      _
    $region17: #{tpu_custom_call.1} parent=1 // pred_fallthru
      _
    // Predicated region
    $region18: #{tpu_custom_call.1} parent=1 // pred_check
      _
    $region19: #{tpu_custom_call.1} parent=1 // pred_check_branch
      %24 = sbr.rel (0) target = $region21
    $region20: #{tpu_custom_call.1} parent=1 // pred_region
      _
    $region21: #{tpu_custom_call.1} parent=1 // pred_fallthru
      _
    // Predicated region
    $region22: #{tpu_custom_call.1} parent=1 // pred_check
      _
    $region23: #{tpu_custom_call.1} parent=1 // pred_check_branch
      %26 = sbr.rel (0) target = $region25
    $region24: #{tpu_custom_call.1} parent=1 // pred_region
      _
    $region25: #{tpu_custom_call.1} parent=1 // pred_fallthru
      _
    // Predicated region
    $region26: #{tpu_custom_call.1} parent=1 // pred_check
      _
    $region27: #{tpu_custom_call.1} parent=1 // pred_check_branch
      %28 = sbr.rel (0) target = $region29
    $region28: #{tpu_custom_call.1} parent=1 // pred_region
      _
    $region29: #{tpu_custom_call.1} parent=1 // pred_fallthru
      _
    %v29 = vld [vmem:[%s0] sm:$0xff]
    %v30 = vld [vmem:[%s0 + $0x8] sm:$0xff]
    %v31 = vld [vmem:[%s0 + $0x10] sm:$0xff]
    %v32 = vld [vmem:[%s0 + $0x18] sm:$0xff]
    %v33 = vld [vmem:[%s0 + $0x20] sm:$0xff]
    %v34 = vld [vmem:[%s0 + $0x28] sm:$0xff]
    %v35 = vld [vmem:[%s0 + $0x30] sm:$0xff]
    %v36 = vld [vmem:[%s0 + $0x38] sm:$0xff]
    %v37 = vld [vmem:[%s0 + $0x40] sm:$0xff]
    %v38 = vld [vmem:[%s0 + $0x48] sm:$0xff]
    %v39 = vld [vmem:[%s0 + $0x50] sm:$0xff]
    %v40 = vld [vmem:[%s0 + $0x58] sm:$0xff]
    %v41 = vld [vmem:[%s0 + $0x60] sm:$0xff]
    %v42 = vld [vmem:[%s0 + $0x68] sm:$0xff]
    %v43 = vld [vmem:[%s0 + $0x70] sm:$0xff]
    %v44 = vld [vmem:[%s0 + $0x78] sm:$0xff]
    %v45 = vld [vmem:[%s0 + $0x80] sm:$0xff]
    %v46 = vld [vmem:[%s0 + $0x88] sm:$0xff]
    %v47 = vld [vmem:[%s0 + $0x90] sm:$0xff]
    %v48 = vld [vmem:[%s0 + $0x98] sm:$0xff]
    %v49 = vld [vmem:[%s0 + $0xa0] sm:$0xff]
    %v50 = vld [vmem:[%s0 + $0xa8] sm:$0xff]
    %v51 = vld [vmem:[%s0 + $0xb0] sm:$0xff]
    %v52 = vld [vmem:[%s0 + $0xb8] sm:$0xff]
    %v53 = vld [vmem:[%s0 + $0xc0] sm:$0xff]
    %v54 = vld [vmem:[%s0 + $0xc8] sm:$0xff]
    %v55 = vld [vmem:[%s0 + $0xd0] sm:$0xff]
    %v56 = vld [vmem:[%s0 + $0xd8] sm:$0xff]
    %v57 = vld [vmem:[%s0 + $0xe0] sm:$0xff]
    %v58 = vld [vmem:[%s0 + $0xe8] sm:$0xff]
    %v59 = vld [vmem:[%s0 + $0xf0] sm:$0xff]
    %v60 = vld [vmem:[%s0 + $0xf8] sm:$0xff]
    %v61 = vld [vmem:[%s0 + $0x100] sm:$0xff]
    %v62 = vld [vmem:[%s0 + $0x108] sm:$0xff]
    %v63 = vld [vmem:[%s0 + $0x110] sm:$0xff]
    %v64 = vld [vmem:[%s0 + $0x118] sm:$0xff]
    %v65 = vld [vmem:[%s0 + $0x120] sm:$0xff]
    %v66 = vld [vmem:[%s0 + $0x128] sm:$0xff]
    %v67 = vld [vmem:[%s0 + $0x130] sm:$0xff]
    %v68 = vld [vmem:[%s0 + $0x138] sm:$0xff]
    %v69 = vld [vmem:[%s0 + $0x140] sm:$0xff]
    %v70 = vld [vmem:[%s0 + $0x148] sm:$0xff]
    %v71 = vld [vmem:[%s0 + $0x150] sm:$0xff]
    %v72 = vld [vmem:[%s0 + $0x158] sm:$0xff]
    %v73 = vld [vmem:[%s0 + $0x160] sm:$0xff]
    %v74 = vld [vmem:[%s0 + $0x168] sm:$0xff]
    %v75 = vld [vmem:[%s0 + $0x170] sm:$0xff]
    %v76 = vld [vmem:[%s0 + $0x178] sm:$0xff]
    %v77 = vld [vmem:[%s0 + $0x180] sm:$0xff]
    %v78 = vld [vmem:[%s0 + $0x188] sm:$0xff]
    %v79 = vld [vmem:[%s0 + $0x190] sm:$0xff]
    %v80 = vld [vmem:[%s0 + $0x198] sm:$0xff]
    %v81 = vld [vmem:[%s0 + $0x1a0] sm:$0xff]
    %v82 = vld [vmem:[%s0 + $0x1a8] sm:$0xff]
    %v83 = vld [vmem:[%s0 + $0x1b0] sm:$0xff]
    %v84 = vld [vmem:[%s0 + $0x1b8] sm:$0xff]
    %v85 = vld [vmem:[%s0 + $0x1c0] sm:$0xff]
    %v86 = vld [vmem:[%s0 + $0x1c8] sm:$0xff]
    %v87 = vld [vmem:[%s0 + $0x1d0] sm:$0xff]
    %v88 = vld [vmem:[%s0 + $0x1d8] sm:$0xff]
    %v89 = vld [vmem:[%s0 + $0x1e0] sm:$0xff]
    %v90 = vld [vmem:[%s0 + $0x1e8] sm:$0xff]
    %v91 = vld [vmem:[%s0 + $0x1f0] sm:$0xff]
    %v92 = vld [vmem:[%s0 + $0x1f8] sm:$0xff]
    %v93 = vld [vmem:[%s0 + $0x200] sm:$0xff]
    %v94 = vld [vmem:[%s0 + $0x208] sm:$0xff]
    %v95 = vld [vmem:[%s0 + $0x210] sm:$0xff]
    %v96 = vld [vmem:[%s0 + $0x218] sm:$0xff]
    %v97 = vld [vmem:[%s0 + $0x220] sm:$0xff]
    %v98 = vld [vmem:[%s0 + $0x228] sm:$0xff]
    %v99 = vld [vmem:[%s0 + $0x230] sm:$0xff]
    %v100 = vld [vmem:[%s0 + $0x238] sm:$0xff]
    %v101 = vld [vmem:[%s0 + $0x240] sm:$0xff]
    %v102 = vld [vmem:[%s0 + $0x248] sm:$0xff]
    %v103 = vld [vmem:[%s0 + $0x250] sm:$0xff]
    %v104 = vld [vmem:[%s0 + $0x258] sm:$0xff]
    %v105 = vld [vmem:[%s0 + $0x260] sm:$0xff]
    %v106 = vld [vmem:[%s0 + $0x268] sm:$0xff]
    %v107 = vld [vmem:[%s0 + $0x270] sm:$0xff]
    %v108 = vld [vmem:[%s0 + $0x278] sm:$0xff]
    %v109 = vld [vmem:[%s0 + $0x280] sm:$0xff]
    %v110 = vld [vmem:[%s0 + $0x288] sm:$0xff]
    %v111 = vld [vmem:[%s0 + $0x290] sm:$0xff]
    %v112 = vld [vmem:[%s0 + $0x298] sm:$0xff]
    %v113 = vld [vmem:[%s0 + $0x2a0] sm:$0xff]
    %v114 = vld [vmem:[%s0 + $0x2a8] sm:$0xff]
    %v115 = vld [vmem:[%s0 + $0x2b0] sm:$0xff]
    %v116 = vld [vmem:[%s0 + $0x2b8] sm:$0xff]
    %v117 = vld [vmem:[%s0 + $0x2c0] sm:$0xff]
    %v118 = vld [vmem:[%s0 + $0x2c8] sm:$0xff]
    %v119 = vld [vmem:[%s0 + $0x2d0] sm:$0xff]
    %v120 = vld [vmem:[%s0 + $0x2d8] sm:$0xff]
    %v121 = vld [vmem:[%s0 + $0x2e0] sm:$0xff]
    %v122 = vld [vmem:[%s0 + $0x2e8] sm:$0xff]
    %v123 = vld [vmem:[%s0 + $0x2f0] sm:$0xff]
    %v124 = vld [vmem:[%s0 + $0x2f8] sm:$0xff]
    %v125 = vld [vmem:[%s0 + $0x300] sm:$0xff]
    %v126 = vld [vmem:[%s0 + $0x308] sm:$0xff]
    %v127 = vld [vmem:[%s0 + $0x310] sm:$0xff]
    %v128 = vld [vmem:[%s0 + $0x318] sm:$0xff]
    %v129 = vld [vmem:[%s0 + $0x320] sm:$0xff]
    %v130 = vld [vmem:[%s0 + $0x328] sm:$0xff]
    %v131 = vld [vmem:[%s0 + $0x330] sm:$0xff]
    %v132 = vld [vmem:[%s0 + $0x338] sm:$0xff]
    %v133 = vld [vmem:[%s0 + $0x340] sm:$0xff]
    %v134 = vld [vmem:[%s0 + $0x348] sm:$0xff]
    %v135 = vld [vmem:[%s0 + $0x350] sm:$0xff]
    %v136 = vld [vmem:[%s0 + $0x358] sm:$0xff]
    %v137 = vld [vmem:[%s0 + $0x360] sm:$0xff]
    %v138 = vld [vmem:[%s0 + $0x368] sm:$0xff]
    %v139 = vld [vmem:[%s0 + $0x370] sm:$0xff]
    %v140 = vld [vmem:[%s0 + $0x378] sm:$0xff]
    %v141 = vld [vmem:[%s0 + $0x380] sm:$0xff]
    %v142 = vld [vmem:[%s0 + $0x388] sm:$0xff]
    %v143 = vld [vmem:[%s0 + $0x390] sm:$0xff]
    %v144 = vld [vmem:[%s0 + $0x398] sm:$0xff]
    %v145 = vld [vmem:[%s0 + $0x3a0] sm:$0xff]
    %v146 = vld [vmem:[%s0 + $0x3a8] sm:$0xff]
    %v147 = vld [vmem:[%s0 + $0x3b0] sm:$0xff]
    %v148 = vld [vmem:[%s0 + $0x3b8] sm:$0xff]
    %v149 = vld [vmem:[%s0 + $0x3c0] sm:$0xff]
    %v150 = vld [vmem:[%s0 + $0x3c8] sm:$0xff]
    %v151 = vld [vmem:[%s0 + $0x3d0] sm:$0xff]
    %v152 = vld [vmem:[%s0 + $0x3d8] sm:$0xff]
    %v153 = vld [vmem:[%s0 + $0x3e0] sm:$0xff]
    %v154 = vld [vmem:[%s0 + $0x3e8] sm:$0xff]
    %v155 = vld [vmem:[%s0 + $0x3f0] sm:$0xff]
    %v156 = vld [vmem:[%s0 + $0x3f8] sm:$0xff]
    %v157 = vld [vmem:[%s1] sm:$0xff]
    %v158 = vld [vmem:[%s2] sm:$0x1]
    %v160 = vlaneseq
    %v161 = vshrl.u32 %v160, 7
    %v162 = vsub.s32 0, %v161
    %v163 = vrot.slane %v158, %v162
    %vm165 = vcmask 64512
    %v167 = vsel %vm165, %v29, 0
    %v170 = vsel %vm165, %v30, 0
    %v173 = vsel %vm165, %v31, 0
    %v176 = vsel %vm165, %v32, 0
    %v179 = vsel %vm165, %v33, 0
    %v182 = vsel %vm165, %v34, 0
    %v185 = vsel %vm165, %v35, 0
    %v188 = vsel %vm165, %v36, 0
    %v191 = vsel %vm165, %v37, 0
    %v194 = vsel %vm165, %v38, 0
    %v197 = vsel %vm165, %v39, 0
    %v200 = vsel %vm165, %v40, 0
    %v203 = vsel %vm165, %v41, 0
    %v206 = vsel %vm165, %v42, 0
    %v209 = vsel %vm165, %v43, 0
    %v212 = vsel %vm165, %v44, 0
    %v215 = vsel %vm165, %v45, 0
    %v218 = vsel %vm165, %v46, 0
    %v221 = vsel %vm165, %v47, 0
    %v224 = vsel %vm165, %v48, 0
    %v227 = vsel %vm165, %v49, 0
    %v230 = vsel %vm165, %v50, 0
    %v233 = vsel %vm165, %v51, 0
    %v236 = vsel %vm165, %v52, 0
    %v239 = vsel %vm165, %v53, 0
    %v242 = vsel %vm165, %v54, 0
    %v245 = vsel %vm165, %v55, 0
    %v248 = vsel %vm165, %v56, 0
    %v251 = vsel %vm165, %v57, 0
    %v254 = vsel %vm165, %v58, 0
    %v257 = vsel %vm165, %v59, 0
    %v260 = vsel %vm165, %v60, 0
    %v263 = vsel %vm165, %v61, 0
    %v266 = vsel %vm165, %v62, 0
    %v269 = vsel %vm165, %v63, 0
    %v272 = vsel %vm165, %v64, 0
    %v275 = vsel %vm165, %v65, 0
    %v278 = vsel %vm165, %v66, 0
    %v281 = vsel %vm165, %v67, 0
    %v284 = vsel %vm165, %v68, 0
    %v287 = vsel %vm165, %v69, 0
    %v290 = vsel %vm165, %v70, 0
    %v293 = vsel %vm165, %v71, 0
    %v296 = vsel %vm165, %v72, 0
    %v299 = vsel %vm165, %v73, 0
    %v302 = vsel %vm165, %v74, 0
    %v305 = vsel %vm165, %v75, 0
    %v308 = vsel %vm165, %v76, 0
    %v311 = vsel %vm165, %v77, 0
    %v314 = vsel %vm165, %v78, 0
    %v317 = vsel %vm165, %v79, 0
    %v320 = vsel %vm165, %v80, 0
    %v323 = vsel %vm165, %v81, 0
    %v326 = vsel %vm165, %v82, 0
    %v329 = vsel %vm165, %v83, 0
    %v332 = vsel %vm165, %v84, 0
    %v335 = vsel %vm165, %v85, 0
    %v338 = vsel %vm165, %v86, 0
    %v341 = vsel %vm165, %v87, 0
    %v344 = vsel %vm165, %v88, 0
    %v347 = vsel %vm165, %v89, 0
    %v350 = vsel %vm165, %v90, 0
    %v353 = vsel %vm165, %v91, 0
    %v356 = vsel %vm165, %v92, 0
    %v359 = vsel %vm165, %v93, 0
    %v362 = vsel %vm165, %v94, 0
    %v365 = vsel %vm165, %v95, 0
    %v368 = vsel %vm165, %v96, 0
    %v371 = vsel %vm165, %v97, 0
    %v374 = vsel %vm165, %v98, 0
    %v377 = vsel %vm165, %v99, 0
    %v380 = vsel %vm165, %v100, 0
    %v383 = vsel %vm165, %v101, 0
    %v386 = vsel %vm165, %v102, 0
    %v389 = vsel %vm165, %v103, 0
    %v392 = vsel %vm165, %v104, 0
    %v395 = vsel %vm165, %v105, 0
    %v398 = vsel %vm165, %v106, 0
    %v401 = vsel %vm165, %v107, 0
    %v404 = vsel %vm165, %v108, 0
    %v407 = vsel %vm165, %v109, 0
    %v410 = vsel %vm165, %v110, 0
    %v413 = vsel %vm165, %v111, 0
    %v416 = vsel %vm165, %v112, 0
    %v419 = vsel %vm165, %v113, 0
    %v422 = vsel %vm165, %v114, 0
    %v425 = vsel %vm165, %v115, 0
    %v428 = vsel %vm165, %v116, 0
    %v431 = vsel %vm165, %v117, 0
    %v434 = vsel %vm165, %v118, 0
    %v437 = vsel %vm165, %v119, 0
    %v440 = vsel %vm165, %v120, 0
    %v443 = vsel %vm165, %v121, 0
    %v446 = vsel %vm165, %v122, 0
    %v449 = vsel %vm165, %v123, 0
    %v452 = vsel %vm165, %v124, 0
    %v455 = vsel %vm165, %v125, 0
    %v458 = vsel %vm165, %v126, 0
    %v461 = vsel %vm165, %v127, 0
    %v464 = vsel %vm165, %v128, 0
    %v467 = vsel %vm165, %v129, 0
    %v470 = vsel %vm165, %v130, 0
    %v473 = vsel %vm165, %v131, 0
    %v476 = vsel %vm165, %v132, 0
    %v479 = vsel %vm165, %v133, 0
    %v482 = vsel %vm165, %v134, 0
    %v485 = vsel %vm165, %v135, 0
    %v488 = vsel %vm165, %v136, 0
    %v491 = vsel %vm165, %v137, 0
    %v494 = vsel %vm165, %v138, 0
    %v497 = vsel %vm165, %v139, 0
    %v500 = vsel %vm165, %v140, 0
    %v503 = vsel %vm165, %v141, 0
    %v506 = vsel %vm165, %v142, 0
    %v509 = vsel %vm165, %v143, 0
    %v512 = vsel %vm165, %v144, 0
    %v515 = vsel %vm165, %v145, 0
    %v518 = vsel %vm165, %v146, 0
    %v521 = vsel %vm165, %v147, 0
    %v524 = vsel %vm165, %v148, 0
    %v527 = vsel %vm165, %v149, 0
    %v530 = vsel %vm165, %v150, 0
    %v533 = vsel %vm165, %v151, 0
    %v536 = vsel %vm165, %v152, 0
    %v539 = vsel %vm165, %v153, 0
    %v542 = vsel %vm165, %v154, 0
    %v545 = vsel %vm165, %v155, 0
    %v548 = vsel %vm165, %v156, 0
    %550 = vmatprep.subr.mxu0 0.0
    %551 = vmatpush1.msra.mxu0 %v157
    %552 = vmatprep.subr.mxu0 0.0
    %553 = vmatpush1.msra.mxu0 0.0
    %554 = vmatprep.subr.mxu0 0.0
    %555 = vmatpush1.msra.mxu0 0.0
    %556 = vmatprep.subr.mxu0 0.0
    %557 = vmatpush1.msra.mxu0 0.0
    %558 = vmatprep.subr.mxu0 0.0
    %559 = vmatpush1.msra.mxu0 0.0
    %560 = vmatprep.subr.mxu0 0.0
    %561 = vmatpush1.msra.mxu0 0.0
    %562 = vmatprep.subr.mxu0 0.0
    %563 = vmatpush1.msra.mxu0 0.0
    %564 = vmatprep.subr.mxu0 0.0
    %565 = vmatpush1.msra.mxu0 0.0
    %566 = vmatprep.subr.mxu0 0.0
    %567 = vmatpush1.msra.mxu0 0.0
    %568 = vmatprep.subr.mxu0 0.0
    %569 = vmatpush1.msra.mxu0 0.0
    %570 = vmatprep.subr.mxu0 0.0
    %571 = vmatpush1.msra.mxu0 0.0
    %572 = vmatprep.subr.mxu0 0.0
    %573 = vmatpush1.msra.mxu0 0.0
    %574 = vmatprep.subr.mxu0 0.0
    %575 = vmatpush1.msra.mxu0 0.0
    %576 = vmatprep.subr.mxu0 0.0
    %577 = vmatpush1.msra.mxu0 0.0
    %578 = vmatprep.subr.mxu0 0.0
    %579 = vmatpush1.msra.mxu0 0.0
    %580 = vmatprep.subr.mxu0 0.0
    %581 = vmatpush1.msra.mxu0 0.0
    %582 = vmatprep.subr.mxu0 0.0
    %583 = vmatpush1.msra.mxu0 0.0
    %584 = vmatprep.subr.mxu0 0.0
    %585 = vmatpush1.msra.mxu0 0.0
    %586 = vmatprep.subr.mxu0 0.0
    %587 = vmatpush1.msra.mxu0 0.0
    %588 = vmatprep.subr.mxu0 0.0
    %589 = vmatpush1.msra.mxu0 0.0
    %590 = vmatprep.subr.mxu0 0.0
    %591 = vmatpush1.msra.mxu0 0.0
    %592 = vmatprep.subr.mxu0 0.0
    %593 = vmatpush1.msra.mxu0 0.0
    %594 = vmatprep.subr.mxu0 0.0
    %595 = vmatpush1.msra.mxu0 0.0
    %596 = vmatprep.subr.mxu0 0.0
    %597 = vmatpush1.msra.mxu0 0.0
    %598 = vmatprep.subr.mxu0 0.0
    %599 = vmatpush1.msra.mxu0 0.0
    %600 = vmatprep.subr.mxu0 0.0
    %601 = vmatpush1.msra.mxu0 0.0
    %602 = vmatprep.subr.mxu0 0.0
    %603 = vmatpush1.msra.mxu0 0.0
    %604 = vmatprep.subr.mxu0 0.0
    %605 = vmatpush1.msra.mxu0 0.0
    %606 = vmatprep.subr.mxu0 0.0
    %607 = vmatpush1.msra.mxu0 0.0
    %608 = vmatprep.subr.mxu0 0.0
    %609 = vmatpush1.msra.mxu0 0.0
    %610 = vmatprep.subr.mxu0 0.0
    %611 = vmatpush1.msra.mxu0 0.0
    %612 = vmatprep.subr.mxu0 0.0
    %613 = vmatpush1.msra.mxu0 0.0
    %614 = vmatprep.mubr.f32.mxu0 0.0
    %615 = vmatmul.mubr.f32.gmra.mrb[0].mxu0 %v167
    %v616 = vpop.f32.mrb[0].mxu0
    %v617 = vadd.f32 %v163, %v616
    %v618 = vpop.f32.mrb[0].mxu0
    %619 = vmatprep.mubr.f32.mxu0 0.0
    %620 = vmatmul.mubr.f32.gmra.mrb[0].mxu0 %v170
    %v621 = vpop.f32.mrb[0].mxu0
    %v622 = vadd.f32 %v163, %v621
    %v623 = vpop.f32.mrb[0].mxu0
    %624 = vmatprep.mubr.f32.mxu0 0.0
    %625 = vmatmul.mubr.f32.gmra.mrb[0].mxu0 %v173
    %v626 = vpop.f32.mrb[0].mxu0
    %v627 = vadd.f32 %v163, %v626
    %v628 = vpop.f32.mrb[0].mxu0
    %629 = vmatprep.mubr.f32.mxu0 0.0
    %630 = vmatmul.mubr.f32.gmra.mrb[0].mxu0 %v176
    %v631 = vpop.f32.mrb[0].mxu0
    %v632 = vadd.f32 %v163, %v631
    %v633 = vpop.f32.mrb[0].mxu0
    %634 = vmatprep.mubr.f32.mxu0 0.0
    %635 = vmatmul.mubr.f32.gmra.mrb[0].mxu0 %v179
    %v636 = vpop.f32.mrb[0].mxu0
    %v637 = vadd.f32 %v163, %v636
    %v638 = vpop.f32.mrb[0].mxu0
    %639 = vmatprep.mubr.f32.mxu0 0.0
    %640 = vmatmul.mubr.f32.gmra.mrb[0].mxu0 %v182
    %v641 = vpop.f32.mrb[0].mxu0
    %v642 = vadd.f32 %v163, %v641
    %v643 = vpop.f32.mrb[0].mxu0
    %644 = vmatprep.mubr.f32.mxu0 0.0
    %645 = vmatmul.mubr.f32.gmra.mrb[0].mxu0 %v185
    %v646 = vpop.f32.mrb[0].mxu0
    %v647 = vadd.f32 %v163, %v646
    %v648 = vpop.f32.mrb[0].mxu0
    %649 = vmatprep.mubr.f32.mxu0 0.0
    %650 = vmatmul.mubr.f32.gmra.mrb[0].mxu0 %v188
    %v651 = vpop.f32.mrb[0].mxu0
    %v652 = vadd.f32 %v163, %v651
    %v653 = vpop.f32.mrb[0].mxu0
    %654 = vmatprep.mubr.f32.mxu0 0.0
    %655 = vmatmul.mubr.f32.gmra.mrb[0].mxu0 %v191
    %v656 = vpop.f32.mrb[0].mxu0
    %v657 = vadd.f32 %v163, %v656
    %v658 = vpop.f32.mrb[0].mxu0
    %659 = vmatprep.mubr.f32.mxu0 0.0
    %660 = vmatmul.mubr.f32.gmra.mrb[0].mxu0 %v194
    %v661 = vpop.f32.mrb[0].mxu0
    %v662 = vadd.f32 %v163, %v661
    %v663 = vpop.f32.mrb[0].mxu0
    %664 = vmatprep.mubr.f32.mxu0 0.0
    %665 = vmatmul.mubr.f32.gmra.mrb[0].mxu0 %v197
    %v666 = vpop.f32.mrb[0].mxu0
    %v667 = vadd.f32 %v163, %v666
    %v668 = vpop.f32.mrb[0].mxu0
    %669 = vmatprep.mubr.f32.mxu0 0.0
    %670 = vmatmul.mubr.f32.gmra.mrb[0].mxu0 %v200
    %v671 = vpop.f32.mrb[0].mxu0
    %v672 = vadd.f32 %v163, %v671
    %v673 = vpop.f32.mrb[0].mxu0
    %674 = vmatprep.mubr.f32.mxu0 0.0
    %675 = vmatmul.mubr.f32.gmra.mrb[0].mxu0 %v203
    %v676 = vpop.f32.mrb[0].mxu0
    %v677 = vadd.f32 %v163, %v676
    %v678 = vpop.f32.mrb[0].mxu0
    %679 = vmatprep.mubr.f32.mxu0 0.0
    %680 = vmatmul.mubr.f32.gmra.mrb[0].mxu0 %v206
    %v681 = vpop.f32.mrb[0].mxu0
    %v682 = vadd.f32 %v163, %v681
    %v683 = vpop.f32.mrb[0].mxu0
    %684 = vmatprep.mubr.f32.mxu0 0.0
    %685 = vmatmul.mubr.f32.gmra.mrb[0].mxu0 %v209
    %v686 = vpop.f32.mrb[0].mxu0
    %v687 = vadd.f32 %v163, %v686
    %v688 = vpop.f32.mrb[0].mxu0
    %689 = vmatprep.mubr.f32.mxu0 0.0
    %690 = vmatmul.mubr.f32.gmra.mrb[0].mxu0 %v212
    %v691 = vpop.f32.mrb[0].mxu0
    %v692 = vadd.f32 %v163, %v691
    %v693 = vpop.f32.mrb[0].mxu0
    %694 = vmatprep.mubr.f32.mxu0 0.0
    %695 = vmatmul.mubr.f32.gmra.mrb[0].mxu0 %v215
    %v696 = vpop.f32.mrb[0].mxu0
    %v697 = vadd.f32 %v163, %v696
    %v698 = vpop.f32.mrb[0].mxu0
    %699 = vmatprep.mubr.f32.mxu0 0.0
    %700 = vmatmul.mubr.f32.gmra.mrb[0].mxu0 %v218
    %v701 = vpop.f32.mrb[0].mxu0
    %v702 = vadd.f32 %v163, %v701
    %v703 = vpop.f32.mrb[0].mxu0
    %704 = vmatprep.mubr.f32.mxu0 0.0
    %705 = vmatmul.mubr.f32.gmra.mrb[0].mxu0 %v221
    %v706 = vpop.f32.mrb[0].mxu0
    %v707 = vadd.f32 %v163, %v706
    %v708 = vpop.f32.mrb[0].mxu0
    %709 = vmatprep.mubr.f32.mxu0 0.0
    %710 = vmatmul.mubr.f32.gmra.mrb[0].mxu0 %v224
    %v711 = vpop.f32.mrb[0].mxu0
    %v712 = vadd.f32 %v163, %v711
    %v713 = vpop.f32.mrb[0].mxu0
    %714 = vmatprep.mubr.f32.mxu0 0.0
    %715 = vmatmul.mubr.f32.gmra.mrb[0].mxu0 %v227
    %v716 = vpop.f32.mrb[0].mxu0
    %v717 = vadd.f32 %v163, %v716
    %v718 = vpop.f32.mrb[0].mxu0
    %719 = vmatprep.mubr.f32.mxu0 0.0
    %720 = vmatmul.mubr.f32.gmra.mrb[0].mxu0 %v230
    %v721 = vpop.f32.mrb[0].mxu0
    %v722 = vadd.f32 %v163, %v721
    %v723 = vpop.f32.mrb[0].mxu0
    %724 = vmatprep.mubr.f32.mxu0 0.0
    %725 = vmatmul.mubr.f32.gmra.mrb[0].mxu0 %v233
    %v726 = vpop.f32.mrb[0].mxu0
    %v727 = vadd.f32 %v163, %v726
    %v728 = vpop.f32.mrb[0].mxu0
    %729 = vmatprep.mubr.f32.mxu0 0.0
    %730 = vmatmul.mubr.f32.gmra.mrb[0].mxu0 %v236
    %v731 = vpop.f32.mrb[0].mxu0
    %v732 = vadd.f32 %v163, %v731
    %v733 = vpop.f32.mrb[0].mxu0
    %734 = vmatprep.mubr.f32.mxu0 0.0
    %735 = vmatmul.mubr.f32.gmra.mrb[0].mxu0 %v239
    %v736 = vpop.f32.mrb[0].mxu0
    %v737 = vadd.f32 %v163, %v736
    %v738 = vpop.f32.mrb[0].mxu0
    %739 = vmatprep.mubr.f32.mxu0 0.0
    %740 = vmatmul.mubr.f32.gmra.mrb[0].mxu0 %v242
    %v741 = vpop.f32.mrb[0].mxu0
    %v742 = vadd.f32 %v163, %v741
    %v743 = vpop.f32.mrb[0].mxu0
    %744 = vmatprep.mubr.f32.mxu0 0.0
    %745 = vmatmul.mubr.f32.gmra.mrb[0].mxu0 %v245
    %v746 = vpop.f32.mrb[0].mxu0
    %v747 = vadd.f32 %v163, %v746
    %v748 = vpop.f32.mrb[0].mxu0
    %749 = vmatprep.mubr.f32.mxu0 0.0
    %750 = vmatmul.mubr.f32.gmra.mrb[0].mxu0 %v248
    %v751 = vpop.f32.mrb[0].mxu0
    %v752 = vadd.f32 %v163, %v751
    %v753 = vpop.f32.mrb[0].mxu0
    %754 = vmatprep.mubr.f32.mxu0 0.0
    %755 = vmatmul.mubr.f32.gmra.mrb[0].mxu0 %v251
    %v756 = vpop.f32.mrb[0].mxu0
    %v757 = vadd.f32 %v163, %v756
    %v758 = vpop.f32.mrb[0].mxu0
    %759 = vmatprep.mubr.f32.mxu0 0.0
    %760 = vmatmul.mubr.f32.gmra.mrb[0].mxu0 %v254
    %v761 = vpop.f32.mrb[0].mxu0
    %v762 = vadd.f32 %v163, %v761
    %v763 = vpop.f32.mrb[0].mxu0
    %764 = vmatprep.mubr.f32.mxu0 0.0
    %765 = vmatmul.mubr.f32.gmra.mrb[0].mxu0 %v257
    %v766 = vpop.f32.mrb[0].mxu0
    %v767 = vadd.f32 %v163, %v766
    %v768 = vpop.f32.mrb[0].mxu0
    %769 = vmatprep.mubr.f32.mxu0 0.0
    %770 = vmatmul.mubr.f32.gmra.mrb[0].mxu0 %v260
    %v771 = vpop.f32.mrb[0].mxu0
    %v772 = vadd.f32 %v163, %v771
    %v773 = vpop.f32.mrb[0].mxu0
    %774 = vmatprep.mubr.f32.mxu0 0.0
    %775 = vmatmul.mubr.f32.gmra.mrb[0].mxu0 %v263
    %v776 = vpop.f32.mrb[0].mxu0
    %v777 = vadd.f32 %v163, %v776
    %v778 = vpop.f32.mrb[0].mxu0
    %779 = vmatprep.mubr.f32.mxu0 0.0
    %780 = vmatmul.mubr.f32.gmra.mrb[0].mxu0 %v266
    %v781 = vpop.f32.mrb[0].mxu0
    %v782 = vadd.f32 %v163, %v781
    %v783 = vpop.f32.mrb[0].mxu0
    %784 = vmatprep.mubr.f32.mxu0 0.0
    %785 = vmatmul.mubr.f32.gmra.mrb[0].mxu0 %v269
    %v786 = vpop.f32.mrb[0].mxu0
    %v787 = vadd.f32 %v163, %v786
    %v788 = vpop.f32.mrb[0].mxu0
    %789 = vmatprep.mubr.f32.mxu0 0.0
    %790 = vmatmul.mubr.f32.gmra.mrb[0].mxu0 %v272
    %v791 = vpop.f32.mrb[0].mxu0
    %v792 = vadd.f32 %v163, %v791
    %v793 = vpop.f32.mrb[0].mxu0
    %794 = vmatprep.mubr.f32.mxu0 0.0
    %795 = vmatmul.mubr.f32.gmra.mrb[0].mxu0 %v275
    %v796 = vpop.f32.mrb[0].mxu0
    %v797 = vadd.f32 %v163, %v796
    %v798 = vpop.f32.mrb[0].mxu0
    %799 = vmatprep.mubr.f32.mxu0 0.0
    %800 = vmatmul.mubr.f32.gmra.mrb[0].mxu0 %v278
    %v801 = vpop.f32.mrb[0].mxu0
    %v802 = vadd.f32 %v163, %v801
    %v803 = vpop.f32.mrb[0].mxu0
    %804 = vmatprep.mubr.f32.mxu0 0.0
    %805 = vmatmul.mubr.f32.gmra.mrb[0].mxu0 %v281
    %v806 = vpop.f32.mrb[0].mxu0
    %v807 = vadd.f32 %v163, %v806
    %v808 = vpop.f32.mrb[0].mxu0
    %809 = vmatprep.mubr.f32.mxu0 0.0
    %810 = vmatmul.mubr.f32.gmra.mrb[0].mxu0 %v284
    %v811 = vpop.f32.mrb[0].mxu0
    %v812 = vadd.f32 %v163, %v811
    %v813 = vpop.f32.mrb[0].mxu0
    %814 = vmatprep.mubr.f32.mxu0 0.0
    %815 = vmatmul.mubr.f32.gmra.mrb[0].mxu0 %v287
    %v816 = vpop.f32.mrb[0].mxu0
    %v817 = vadd.f32 %v163, %v816
    %v818 = vpop.f32.mrb[0].mxu0
    %819 = vmatprep.mubr.f32.mxu0 0.0
    %820 = vmatmul.mubr.f32.gmra.mrb[0].mxu0 %v290
    %v821 = vpop.f32.mrb[0].mxu0
    %v822 = vadd.f32 %v163, %v821
    %v823 = vpop.f32.mrb[0].mxu0
    %824 = vmatprep.mubr.f32.mxu0 0.0
    %825 = vmatmul.mubr.f32.gmra.mrb[0].mxu0 %v293
    %v826 = vpop.f32.mrb[0].mxu0
    %v827 = vadd.f32 %v163, %v826
    %v828 = vpop.f32.mrb[0].mxu0
    %829 = vmatprep.mubr.f32.mxu0 0.0
    %830 = vmatmul.mubr.f32.gmra.mrb[0].mxu0 %v296
    %v831 = vpop.f32.mrb[0].mxu0
    %v832 = vadd.f32 %v163, %v831
    %v833 = vpop.f32.mrb[0].mxu0
    %834 = vmatprep.mubr.f32.mxu0 0.0
    %835 = vmatmul.mubr.f32.gmra.mrb[0].mxu0 %v299
    %v836 = vpop.f32.mrb[0].mxu0
    %v837 = vadd.f32 %v163, %v836
    %v838 = vpop.f32.mrb[0].mxu0
    %839 = vmatprep.mubr.f32.mxu0 0.0
    %840 = vmatmul.mubr.f32.gmra.mrb[0].mxu0 %v302
    %v841 = vpop.f32.mrb[0].mxu0
    %v842 = vadd.f32 %v163, %v841
    %v843 = vpop.f32.mrb[0].mxu0
    %844 = vmatprep.mubr.f32.mxu0 0.0
    %845 = vmatmul.mubr.f32.gmra.mrb[0].mxu0 %v305
    %v846 = vpop.f32.mrb[0].mxu0
    %v847 = vadd.f32 %v163, %v846
    %v848 = vpop.f32.mrb[0].mxu0
    %849 = vmatprep.mubr.f32.mxu0 0.0
    %850 = vmatmul.mubr.f32.gmra.mrb[0].mxu0 %v308
    %v851 = vpop.f32.mrb[0].mxu0
    %v852 = vadd.f32 %v163, %v851
    %v853 = vpop.f32.mrb[0].mxu0
    %854 = vmatprep.mubr.f32.mxu0 0.0
    %855 = vmatmul.mubr.f32.gmra.mrb[0].mxu0 %v311
    %v856 = vpop.f32.mrb[0].mxu0
    %v857 = vadd.f32 %v163, %v856
    %v858 = vpop.f32.mrb[0].mxu0
    %859 = vmatprep.mubr.f32.mxu0 0.0
    %860 = vmatmul.mubr.f32.gmra.mrb[0].mxu0 %v314
    %v861 = vpop.f32.mrb[0].mxu0
    %v862 = vadd.f32 %v163, %v861
    %v863 = vpop.f32.mrb[0].mxu0
    %864 = vmatprep.mubr.f32.mxu0 0.0
    %865 = vmatmul.mubr.f32.gmra.mrb[0].mxu0 %v317
    %v866 = vpop.f32.mrb[0].mxu0
    %v867 = vadd.f32 %v163, %v866
    %v868 = vpop.f32.mrb[0].mxu0
    %869 = vmatprep.mubr.f32.mxu0 0.0
    %870 = vmatmul.mubr.f32.gmra.mrb[0].mxu0 %v320
    %v871 = vpop.f32.mrb[0].mxu0
    %v872 = vadd.f32 %v163, %v871
    %v873 = vpop.f32.mrb[0].mxu0
    %874 = vmatprep.mubr.f32.mxu0 0.0
    %875 = vmatmul.mubr.f32.gmra.mrb[0].mxu0 %v323
    %v876 = vpop.f32.mrb[0].mxu0
    %v877 = vadd.f32 %v163, %v876
    %v878 = vpop.f32.mrb[0].mxu0
    %879 = vmatprep.mubr.f32.mxu0 0.0
    %880 = vmatmul.mubr.f32.gmra.mrb[0].mxu0 %v326
    %v881 = vpop.f32.mrb[0].mxu0
    %v882 = vadd.f32 %v163, %v881
    %v883 = vpop.f32.mrb[0].mxu0
    %884 = vmatprep.mubr.f32.mxu0 0.0
    %885 = vmatmul.mubr.f32.gmra.mrb[0].mxu0 %v329
    %v886 = vpop.f32.mrb[0].mxu0
    %v887 = vadd.f32 %v163, %v886
    %v888 = vpop.f32.mrb[0].mxu0
    %889 = vmatprep.mubr.f32.mxu0 0.0
    %890 = vmatmul.mubr.f32.gmra.mrb[0].mxu0 %v332
    %v891 = vpop.f32.mrb[0].mxu0
    %v892 = vadd.f32 %v163, %v891
    %v893 = vpop.f32.mrb[0].mxu0
    %894 = vmatprep.mubr.f32.mxu0 0.0
    %895 = vmatmul.mubr.f32.gmra.mrb[0].mxu0 %v335
    %v896 = vpop.f32.mrb[0].mxu0
    %v897 = vadd.f32 %v163, %v896
    %v898 = vpop.f32.mrb[0].mxu0
    %899 = vmatprep.mubr.f32.mxu0 0.0
    %900 = vmatmul.mubr.f32.gmra.mrb[0].mxu0 %v338
    %v901 = vpop.f32.mrb[0].mxu0
    %v902 = vadd.f32 %v163, %v901
    %v903 = vpop.f32.mrb[0].mxu0
    %904 = vmatprep.mubr.f32.mxu0 0.0
    %905 = vmatmul.mubr.f32.gmra.mrb[0].mxu0 %v341
    %v906 = vpop.f32.mrb[0].mxu0
    %v907 = vadd.f32 %v163, %v906
    %v908 = vpop.f32.mrb[0].mxu0
    %909 = vmatprep.mubr.f32.mxu0 0.0
    %910 = vmatmul.mubr.f32.gmra.mrb[0].mxu0 %v344
    %v911 = vpop.f32.mrb[0].mxu0
    %v912 = vadd.f32 %v163, %v911
    %v913 = vpop.f32.mrb[0].mxu0
    %914 = vmatprep.mubr.f32.mxu0 0.0
    %915 = vmatmul.mubr.f32.gmra.mrb[0].mxu0 %v347
    %v916 = vpop.f32.mrb[0].mxu0
    %v917 = vadd.f32 %v163, %v916
    %v918 = vpop.f32.mrb[0].mxu0
    %919 = vmatprep.mubr.f32.mxu0 0.0
    %920 = vmatmul.mubr.f32.gmra.mrb[0].mxu0 %v350
    %v921 = vpop.f32.mrb[0].mxu0
    %v922 = vadd.f32 %v163, %v921
    %v923 = vpop.f32.mrb[0].mxu0
    %924 = vmatprep.mubr.f32.mxu0 0.0
    %925 = vmatmul.mubr.f32.gmra.mrb[0].mxu0 %v353
    %v926 = vpop.f32.mrb[0].mxu0
    %v927 = vadd.f32 %v163, %v926
    %v928 = vpop.f32.mrb[0].mxu0
    %929 = vmatprep.mubr.f32.mxu0 0.0
    %930 = vmatmul.mubr.f32.gmra.mrb[0].mxu0 %v356
    %v931 = vpop.f32.mrb[0].mxu0
    %v932 = vadd.f32 %v163, %v931
    %v933 = vpop.f32.mrb[0].mxu0
    %934 = vmatprep.mubr.f32.mxu0 0.0
    %935 = vmatmul.mubr.f32.gmra.mrb[0].mxu0 %v359
    %v936 = vpop.f32.mrb[0].mxu0
    %v937 = vadd.f32 %v163, %v936
    %v938 = vpop.f32.mrb[0].mxu0
    %939 = vmatprep.mubr.f32.mxu0 0.0
    %940 = vmatmul.mubr.f32.gmra.mrb[0].mxu0 %v362
    %v941 = vpop.f32.mrb[0].mxu0
    %v942 = vadd.f32 %v163, %v941
    %v943 = vpop.f32.mrb[0].mxu0
    %944 = vmatprep.mubr.f32.mxu0 0.0
    %945 = vmatmul.mubr.f32.gmra.mrb[0].mxu0 %v365
    %v946 = vpop.f32.mrb[0].mxu0
    %v947 = vadd.f32 %v163, %v946
    %v948 = vpop.f32.mrb[0].mxu0
    %949 = vmatprep.mubr.f32.mxu0 0.0
    %950 = vmatmul.mubr.f32.gmra.mrb[0].mxu0 %v368
    %v951 = vpop.f32.mrb[0].mxu0
    %v952 = vadd.f32 %v163, %v951
    %v953 = vpop.f32.mrb[0].mxu0
    %954 = vmatprep.mubr.f32.mxu0 0.0
    %955 = vmatmul.mubr.f32.gmra.mrb[0].mxu0 %v371
    %v956 = vpop.f32.mrb[0].mxu0
    %v957 = vadd.f32 %v163, %v956
    %v958 = vpop.f32.mrb[0].mxu0
    %959 = vmatprep.mubr.f32.mxu0 0.0
    %960 = vmatmul.mubr.f32.gmra.mrb[0].mxu0 %v374
    %v961 = vpop.f32.mrb[0].mxu0
    %v962 = vadd.f32 %v163, %v961
    %v963 = vpop.f32.mrb[0].mxu0
    %964 = vmatprep.mubr.f32.mxu0 0.0
    %965 = vmatmul.mubr.f32.gmra.mrb[0].mxu0 %v377
    %v966 = vpop.f32.mrb[0].mxu0
    %v967 = vadd.f32 %v163, %v966
    %v968 = vpop.f32.mrb[0].mxu0
    %969 = vmatprep.mubr.f32.mxu0 0.0
    %970 = vmatmul.mubr.f32.gmra.mrb[0].mxu0 %v380
    %v971 = vpop.f32.mrb[0].mxu0
    %v972 = vadd.f32 %v163, %v971
    %v973 = vpop.f32.mrb[0].mxu0
    %974 = vmatprep.mubr.f32.mxu0 0.0
    %975 = vmatmul.mubr.f32.gmra.mrb[0].mxu0 %v383
    %v976 = vpop.f32.mrb[0].mxu0
    %v977 = vadd.f32 %v163, %v976
    %v978 = vpop.f32.mrb[0].mxu0
    %979 = vmatprep.mubr.f32.mxu0 0.0
    %980 = vmatmul.mubr.f32.gmra.mrb[0].mxu0 %v386
    %v981 = vpop.f32.mrb[0].mxu0
    %v982 = vadd.f32 %v163, %v981
    %v983 = vpop.f32.mrb[0].mxu0
    %984 = vmatprep.mubr.f32.mxu0 0.0
    %985 = vmatmul.mubr.f32.gmra.mrb[0].mxu0 %v389
    %v986 = vpop.f32.mrb[0].mxu0
    %v987 = vadd.f32 %v163, %v986
    %v988 = vpop.f32.mrb[0].mxu0
    %989 = vmatprep.mubr.f32.mxu0 0.0
    %990 = vmatmul.mubr.f32.gmra.mrb[0].mxu0 %v392
    %v991 = vpop.f32.mrb[0].mxu0
    %v992 = vadd.f32 %v163, %v991
    %v993 = vpop.f32.mrb[0].mxu0
    %994 = vmatprep.mubr.f32.mxu0 0.0
    %995 = vmatmul.mubr.f32.gmra.mrb[0].mxu0 %v395
    %v996 = vpop.f32.mrb[0].mxu0
    %v997 = vadd.f32 %v163, %v996
    %v998 = vpop.f32.mrb[0].mxu0
    %999 = vmatprep.mubr.f32.mxu0 0.0
    %1000 = vmatmul.mubr.f32.gmra.mrb[0].mxu0 %v398
    %v1001 = vpop.f32.mrb[0].mxu0
    %v1002 = vadd.f32 %v163, %v1001
    %v1003 = vpop.f32.mrb[0].mxu0
    %1004 = vmatprep.mubr.f32.mxu0 0.0
    %1005 = vmatmul.mubr.f32.gmra.mrb[0].mxu0 %v401
    %v1006 = vpop.f32.mrb[0].mxu0
    %v1007 = vadd.f32 %v163, %v1006
    %v1008 = vpop.f32.mrb[0].mxu0
    %1009 = vmatprep.mubr.f32.mxu0 0.0
    %1010 = vmatmul.mubr.f32.gmra.mrb[0].mxu0 %v404
    %v1011 = vpop.f32.mrb[0].mxu0
    %v1012 = vadd.f32 %v163, %v1011
    %v1013 = vpop.f32.mrb[0].mxu0
    %1014 = vmatprep.mubr.f32.mxu0 0.0
    %1015 = vmatmul.mubr.f32.gmra.mrb[0].mxu0 %v407
    %v1016 = vpop.f32.mrb[0].mxu0
    %v1017 = vadd.f32 %v163, %v1016
    %v1018 = vpop.f32.mrb[0].mxu0
    %1019 = vmatprep.mubr.f32.mxu0 0.0
    %1020 = vmatmul.mubr.f32.gmra.mrb[0].mxu0 %v410
    %v1021 = vpop.f32.mrb[0].mxu0
    %v1022 = vadd.f32 %v163, %v1021
    %v1023 = vpop.f32.mrb[0].mxu0
    %1024 = vmatprep.mubr.f32.mxu0 0.0
    %1025 = vmatmul.mubr.f32.gmra.mrb[0].mxu0 %v413
    %v1026 = vpop.f32.mrb[0].mxu0
    %v1027 = vadd.f32 %v163, %v1026
    %v1028 = vpop.f32.mrb[0].mxu0
    %1029 = vmatprep.mubr.f32.mxu0 0.0
    %1030 = vmatmul.mubr.f32.gmra.mrb[0].mxu0 %v416
    %v1031 = vpop.f32.mrb[0].mxu0
    %v1032 = vadd.f32 %v163, %v1031
    %v1033 = vpop.f32.mrb[0].mxu0
    %1034 = vmatprep.mubr.f32.mxu0 0.0
    %1035 = vmatmul.mubr.f32.gmra.mrb[0].mxu0 %v419
    %v1036 = vpop.f32.mrb[0].mxu0
    %v1037 = vadd.f32 %v163, %v1036
    %v1038 = vpop.f32.mrb[0].mxu0
    %1039 = vmatprep.mubr.f32.mxu0 0.0
    %1040 = vmatmul.mubr.f32.gmra.mrb[0].mxu0 %v422
    %v1041 = vpop.f32.mrb[0].mxu0
    %v1042 = vadd.f32 %v163, %v1041
    %v1043 = vpop.f32.mrb[0].mxu0
    %1044 = vmatprep.mubr.f32.mxu0 0.0
    %1045 = vmatmul.mubr.f32.gmra.mrb[0].mxu0 %v425
    %v1046 = vpop.f32.mrb[0].mxu0
    %v1047 = vadd.f32 %v163, %v1046
    %v1048 = vpop.f32.mrb[0].mxu0
    %1049 = vmatprep.mubr.f32.mxu0 0.0
    %1050 = vmatmul.mubr.f32.gmra.mrb[0].mxu0 %v428
    %v1051 = vpop.f32.mrb[0].mxu0
    %v1052 = vadd.f32 %v163, %v1051
    %v1053 = vpop.f32.mrb[0].mxu0
    %1054 = vmatprep.mubr.f32.mxu0 0.0
    %1055 = vmatmul.mubr.f32.gmra.mrb[0].mxu0 %v431
    %v1056 = vpop.f32.mrb[0].mxu0
    %v1057 = vadd.f32 %v163, %v1056
    %v1058 = vpop.f32.mrb[0].mxu0
    %1059 = vmatprep.mubr.f32.mxu0 0.0
    %1060 = vmatmul.mubr.f32.gmra.mrb[0].mxu0 %v434
    %v1061 = vpop.f32.mrb[0].mxu0
    %v1062 = vadd.f32 %v163, %v1061
    %v1063 = vpop.f32.mrb[0].mxu0
    %1064 = vmatprep.mubr.f32.mxu0 0.0
    %1065 = vmatmul.mubr.f32.gmra.mrb[0].mxu0 %v437
    %v1066 = vpop.f32.mrb[0].mxu0
    %v1067 = vadd.f32 %v163, %v1066
    %v1068 = vpop.f32.mrb[0].mxu0
    %1069 = vmatprep.mubr.f32.mxu0 0.0
    %1070 = vmatmul.mubr.f32.gmra.mrb[0].mxu0 %v440
    %v1071 = vpop.f32.mrb[0].mxu0
    %v1072 = vadd.f32 %v163, %v1071
    %v1073 = vpop.f32.mrb[0].mxu0
    %1074 = vmatprep.mubr.f32.mxu0 0.0
    %1075 = vmatmul.mubr.f32.gmra.mrb[0].mxu0 %v443
    %v1076 = vpop.f32.mrb[0].mxu0
    %v1077 = vadd.f32 %v163, %v1076
    %v1078 = vpop.f32.mrb[0].mxu0
    %1079 = vmatprep.mubr.f32.mxu0 0.0
    %1080 = vmatmul.mubr.f32.gmra.mrb[0].mxu0 %v446
    %v1081 = vpop.f32.mrb[0].mxu0
    %v1082 = vadd.f32 %v163, %v1081
    %v1083 = vpop.f32.mrb[0].mxu0
    %1084 = vmatprep.mubr.f32.mxu0 0.0
    %1085 = vmatmul.mubr.f32.gmra.mrb[0].mxu0 %v449
    %v1086 = vpop.f32.mrb[0].mxu0
    %v1087 = vadd.f32 %v163, %v1086
    %v1088 = vpop.f32.mrb[0].mxu0
    %1089 = vmatprep.mubr.f32.mxu0 0.0
    %1090 = vmatmul.mubr.f32.gmra.mrb[0].mxu0 %v452
    %v1091 = vpop.f32.mrb[0].mxu0
    %v1092 = vadd.f32 %v163, %v1091
    %v1093 = vpop.f32.mrb[0].mxu0
    %1094 = vmatprep.mubr.f32.mxu0 0.0
    %1095 = vmatmul.mubr.f32.gmra.mrb[0].mxu0 %v455
    %v1096 = vpop.f32.mrb[0].mxu0
    %v1097 = vadd.f32 %v163, %v1096
    %v1098 = vpop.f32.mrb[0].mxu0
    %1099 = vmatprep.mubr.f32.mxu0 0.0
    %1100 = vmatmul.mubr.f32.gmra.mrb[0].mxu0 %v458
    %v1101 = vpop.f32.mrb[0].mxu0
    %v1102 = vadd.f32 %v163, %v1101
    %v1103 = vpop.f32.mrb[0].mxu0
    %1104 = vmatprep.mubr.f32.mxu0 0.0
    %1105 = vmatmul.mubr.f32.gmra.mrb[0].mxu0 %v461
    %v1106 = vpop.f32.mrb[0].mxu0
    %v1107 = vadd.f32 %v163, %v1106
    %v1108 = vpop.f32.mrb[0].mxu0
    %1109 = vmatprep.mubr.f32.mxu0 0.0
    %1110 = vmatmul.mubr.f32.gmra.mrb[0].mxu0 %v464
    %v1111 = vpop.f32.mrb[0].mxu0
    %v1112 = vadd.f32 %v163, %v1111
    %v1113 = vpop.f32.mrb[0].mxu0
    %1114 = vmatprep.mubr.f32.mxu0 0.0
    %1115 = vmatmul.mubr.f32.gmra.mrb[0].mxu0 %v467
    %v1116 = vpop.f32.mrb[0].mxu0
    %v1117 = vadd.f32 %v163, %v1116
    %v1118 = vpop.f32.mrb[0].mxu0
    %1119 = vmatprep.mubr.f32.mxu0 0.0
    %1120 = vmatmul.mubr.f32.gmra.mrb[0].mxu0 %v470
    %v1121 = vpop.f32.mrb[0].mxu0
    %v1122 = vadd.f32 %v163, %v1121
    %v1123 = vpop.f32.mrb[0].mxu0
    %1124 = vmatprep.mubr.f32.mxu0 0.0
    %1125 = vmatmul.mubr.f32.gmra.mrb[0].mxu0 %v473
    %v1126 = vpop.f32.mrb[0].mxu0
    %v1127 = vadd.f32 %v163, %v1126
    %v1128 = vpop.f32.mrb[0].mxu0
    %1129 = vmatprep.mubr.f32.mxu0 0.0
    %1130 = vmatmul.mubr.f32.gmra.mrb[0].mxu0 %v476
    %v1131 = vpop.f32.mrb[0].mxu0
    %v1132 = vadd.f32 %v163, %v1131
    %v1133 = vpop.f32.mrb[0].mxu0
    %1134 = vmatprep.mubr.f32.mxu0 0.0
    %1135 = vmatmul.mubr.f32.gmra.mrb[0].mxu0 %v479
    %v1136 = vpop.f32.mrb[0].mxu0
    %v1137 = vadd.f32 %v163, %v1136
    %v1138 = vpop.f32.mrb[0].mxu0
    %1139 = vmatprep.mubr.f32.mxu0 0.0
    %1140 = vmatmul.mubr.f32.gmra.mrb[0].mxu0 %v482
    %v1141 = vpop.f32.mrb[0].mxu0
    %v1142 = vadd.f32 %v163, %v1141
    %v1143 = vpop.f32.mrb[0].mxu0
    %1144 = vmatprep.mubr.f32.mxu0 0.0
    %1145 = vmatmul.mubr.f32.gmra.mrb[0].mxu0 %v485
    %v1146 = vpop.f32.mrb[0].mxu0
    %v1147 = vadd.f32 %v163, %v1146
    %v1148 = vpop.f32.mrb[0].mxu0
    %1149 = vmatprep.mubr.f32.mxu0 0.0
    %1150 = vmatmul.mubr.f32.gmra.mrb[0].mxu0 %v488
    %v1151 = vpop.f32.mrb[0].mxu0
    %v1152 = vadd.f32 %v163, %v1151
    %v1153 = vpop.f32.mrb[0].mxu0
    %1154 = vmatprep.mubr.f32.mxu0 0.0
    %1155 = vmatmul.mubr.f32.gmra.mrb[0].mxu0 %v491
    %v1156 = vpop.f32.mrb[0].mxu0
    %v1157 = vadd.f32 %v163, %v1156
    %v1158 = vpop.f32.mrb[0].mxu0
    %1159 = vmatprep.mubr.f32.mxu0 0.0
    %1160 = vmatmul.mubr.f32.gmra.mrb[0].mxu0 %v494
    %v1161 = vpop.f32.mrb[0].mxu0
    %v1162 = vadd.f32 %v163, %v1161
    %v1163 = vpop.f32.mrb[0].mxu0
    %1164 = vmatprep.mubr.f32.mxu0 0.0
    %1165 = vmatmul.mubr.f32.gmra.mrb[0].mxu0 %v497
    %v1166 = vpop.f32.mrb[0].mxu0
    %v1167 = vadd.f32 %v163, %v1166
    %v1168 = vpop.f32.mrb[0].mxu0
    %1169 = vmatprep.mubr.f32.mxu0 0.0
    %1170 = vmatmul.mubr.f32.gmra.mrb[0].mxu0 %v500
    %v1171 = vpop.f32.mrb[0].mxu0
    %v1172 = vadd.f32 %v163, %v1171
    %v1173 = vpop.f32.mrb[0].mxu0
    %1174 = vmatprep.mubr.f32.mxu0 0.0
    %1175 = vmatmul.mubr.f32.gmra.mrb[0].mxu0 %v503
    %v1176 = vpop.f32.mrb[0].mxu0
    %v1177 = vadd.f32 %v163, %v1176
    %v1178 = vpop.f32.mrb[0].mxu0
    %1179 = vmatprep.mubr.f32.mxu0 0.0
    %1180 = vmatmul.mubr.f32.gmra.mrb[0].mxu0 %v506
    %v1181 = vpop.f32.mrb[0].mxu0
    %v1182 = vadd.f32 %v163, %v1181
    %v1183 = vpop.f32.mrb[0].mxu0
    %1184 = vmatprep.mubr.f32.mxu0 0.0
    %1185 = vmatmul.mubr.f32.gmra.mrb[0].mxu0 %v509
    %v1186 = vpop.f32.mrb[0].mxu0
    %v1187 = vadd.f32 %v163, %v1186
    %v1188 = vpop.f32.mrb[0].mxu0
    %1189 = vmatprep.mubr.f32.mxu0 0.0
    %1190 = vmatmul.mubr.f32.gmra.mrb[0].mxu0 %v512
    %v1191 = vpop.f32.mrb[0].mxu0
    %v1192 = vadd.f32 %v163, %v1191
    %v1193 = vpop.f32.mrb[0].mxu0
    %1194 = vmatprep.mubr.f32.mxu0 0.0
    %1195 = vmatmul.mubr.f32.gmra.mrb[0].mxu0 %v515
    %v1196 = vpop.f32.mrb[0].mxu0
    %v1197 = vadd.f32 %v163, %v1196
    %v1198 = vpop.f32.mrb[0].mxu0
    %1199 = vmatprep.mubr.f32.mxu0 0.0
    %1200 = vmatmul.mubr.f32.gmra.mrb[0].mxu0 %v518
    %v1201 = vpop.f32.mrb[0].mxu0
    %v1202 = vadd.f32 %v163, %v1201
    %v1203 = vpop.f32.mrb[0].mxu0
    %1204 = vmatprep.mubr.f32.mxu0 0.0
    %1205 = vmatmul.mubr.f32.gmra.mrb[0].mxu0 %v521
    %v1206 = vpop.f32.mrb[0].mxu0
    %v1207 = vadd.f32 %v163, %v1206
    %v1208 = vpop.f32.mrb[0].mxu0
    %1209 = vmatprep.mubr.f32.mxu0 0.0
    %1210 = vmatmul.mubr.f32.gmra.mrb[0].mxu0 %v524
    %v1211 = vpop.f32.mrb[0].mxu0
    %v1212 = vadd.f32 %v163, %v1211
    %v1213 = vpop.f32.mrb[0].mxu0
    %1214 = vmatprep.mubr.f32.mxu0 0.0
    %1215 = vmatmul.mubr.f32.gmra.mrb[0].mxu0 %v527
    %v1216 = vpop.f32.mrb[0].mxu0
    %v1217 = vadd.f32 %v163, %v1216
    %v1218 = vpop.f32.mrb[0].mxu0
    %1219 = vmatprep.mubr.f32.mxu0 0.0
    %1220 = vmatmul.mubr.f32.gmra.mrb[0].mxu0 %v530
    %v1221 = vpop.f32.mrb[0].mxu0
    %v1222 = vadd.f32 %v163, %v1221
    %v1223 = vpop.f32.mrb[0].mxu0
    %1224 = vmatprep.mubr.f32.mxu0 0.0
    %1225 = vmatmul.mubr.f32.gmra.mrb[0].mxu0 %v533
    %v1226 = vpop.f32.mrb[0].mxu0
    %v1227 = vadd.f32 %v163, %v1226
    %v1228 = vpop.f32.mrb[0].mxu0
    %1229 = vmatprep.mubr.f32.mxu0 0.0
    %1230 = vmatmul.mubr.f32.gmra.mrb[0].mxu0 %v536
    %v1231 = vpop.f32.mrb[0].mxu0
    %v1232 = vadd.f32 %v163, %v1231
    %v1233 = vpop.f32.mrb[0].mxu0
    %1234 = vmatprep.mubr.f32.mxu0 0.0
    %1235 = vmatmul.mubr.f32.gmra.mrb[0].mxu0 %v539
    %v1236 = vpop.f32.mrb[0].mxu0
    %v1237 = vadd.f32 %v163, %v1236
    %v1238 = vpop.f32.mrb[0].mxu0
    %1239 = vmatprep.mubr.f32.mxu0 0.0
    %1240 = vmatmul.mubr.f32.gmra.mrb[0].mxu0 %v542
    %v1241 = vpop.f32.mrb[0].mxu0
    %v1242 = vadd.f32 %v163, %v1241
    %v1243 = vpop.f32.mrb[0].mxu0
    %1244 = vmatprep.mubr.f32.mxu0 0.0
    %1245 = vmatmul.mubr.f32.gmra.mrb[0].mxu0 %v545
    %v1246 = vpop.f32.mrb[0].mxu0
    %v1247 = vadd.f32 %v163, %v1246
    %v1248 = vpop.f32.mrb[0].mxu0
    %1249 = vmatprep.mubr.f32.mxu0 0.0
    %1250 = vmatmul.mubr.f32.gmra.mrb[0].mxu0 %v548
    %v1251 = vpop.f32.mrb[0].mxu0
    %v1252 = vadd.f32 %v163, %v1251
    %v1253 = vpop.f32.mrb[0].mxu0
    %1254 = vdwg.mxu0
    %v1255 = vmax.f32 %v617, 0.0
    %v1256 = vmax.f32 %v622, 0.0
    %v1257 = vmax.f32 %v627, 0.0
    %v1258 = vmax.f32 %v632, 0.0
    %v1259 = vmax.f32 %v637, 0.0
    %v1260 = vmax.f32 %v642, 0.0
    %v1261 = vmax.f32 %v647, 0.0
    %v1262 = vmax.f32 %v652, 0.0
    %v1263 = vmax.f32 %v657, 0.0
    %v1264 = vmax.f32 %v662, 0.0
    %v1265 = vmax.f32 %v667, 0.0
    %v1266 = vmax.f32 %v672, 0.0
    %v1267 = vmax.f32 %v677, 0.0
    %v1268 = vmax.f32 %v682, 0.0
    %v1269 = vmax.f32 %v687, 0.0
    %v1270 = vmax.f32 %v692, 0.0
    %v1271 = vmax.f32 %v697, 0.0
    %v1272 = vmax.f32 %v702, 0.0
    %v1273 = vmax.f32 %v707, 0.0
    %v1274 = vmax.f32 %v712, 0.0
    %v1275 = vmax.f32 %v717, 0.0
    %v1276 = vmax.f32 %v722, 0.0
    %v1277 = vmax.f32 %v727, 0.0
    %v1278 = vmax.f32 %v732, 0.0
    %v1279 = vmax.f32 %v737, 0.0
    %v1280 = vmax.f32 %v742, 0.0
    %v1281 = vmax.f32 %v747, 0.0
    %v1282 = vmax.f32 %v752, 0.0
    %v1283 = vmax.f32 %v757, 0.0
    %v1284 = vmax.f32 %v762, 0.0
    %v1285 = vmax.f32 %v767, 0.0
    %v1286 = vmax.f32 %v772, 0.0
    %v1287 = vmax.f32 %v777, 0.0
    %v1288 = vmax.f32 %v782, 0.0
    %v1289 = vmax.f32 %v787, 0.0
    %v1290 = vmax.f32 %v792, 0.0
    %v1291 = vmax.f32 %v797, 0.0
    %v1292 = vmax.f32 %v802, 0.0
    %v1293 = vmax.f32 %v807, 0.0
    %v1294 = vmax.f32 %v812, 0.0
    %v1295 = vmax.f32 %v817, 0.0
    %v1296 = vmax.f32 %v822, 0.0
    %v1297 = vmax.f32 %v827, 0.0
    %v1298 = vmax.f32 %v832, 0.0
    %v1299 = vmax.f32 %v837, 0.0
    %v1300 = vmax.f32 %v842, 0.0
    %v1301 = vmax.f32 %v847, 0.0
    %v1302 = vmax.f32 %v852, 0.0
    %v1303 = vmax.f32 %v857, 0.0
    %v1304 = vmax.f32 %v862, 0.0
    %v1305 = vmax.f32 %v867, 0.0
    %v1306 = vmax.f32 %v872, 0.0
    %v1307 = vmax.f32 %v877, 0.0
    %v1308 = vmax.f32 %v882, 0.0
    %v1309 = vmax.f32 %v887, 0.0
    %v1310 = vmax.f32 %v892, 0.0
    %v1311 = vmax.f32 %v897, 0.0
    %v1312 = vmax.f32 %v902, 0.0
    %v1313 = vmax.f32 %v907, 0.0
    %v1314 = vmax.f32 %v912, 0.0
    %v1315 = vmax.f32 %v917, 0.0
    %v1316 = vmax.f32 %v922, 0.0
    %v1317 = vmax.f32 %v927, 0.0
    %v1318 = vmax.f32 %v932, 0.0
    %v1319 = vmax.f32 %v937, 0.0
    %v1320 = vmax.f32 %v942, 0.0
    %v1321 = vmax.f32 %v947, 0.0
    %v1322 = vmax.f32 %v952, 0.0
    %v1323 = vmax.f32 %v957, 0.0
    %v1324 = vmax.f32 %v962, 0.0
    %v1325 = vmax.f32 %v967, 0.0
    %v1326 = vmax.f32 %v972, 0.0
    %v1327 = vmax.f32 %v977, 0.0
    %v1328 = vmax.f32 %v982, 0.0
    %v1329 = vmax.f32 %v987, 0.0
    %v1330 = vmax.f32 %v992, 0.0
    %v1331 = vmax.f32 %v997, 0.0
    %v1332 = vmax.f32 %v1002, 0.0
    %v1333 = vmax.f32 %v1007, 0.0
    %v1334 = vmax.f32 %v1012, 0.0
    %v1335 = vmax.f32 %v1017, 0.0
    %v1336 = vmax.f32 %v1022, 0.0
    %v1337 = vmax.f32 %v1027, 0.0
    %v1338 = vmax.f32 %v1032, 0.0
    %v1339 = vmax.f32 %v1037, 0.0
    %v1340 = vmax.f32 %v1042, 0.0
    %v1341 = vmax.f32 %v1047, 0.0
    %v1342 = vmax.f32 %v1052, 0.0
    %v1343 = vmax.f32 %v1057, 0.0
    %v1344 = vmax.f32 %v1062, 0.0
    %v1345 = vmax.f32 %v1067, 0.0
    %v1346 = vmax.f32 %v1072, 0.0
    %v1347 = vmax.f32 %v1077, 0.0
    %v1348 = vmax.f32 %v1082, 0.0
    %v1349 = vmax.f32 %v1087, 0.0
    %v1350 = vmax.f32 %v1092, 0.0
    %v1351 = vmax.f32 %v1097, 0.0
    %v1352 = vmax.f32 %v1102, 0.0
    %v1353 = vmax.f32 %v1107, 0.0
    %v1354 = vmax.f32 %v1112, 0.0
    %v1355 = vmax.f32 %v1117, 0.0
    %v1356 = vmax.f32 %v1122, 0.0
    %v1357 = vmax.f32 %v1127, 0.0
    %v1358 = vmax.f32 %v1132, 0.0
    %v1359 = vmax.f32 %v1137, 0.0
    %v1360 = vmax.f32 %v1142, 0.0
    %v1361 = vmax.f32 %v1147, 0.0
    %v1362 = vmax.f32 %v1152, 0.0
    %v1363 = vmax.f32 %v1157, 0.0
    %v1364 = vmax.f32 %v1162, 0.0
    %v1365 = vmax.f32 %v1167, 0.0
    %v1366 = vmax.f32 %v1172, 0.0
    %v1367 = vmax.f32 %v1177, 0.0
    %v1368 = vmax.f32 %v1182, 0.0
    %v1369 = vmax.f32 %v1187, 0.0
    %v1370 = vmax.f32 %v1192, 0.0
    %v1371 = vmax.f32 %v1197, 0.0
    %v1372 = vmax.f32 %v1202, 0.0
    %v1373 = vmax.f32 %v1207, 0.0
    %v1374 = vmax.f32 %v1212, 0.0
    %v1375 = vmax.f32 %v1217, 0.0
    %v1376 = vmax.f32 %v1222, 0.0
    %v1377 = vmax.f32 %v1227, 0.0
    %v1378 = vmax.f32 %v1232, 0.0
    %v1379 = vmax.f32 %v1237, 0.0
    %v1380 = vmax.f32 %v1242, 0.0
    %v1381 = vmax.f32 %v1247, 0.0
    %v1382 = vmax.f32 %v1252, 0.0
    %v1383 = vld [vmem:[%s3] sm:$0xff]
    %v1384 = vld [vmem:[%s3 + $0x8] sm:$0xff]
    %v1385 = vld [vmem:[%s3 + $0x10] sm:$0xff]
    %v1386 = vld [vmem:[%s3 + $0x18] sm:$0xff]
    %v1387 = vld [vmem:[%s4] sm:$0x1]
    %v1389 = vlaneseq
    %v1390 = vshrl.u32 %v1389, 7
    %v1391 = vsub.s32 0, %v1390
    %v1392 = vrot.slane %v1387, %v1391
    %vm1394 = vcmask 261120
    %v1396 = vsel %vm1394, %v1255, 0
    %v1399 = vsel %vm1394, %v1256, 0
    %v1402 = vsel %vm1394, %v1257, 0
    %v1405 = vsel %vm1394, %v1258, 0
    %v1408 = vsel %vm1394, %v1259, 0
    %v1411 = vsel %vm1394, %v1260, 0
    %v1414 = vsel %vm1394, %v1261, 0
    %v1417 = vsel %vm1394, %v1262, 0
    %v1420 = vsel %vm1394, %v1263, 0
    %v1423 = vsel %vm1394, %v1264, 0
    %v1426 = vsel %vm1394, %v1265, 0
    %v1429 = vsel %vm1394, %v1266, 0
    %v1432 = vsel %vm1394, %v1267, 0
    %v1435 = vsel %vm1394, %v1268, 0
    %v1438 = vsel %vm1394, %v1269, 0
    %v1441 = vsel %vm1394, %v1270, 0
    %v1444 = vsel %vm1394, %v1271, 0
    %v1447 = vsel %vm1394, %v1272, 0
    %v1450 = vsel %vm1394, %v1273, 0
    %v1453 = vsel %vm1394, %v1274, 0
    %v1456 = vsel %vm1394, %v1275, 0
    %v1459 = vsel %vm1394, %v1276, 0
    %v1462 = vsel %vm1394, %v1277, 0
    %v1465 = vsel %vm1394, %v1278, 0
    %v1468 = vsel %vm1394, %v1279, 0
    %v1471 = vsel %vm1394, %v1280, 0
    %v1474 = vsel %vm1394, %v1281, 0
    %v1477 = vsel %vm1394, %v1282, 0
    %v1480 = vsel %vm1394, %v1283, 0
    %v1483 = vsel %vm1394, %v1284, 0
    %v1486 = vsel %vm1394, %v1285, 0
    %v1489 = vsel %vm1394, %v1286, 0
    %v1492 = vsel %vm1394, %v1287, 0
    %v1495 = vsel %vm1394, %v1288, 0
    %v1498 = vsel %vm1394, %v1289, 0
    %v1501 = vsel %vm1394, %v1290, 0
    %v1504 = vsel %vm1394, %v1291, 0
    %v1507 = vsel %vm1394, %v1292, 0
    %v1510 = vsel %vm1394, %v1293, 0
    %v1513 = vsel %vm1394, %v1294, 0
    %v1516 = vsel %vm1394, %v1295, 0
    %v1519 = vsel %vm1394, %v1296, 0
    %v1522 = vsel %vm1394, %v1297, 0
    %v1525 = vsel %vm1394, %v1298, 0
    %v1528 = vsel %vm1394, %v1299, 0
    %v1531 = vsel %vm1394, %v1300, 0
    %v1534 = vsel %vm1394, %v1301, 0
    %v1537 = vsel %vm1394, %v1302, 0
    %v1540 = vsel %vm1394, %v1303, 0
    %v1543 = vsel %vm1394, %v1304, 0
    %v1546 = vsel %vm1394, %v1305, 0
    %v1549 = vsel %vm1394, %v1306, 0
    %v1552 = vsel %vm1394, %v1307, 0
    %v1555 = vsel %vm1394, %v1308, 0
    %v1558 = vsel %vm1394, %v1309, 0
    %v1561 = vsel %vm1394, %v1310, 0
    %v1564 = vsel %vm1394, %v1311, 0
    %v1567 = vsel %vm1394, %v1312, 0
    %v1570 = vsel %vm1394, %v1313, 0
    %v1573 = vsel %vm1394, %v1314, 0
    %v1576 = vsel %vm1394, %v1315, 0
    %v1579 = vsel %vm1394, %v1316, 0
    %v1582 = vsel %vm1394, %v1317, 0
    %v1585 = vsel %vm1394, %v1318, 0
    %v1588 = vsel %vm1394, %v1319, 0
    %v1591 = vsel %vm1394, %v1320, 0
    %v1594 = vsel %vm1394, %v1321, 0
    %v1597 = vsel %vm1394, %v1322, 0
    %v1600 = vsel %vm1394, %v1323, 0
    %v1603 = vsel %vm1394, %v1324, 0
    %v1606 = vsel %vm1394, %v1325, 0
    %v1609 = vsel %vm1394, %v1326, 0
    %v1612 = vsel %vm1394, %v1327, 0
    %v1615 = vsel %vm1394, %v1328, 0
    %v1618 = vsel %vm1394, %v1329, 0
    %v1621 = vsel %vm1394, %v1330, 0
    %v1624 = vsel %vm1394, %v1331, 0
    %v1627 = vsel %vm1394, %v1332, 0
    %v1630 = vsel %vm1394, %v1333, 0
    %v1633 = vsel %vm1394, %v1334, 0
    %v1636 = vsel %vm1394, %v1335, 0
    %v1639 = vsel %vm1394, %v1336, 0
    %v1642 = vsel %vm1394, %v1337, 0
    %v1645 = vsel %vm1394, %v1338, 0
    %v1648 = vsel %vm1394, %v1339, 0
    %v1651 = vsel %vm1394, %v1340, 0
    %v1654 = vsel %vm1394, %v1341, 0
    %v1657 = vsel %vm1394, %v1342, 0
    %v1660 = vsel %vm1394, %v1343, 0
    %v1663 = vsel %vm1394, %v1344, 0
    %v1666 = vsel %vm1394, %v1345, 0
    %v1669 = vsel %vm1394, %v1346, 0
    %v1672 = vsel %vm1394, %v1347, 0
    %v1675 = vsel %vm1394, %v1348, 0
    %v1678 = vsel %vm1394, %v1349, 0
    %v1681 = vsel %vm1394, %v1350, 0
    %v1684 = vsel %vm1394, %v1351, 0
    %v1687 = vsel %vm1394, %v1352, 0
    %v1690 = vsel %vm1394, %v1353, 0
    %v1693 = vsel %vm1394, %v1354, 0
    %v1696 = vsel %vm1394, %v1355, 0
    %v1699 = vsel %vm1394, %v1356, 0
    %v1702 = vsel %vm1394, %v1357, 0
    %v1705 = vsel %vm1394, %v1358, 0
    %v1708 = vsel %vm1394, %v1359, 0
    %v1711 = vsel %vm1394, %v1360, 0
    %v1714 = vsel %vm1394, %v1361, 0
    %v1717 = vsel %vm1394, %v1362, 0
    %v1720 = vsel %vm1394, %v1363, 0
    %v1723 = vsel %vm1394, %v1364, 0
    %v1726 = vsel %vm1394, %v1365, 0
    %v1729 = vsel %vm1394, %v1366, 0
    %v1732 = vsel %vm1394, %v1367, 0
    %v1735 = vsel %vm1394, %v1368, 0
    %v1738 = vsel %vm1394, %v1369, 0
    %v1741 = vsel %vm1394, %v1370, 0
    %v1744 = vsel %vm1394, %v1371, 0
    %v1747 = vsel %vm1394, %v1372, 0
    %v1750 = vsel %vm1394, %v1373, 0
    %v1753 = vsel %vm1394, %v1374, 0
    %v1756 = vsel %vm1394, %v1375, 0
    %v1759 = vsel %vm1394, %v1376, 0
    %v1762 = vsel %vm1394, %v1377, 0
    %v1765 = vsel %vm1394, %v1378, 0
    %v1768 = vsel %vm1394, %v1379, 0
    %v1771 = vsel %vm1394, %v1380, 0
    %v1774 = vsel %vm1394, %v1381, 0
    %v1777 = vsel %vm1394, %v1382, 0
    %1779 = vmatprep.subr.mxu0 0.0
    %1780 = vmatpush1.msra.mxu0 %v1383
    %1781 = vmatprep.subr.mxu0 0.0
    %1782 = vmatpush1.msra.mxu0 %v1384
    %1783 = vmatprep.subr.mxu0 0.0
    %1784 = vmatpush1.msra.mxu0 %v1385
    %1785 = vmatprep.subr.mxu0 0.0
    %1786 = vmatpush1.msra.mxu0 %v1386
    %1787 = vmatprep.subr.mxu0 0.0
    %1788 = vmatpush1.msra.mxu0 0.0
    %1789 = vmatprep.subr.mxu0 0.0
    %1790 = vmatpush1.msra.mxu0 0.0
    %1791 = vmatprep.subr.mxu0 0.0
    %1792 = vmatpush1.msra.mxu0 0.0
    %1793 = vmatprep.subr.mxu0 0.0
    %1794 = vmatpush1.msra.mxu0 0.0
    %1795 = vmatprep.subr.mxu0 0.0
    %1796 = vmatpush1.msra.mxu0 0.0
    %1797 = vmatprep.subr.mxu0 0.0
    %1798 = vmatpush1.msra.mxu0 0.0
    %1799 = vmatprep.subr.mxu0 0.0
    %1800 = vmatpush1.msra.mxu0 0.0
    %1801 = vmatprep.subr.mxu0 0.0
    %1802 = vmatpush1.msra.mxu0 0.0
    %1803 = vmatprep.subr.mxu0 0.0
    %1804 = vmatpush1.msra.mxu0 0.0
    %1805 = vmatprep.subr.mxu0 0.0
    %1806 = vmatpush1.msra.mxu0 0.0
    %1807 = vmatprep.subr.mxu0 0.0
    %1808 = vmatpush1.msra.mxu0 0.0
    %1809 = vmatprep.subr.mxu0 0.0
    %1810 = vmatpush1.msra.mxu0 0.0
    %1811 = vmatprep.subr.mxu0 0.0
    %1812 = vmatpush1.msra.mxu0 0.0
    %1813 = vmatprep.subr.mxu0 0.0
    %1814 = vmatpush1.msra.mxu0 0.0
    %1815 = vmatprep.subr.mxu0 0.0
    %1816 = vmatpush1.msra.mxu0 0.0
    %1817 = vmatprep.subr.mxu0 0.0
    %1818 = vmatpush1.msra.mxu0 0.0
    %1819 = vmatprep.subr.mxu0 0.0
    %1820 = vmatpush1.msra.mxu0 0.0
    %1821 = vmatprep.subr.mxu0 0.0
    %1822 = vmatpush1.msra.mxu0 0.0
    %1823 = vmatprep.subr.mxu0 0.0
    %1824 = vmatpush1.msra.mxu0 0.0
    %1825 = vmatprep.subr.mxu0 0.0
    %1826 = vmatpush1.msra.mxu0 0.0
    %1827 = vmatprep.subr.mxu0 0.0
    %1828 = vmatpush1.msra.mxu0 0.0
    %1829 = vmatprep.subr.mxu0 0.0
    %1830 = vmatpush1.msra.mxu0 0.0
    %1831 = vmatprep.subr.mxu0 0.0
    %1832 = vmatpush1.msra.mxu0 0.0
    %1833 = vmatprep.subr.mxu0 0.0
    %1834 = vmatpush1.msra.mxu0 0.0
    %1835 = vmatprep.subr.mxu0 0.0
    %1836 = vmatpush1.msra.mxu0 0.0
    %1837 = vmatprep.subr.mxu0 0.0
    %1838 = vmatpush1.msra.mxu0 0.0
    %1839 = vmatprep.subr.mxu0 0.0
    %1840 = vmatpush1.msra.mxu0 0.0
    %1841 = vmatprep.subr.mxu0 0.0
    %1842 = vmatpush1.msra.mxu0 0.0
    %1843 = vmatprep.mubr.f32.mxu0 0.0
    %1844 = vmatmul.mubr.f32.gmra.mrb[0].mxu0 %v1396
    %v1845 = vpop.f32.mrb[0].mxu0
    %v1846 = vadd.f32 %v1392, %v1845
    %v1847 = vpop.f32.mrb[0].mxu0
    %1848 = vmatprep.mubr.f32.mxu0 0.0
    %1849 = vmatmul.mubr.f32.gmra.mrb[0].mxu0 %v1399
    %v1850 = vpop.f32.mrb[0].mxu0
    %v1851 = vadd.f32 %v1392, %v1850
    %v1852 = vpop.f32.mrb[0].mxu0
    %1853 = vmatprep.mubr.f32.mxu0 0.0
    %1854 = vmatmul.mubr.f32.gmra.mrb[0].mxu0 %v1402
    %v1855 = vpop.f32.mrb[0].mxu0
    %v1856 = vadd.f32 %v1392, %v1855
    %v1857 = vpop.f32.mrb[0].mxu0
    %1858 = vmatprep.mubr.f32.mxu0 0.0
    %1859 = vmatmul.mubr.f32.gmra.mrb[0].mxu0 %v1405
    %v1860 = vpop.f32.mrb[0].mxu0
    %v1861 = vadd.f32 %v1392, %v1860
    %v1862 = vpop.f32.mrb[0].mxu0
    %1863 = vmatprep.mubr.f32.mxu0 0.0
    %1864 = vmatmul.mubr.f32.gmra.mrb[0].mxu0 %v1408
    %v1865 = vpop.f32.mrb[0].mxu0
    %v1866 = vadd.f32 %v1392, %v1865
    %v1867 = vpop.f32.mrb[0].mxu0
    %1868 = vmatprep.mubr.f32.mxu0 0.0
    %1869 = vmatmul.mubr.f32.gmra.mrb[0].mxu0 %v1411
    %v1870 = vpop.f32.mrb[0].mxu0
    %v1871 = vadd.f32 %v1392, %v1870
    %v1872 = vpop.f32.mrb[0].mxu0
    %1873 = vmatprep.mubr.f32.mxu0 0.0
    %1874 = vmatmul.mubr.f32.gmra.mrb[0].mxu0 %v1414
    %v1875 = vpop.f32.mrb[0].mxu0
    %v1876 = vadd.f32 %v1392, %v1875
    %v1877 = vpop.f32.mrb[0].mxu0
    %1878 = vmatprep.mubr.f32.mxu0 0.0
    %1879 = vmatmul.mubr.f32.gmra.mrb[0].mxu0 %v1417
    %v1880 = vpop.f32.mrb[0].mxu0
    %v1881 = vadd.f32 %v1392, %v1880
    %v1882 = vpop.f32.mrb[0].mxu0
    %1883 = vmatprep.mubr.f32.mxu0 0.0
    %1884 = vmatmul.mubr.f32.gmra.mrb[0].mxu0 %v1420
    %v1885 = vpop.f32.mrb[0].mxu0
    %v1886 = vadd.f32 %v1392, %v1885
    %v1887 = vpop.f32.mrb[0].mxu0
    %1888 = vmatprep.mubr.f32.mxu0 0.0
    %1889 = vmatmul.mubr.f32.gmra.mrb[0].mxu0 %v1423
    %v1890 = vpop.f32.mrb[0].mxu0
    %v1891 = vadd.f32 %v1392, %v1890
    %v1892 = vpop.f32.mrb[0].mxu0
    %1893 = vmatprep.mubr.f32.mxu0 0.0
    %1894 = vmatmul.mubr.f32.gmra.mrb[0].mxu0 %v1426
    %v1895 = vpop.f32.mrb[0].mxu0
    %v1896 = vadd.f32 %v1392, %v1895
    %v1897 = vpop.f32.mrb[0].mxu0
    %1898 = vmatprep.mubr.f32.mxu0 0.0
    %1899 = vmatmul.mubr.f32.gmra.mrb[0].mxu0 %v1429
    %v1900 = vpop.f32.mrb[0].mxu0
    %v1901 = vadd.f32 %v1392, %v1900
    %v1902 = vpop.f32.mrb[0].mxu0
    %1903 = vmatprep.mubr.f32.mxu0 0.0
    %1904 = vmatmul.mubr.f32.gmra.mrb[0].mxu0 %v1432
    %v1905 = vpop.f32.mrb[0].mxu0
    %v1906 = vadd.f32 %v1392, %v1905
    %v1907 = vpop.f32.mrb[0].mxu0
    %1908 = vmatprep.mubr.f32.mxu0 0.0
    %1909 = vmatmul.mubr.f32.gmra.mrb[0].mxu0 %v1435
    %v1910 = vpop.f32.mrb[0].mxu0
    %v1911 = vadd.f32 %v1392, %v1910
    %v1912 = vpop.f32.mrb[0].mxu0
    %1913 = vmatprep.mubr.f32.mxu0 0.0
    %1914 = vmatmul.mubr.f32.gmra.mrb[0].mxu0 %v1438
    %v1915 = vpop.f32.mrb[0].mxu0
    %v1916 = vadd.f32 %v1392, %v1915
    %v1917 = vpop.f32.mrb[0].mxu0
    %1918 = vmatprep.mubr.f32.mxu0 0.0
    %1919 = vmatmul.mubr.f32.gmra.mrb[0].mxu0 %v1441
    %v1920 = vpop.f32.mrb[0].mxu0
    %v1921 = vadd.f32 %v1392, %v1920
    %v1922 = vpop.f32.mrb[0].mxu0
    %1923 = vmatprep.mubr.f32.mxu0 0.0
    %1924 = vmatmul.mubr.f32.gmra.mrb[0].mxu0 %v1444
    %v1925 = vpop.f32.mrb[0].mxu0
    %v1926 = vadd.f32 %v1392, %v1925
    %v1927 = vpop.f32.mrb[0].mxu0
    %1928 = vmatprep.mubr.f32.mxu0 0.0
    %1929 = vmatmul.mubr.f32.gmra.mrb[0].mxu0 %v1447
    %v1930 = vpop.f32.mrb[0].mxu0
    %v1931 = vadd.f32 %v1392, %v1930
    %v1932 = vpop.f32.mrb[0].mxu0
    %1933 = vmatprep.mubr.f32.mxu0 0.0
    %1934 = vmatmul.mubr.f32.gmra.mrb[0].mxu0 %v1450
    %v1935 = vpop.f32.mrb[0].mxu0
    %v1936 = vadd.f32 %v1392, %v1935
    %v1937 = vpop.f32.mrb[0].mxu0
    %1938 = vmatprep.mubr.f32.mxu0 0.0
    %1939 = vmatmul.mubr.f32.gmra.mrb[0].mxu0 %v1453
    %v1940 = vpop.f32.mrb[0].mxu0
    %v1941 = vadd.f32 %v1392, %v1940
    %v1942 = vpop.f32.mrb[0].mxu0
    %1943 = vmatprep.mubr.f32.mxu0 0.0
    %1944 = vmatmul.mubr.f32.gmra.mrb[0].mxu0 %v1456
    %v1945 = vpop.f32.mrb[0].mxu0
    %v1946 = vadd.f32 %v1392, %v1945
    %v1947 = vpop.f32.mrb[0].mxu0
    %1948 = vmatprep.mubr.f32.mxu0 0.0
    %1949 = vmatmul.mubr.f32.gmra.mrb[0].mxu0 %v1459
    %v1950 = vpop.f32.mrb[0].mxu0
    %v1951 = vadd.f32 %v1392, %v1950
    %v1952 = vpop.f32.mrb[0].mxu0
    %1953 = vmatprep.mubr.f32.mxu0 0.0
    %1954 = vmatmul.mubr.f32.gmra.mrb[0].mxu0 %v1462
    %v1955 = vpop.f32.mrb[0].mxu0
    %v1956 = vadd.f32 %v1392, %v1955
    %v1957 = vpop.f32.mrb[0].mxu0
    %1958 = vmatprep.mubr.f32.mxu0 0.0
    %1959 = vmatmul.mubr.f32.gmra.mrb[0].mxu0 %v1465
    %v1960 = vpop.f32.mrb[0].mxu0
    %v1961 = vadd.f32 %v1392, %v1960
    %v1962 = vpop.f32.mrb[0].mxu0
    %1963 = vmatprep.mubr.f32.mxu0 0.0
    %1964 = vmatmul.mubr.f32.gmra.mrb[0].mxu0 %v1468
    %v1965 = vpop.f32.mrb[0].mxu0
    %v1966 = vadd.f32 %v1392, %v1965
    %v1967 = vpop.f32.mrb[0].mxu0
    %1968 = vmatprep.mubr.f32.mxu0 0.0
    %1969 = vmatmul.mubr.f32.gmra.mrb[0].mxu0 %v1471
    %v1970 = vpop.f32.mrb[0].mxu0
    %v1971 = vadd.f32 %v1392, %v1970
    %v1972 = vpop.f32.mrb[0].mxu0
    %1973 = vmatprep.mubr.f32.mxu0 0.0
    %1974 = vmatmul.mubr.f32.gmra.mrb[0].mxu0 %v1474
    %v1975 = vpop.f32.mrb[0].mxu0
    %v1976 = vadd.f32 %v1392, %v1975
    %v1977 = vpop.f32.mrb[0].mxu0
    %1978 = vmatprep.mubr.f32.mxu0 0.0
    %1979 = vmatmul.mubr.f32.gmra.mrb[0].mxu0 %v1477
    %v1980 = vpop.f32.mrb[0].mxu0
    %v1981 = vadd.f32 %v1392, %v1980
    %v1982 = vpop.f32.mrb[0].mxu0
    %1983 = vmatprep.mubr.f32.mxu0 0.0
    %1984 = vmatmul.mubr.f32.gmra.mrb[0].mxu0 %v1480
    %v1985 = vpop.f32.mrb[0].mxu0
    %v1986 = vadd.f32 %v1392, %v1985
    %v1987 = vpop.f32.mrb[0].mxu0
    %1988 = vmatprep.mubr.f32.mxu0 0.0
    %1989 = vmatmul.mubr.f32.gmra.mrb[0].mxu0 %v1483
    %v1990 = vpop.f32.mrb[0].mxu0
    %v1991 = vadd.f32 %v1392, %v1990
    %v1992 = vpop.f32.mrb[0].mxu0
    %1993 = vmatprep.mubr.f32.mxu0 0.0
    %1994 = vmatmul.mubr.f32.gmra.mrb[0].mxu0 %v1486
    %v1995 = vpop.f32.mrb[0].mxu0
    %v1996 = vadd.f32 %v1392, %v1995
    %v1997 = vpop.f32.mrb[0].mxu0
    %1998 = vmatprep.mubr.f32.mxu0 0.0
    %1999 = vmatmul.mubr.f32.gmra.mrb[0].mxu0 %v1489
    %v2000 = vpop.f32.mrb[0].mxu0
    %v2001 = vadd.f32 %v1392, %v2000
    %v2002 = vpop.f32.mrb[0].mxu0
    %2003 = vmatprep.mubr.f32.mxu0 0.0
    %2004 = vmatmul.mubr.f32.gmra.mrb[0].mxu0 %v1492
    %v2005 = vpop.f32.mrb[0].mxu0
    %v2006 = vadd.f32 %v1392, %v2005
    %v2007 = vpop.f32.mrb[0].mxu0
    %2008 = vmatprep.mubr.f32.mxu0 0.0
    %2009 = vmatmul.mubr.f32.gmra.mrb[0].mxu0 %v1495
    %v2010 = vpop.f32.mrb[0].mxu0
    %v2011 = vadd.f32 %v1392, %v2010
    %v2012 = vpop.f32.mrb[0].mxu0
    %2013 = vmatprep.mubr.f32.mxu0 0.0
    %2014 = vmatmul.mubr.f32.gmra.mrb[0].mxu0 %v1498
    %v2015 = vpop.f32.mrb[0].mxu0
    %v2016 = vadd.f32 %v1392, %v2015
    %v2017 = vpop.f32.mrb[0].mxu0
    %2018 = vmatprep.mubr.f32.mxu0 0.0
    %2019 = vmatmul.mubr.f32.gmra.mrb[0].mxu0 %v1501
    %v2020 = vpop.f32.mrb[0].mxu0
    %v2021 = vadd.f32 %v1392, %v2020
    %v2022 = vpop.f32.mrb[0].mxu0
    %2023 = vmatprep.mubr.f32.mxu0 0.0
    %2024 = vmatmul.mubr.f32.gmra.mrb[0].mxu0 %v1504
    %v2025 = vpop.f32.mrb[0].mxu0
    %v2026 = vadd.f32 %v1392, %v2025
    %v2027 = vpop.f32.mrb[0].mxu0
    %2028 = vmatprep.mubr.f32.mxu0 0.0
    %2029 = vmatmul.mubr.f32.gmra.mrb[0].mxu0 %v1507
    %v2030 = vpop.f32.mrb[0].mxu0
    %v2031 = vadd.f32 %v1392, %v2030
    %v2032 = vpop.f32.mrb[0].mxu0
    %2033 = vmatprep.mubr.f32.mxu0 0.0
    %2034 = vmatmul.mubr.f32.gmra.mrb[0].mxu0 %v1510
    %v2035 = vpop.f32.mrb[0].mxu0
    %v2036 = vadd.f32 %v1392, %v2035
    %v2037 = vpop.f32.mrb[0].mxu0
    %2038 = vmatprep.mubr.f32.mxu0 0.0
    %2039 = vmatmul.mubr.f32.gmra.mrb[0].mxu0 %v1513
    %v2040 = vpop.f32.mrb[0].mxu0
    %v2041 = vadd.f32 %v1392, %v2040
    %v2042 = vpop.f32.mrb[0].mxu0
    %2043 = vmatprep.mubr.f32.mxu0 0.0
    %2044 = vmatmul.mubr.f32.gmra.mrb[0].mxu0 %v1516
    %v2045 = vpop.f32.mrb[0].mxu0
    %v2046 = vadd.f32 %v1392, %v2045
    %v2047 = vpop.f32.mrb[0].mxu0
    %2048 = vmatprep.mubr.f32.mxu0 0.0
    %2049 = vmatmul.mubr.f32.gmra.mrb[0].mxu0 %v1519
    %v2050 = vpop.f32.mrb[0].mxu0
    %v2051 = vadd.f32 %v1392, %v2050
    %v2052 = vpop.f32.mrb[0].mxu0
    %2053 = vmatprep.mubr.f32.mxu0 0.0
    %2054 = vmatmul.mubr.f32.gmra.mrb[0].mxu0 %v1522
    %v2055 = vpop.f32.mrb[0].mxu0
    %v2056 = vadd.f32 %v1392, %v2055
    %v2057 = vpop.f32.mrb[0].mxu0
    %2058 = vmatprep.mubr.f32.mxu0 0.0
    %2059 = vmatmul.mubr.f32.gmra.mrb[0].mxu0 %v1525
    %v2060 = vpop.f32.mrb[0].mxu0
    %v2061 = vadd.f32 %v1392, %v2060
    %v2062 = vpop.f32.mrb[0].mxu0
    %2063 = vmatprep.mubr.f32.mxu0 0.0
    %2064 = vmatmul.mubr.f32.gmra.mrb[0].mxu0 %v1528
    %v2065 = vpop.f32.mrb[0].mxu0
    %v2066 = vadd.f32 %v1392, %v2065
    %v2067 = vpop.f32.mrb[0].mxu0
    %2068 = vmatprep.mubr.f32.mxu0 0.0
    %2069 = vmatmul.mubr.f32.gmra.mrb[0].mxu0 %v1531
    %v2070 = vpop.f32.mrb[0].mxu0
    %v2071 = vadd.f32 %v1392, %v2070
    %v2072 = vpop.f32.mrb[0].mxu0
    %2073 = vmatprep.mubr.f32.mxu0 0.0
    %2074 = vmatmul.mubr.f32.gmra.mrb[0].mxu0 %v1534
    %v2075 = vpop.f32.mrb[0].mxu0
    %v2076 = vadd.f32 %v1392, %v2075
    %v2077 = vpop.f32.mrb[0].mxu0
    %2078 = vmatprep.mubr.f32.mxu0 0.0
    %2079 = vmatmul.mubr.f32.gmra.mrb[0].mxu0 %v1537
    %v2080 = vpop.f32.mrb[0].mxu0
    %v2081 = vadd.f32 %v1392, %v2080
    %v2082 = vpop.f32.mrb[0].mxu0
    %2083 = vmatprep.mubr.f32.mxu0 0.0
    %2084 = vmatmul.mubr.f32.gmra.mrb[0].mxu0 %v1540
    %v2085 = vpop.f32.mrb[0].mxu0
    %v2086 = vadd.f32 %v1392, %v2085
    %v2087 = vpop.f32.mrb[0].mxu0
    %2088 = vmatprep.mubr.f32.mxu0 0.0
    %2089 = vmatmul.mubr.f32.gmra.mrb[0].mxu0 %v1543
    %v2090 = vpop.f32.mrb[0].mxu0
    %v2091 = vadd.f32 %v1392, %v2090
    %v2092 = vpop.f32.mrb[0].mxu0
    %2093 = vmatprep.mubr.f32.mxu0 0.0
    %2094 = vmatmul.mubr.f32.gmra.mrb[0].mxu0 %v1546
    %v2095 = vpop.f32.mrb[0].mxu0
    %v2096 = vadd.f32 %v1392, %v2095
    %v2097 = vpop.f32.mrb[0].mxu0
    %2098 = vmatprep.mubr.f32.mxu0 0.0
    %2099 = vmatmul.mubr.f32.gmra.mrb[0].mxu0 %v1549
    %v2100 = vpop.f32.mrb[0].mxu0
    %v2101 = vadd.f32 %v1392, %v2100
    %v2102 = vpop.f32.mrb[0].mxu0
    %2103 = vmatprep.mubr.f32.mxu0 0.0
    %2104 = vmatmul.mubr.f32.gmra.mrb[0].mxu0 %v1552
    %v2105 = vpop.f32.mrb[0].mxu0
    %v2106 = vadd.f32 %v1392, %v2105
    %v2107 = vpop.f32.mrb[0].mxu0
    %2108 = vmatprep.mubr.f32.mxu0 0.0
    %2109 = vmatmul.mubr.f32.gmra.mrb[0].mxu0 %v1555
    %v2110 = vpop.f32.mrb[0].mxu0
    %v2111 = vadd.f32 %v1392, %v2110
    %v2112 = vpop.f32.mrb[0].mxu0
    %2113 = vmatprep.mubr.f32.mxu0 0.0
    %2114 = vmatmul.mubr.f32.gmra.mrb[0].mxu0 %v1558
    %v2115 = vpop.f32.mrb[0].mxu0
    %v2116 = vadd.f32 %v1392, %v2115
    %v2117 = vpop.f32.mrb[0].mxu0
    %2118 = vmatprep.mubr.f32.mxu0 0.0
    %2119 = vmatmul.mubr.f32.gmra.mrb[0].mxu0 %v1561
    %v2120 = vpop.f32.mrb[0].mxu0
    %v2121 = vadd.f32 %v1392, %v2120
    %v2122 = vpop.f32.mrb[0].mxu0
    %2123 = vmatprep.mubr.f32.mxu0 0.0
    %2124 = vmatmul.mubr.f32.gmra.mrb[0].mxu0 %v1564
    %v2125 = vpop.f32.mrb[0].mxu0
    %v2126 = vadd.f32 %v1392, %v2125
    %v2127 = vpop.f32.mrb[0].mxu0
    %2128 = vmatprep.mubr.f32.mxu0 0.0
    %2129 = vmatmul.mubr.f32.gmra.mrb[0].mxu0 %v1567
    %v2130 = vpop.f32.mrb[0].mxu0
    %v2131 = vadd.f32 %v1392, %v2130
    %v2132 = vpop.f32.mrb[0].mxu0
    %2133 = vmatprep.mubr.f32.mxu0 0.0
    %2134 = vmatmul.mubr.f32.gmra.mrb[0].mxu0 %v1570
    %v2135 = vpop.f32.mrb[0].mxu0
    %v2136 = vadd.f32 %v1392, %v2135
    %v2137 = vpop.f32.mrb[0].mxu0
    %2138 = vmatprep.mubr.f32.mxu0 0.0
    %2139 = vmatmul.mubr.f32.gmra.mrb[0].mxu0 %v1573
    %v2140 = vpop.f32.mrb[0].mxu0
    %v2141 = vadd.f32 %v1392, %v2140
    %v2142 = vpop.f32.mrb[0].mxu0
    %2143 = vmatprep.mubr.f32.mxu0 0.0
    %2144 = vmatmul.mubr.f32.gmra.mrb[0].mxu0 %v1576
    %v2145 = vpop.f32.mrb[0].mxu0
    %v2146 = vadd.f32 %v1392, %v2145
    %v2147 = vpop.f32.mrb[0].mxu0
    %2148 = vmatprep.mubr.f32.mxu0 0.0
    %2149 = vmatmul.mubr.f32.gmra.mrb[0].mxu0 %v1579
    %v2150 = vpop.f32.mrb[0].mxu0
    %v2151 = vadd.f32 %v1392, %v2150
    %v2152 = vpop.f32.mrb[0].mxu0
    %2153 = vmatprep.mubr.f32.mxu0 0.0
    %2154 = vmatmul.mubr.f32.gmra.mrb[0].mxu0 %v1582
    %v2155 = vpop.f32.mrb[0].mxu0
    %v2156 = vadd.f32 %v1392, %v2155
    %v2157 = vpop.f32.mrb[0].mxu0
    %2158 = vmatprep.mubr.f32.mxu0 0.0
    %2159 = vmatmul.mubr.f32.gmra.mrb[0].mxu0 %v1585
    %v2160 = vpop.f32.mrb[0].mxu0
    %v2161 = vadd.f32 %v1392, %v2160
    %v2162 = vpop.f32.mrb[0].mxu0
    %2163 = vmatprep.mubr.f32.mxu0 0.0
    %2164 = vmatmul.mubr.f32.gmra.mrb[0].mxu0 %v1588
    %v2165 = vpop.f32.mrb[0].mxu0
    %v2166 = vadd.f32 %v1392, %v2165
    %v2167 = vpop.f32.mrb[0].mxu0
    %2168 = vmatprep.mubr.f32.mxu0 0.0
    %2169 = vmatmul.mubr.f32.gmra.mrb[0].mxu0 %v1591
    %v2170 = vpop.f32.mrb[0].mxu0
    %v2171 = vadd.f32 %v1392, %v2170
    %v2172 = vpop.f32.mrb[0].mxu0
    %2173 = vmatprep.mubr.f32.mxu0 0.0
    %2174 = vmatmul.mubr.f32.gmra.mrb[0].mxu0 %v1594
    %v2175 = vpop.f32.mrb[0].mxu0
    %v2176 = vadd.f32 %v1392, %v2175
    %v2177 = vpop.f32.mrb[0].mxu0
    %2178 = vmatprep.mubr.f32.mxu0 0.0
    %2179 = vmatmul.mubr.f32.gmra.mrb[0].mxu0 %v1597
    %v2180 = vpop.f32.mrb[0].mxu0
    %v2181 = vadd.f32 %v1392, %v2180
    %v2182 = vpop.f32.mrb[0].mxu0
    %2183 = vmatprep.mubr.f32.mxu0 0.0
    %2184 = vmatmul.mubr.f32.gmra.mrb[0].mxu0 %v1600
    %v2185 = vpop.f32.mrb[0].mxu0
    %v2186 = vadd.f32 %v1392, %v2185
    %v2187 = vpop.f32.mrb[0].mxu0
    %2188 = vmatprep.mubr.f32.mxu0 0.0
    %2189 = vmatmul.mubr.f32.gmra.mrb[0].mxu0 %v1603
    %v2190 = vpop.f32.mrb[0].mxu0
    %v2191 = vadd.f32 %v1392, %v2190
    %v2192 = vpop.f32.mrb[0].mxu0
    %2193 = vmatprep.mubr.f32.mxu0 0.0
    %2194 = vmatmul.mubr.f32.gmra.mrb[0].mxu0 %v1606
    %v2195 = vpop.f32.mrb[0].mxu0
    %v2196 = vadd.f32 %v1392, %v2195
    %v2197 = vpop.f32.mrb[0].mxu0
    %2198 = vmatprep.mubr.f32.mxu0 0.0
    %2199 = vmatmul.mubr.f32.gmra.mrb[0].mxu0 %v1609
    %v2200 = vpop.f32.mrb[0].mxu0
    %v2201 = vadd.f32 %v1392, %v2200
    %v2202 = vpop.f32.mrb[0].mxu0
    %2203 = vmatprep.mubr.f32.mxu0 0.0
    %2204 = vmatmul.mubr.f32.gmra.mrb[0].mxu0 %v1612
    %v2205 = vpop.f32.mrb[0].mxu0
    %v2206 = vadd.f32 %v1392, %v2205
    %v2207 = vpop.f32.mrb[0].mxu0
    %2208 = vmatprep.mubr.f32.mxu0 0.0
    %2209 = vmatmul.mubr.f32.gmra.mrb[0].mxu0 %v1615
    %v2210 = vpop.f32.mrb[0].mxu0
    %v2211 = vadd.f32 %v1392, %v2210
    %v2212 = vpop.f32.mrb[0].mxu0
    %2213 = vmatprep.mubr.f32.mxu0 0.0
    %2214 = vmatmul.mubr.f32.gmra.mrb[0].mxu0 %v1618
    %v2215 = vpop.f32.mrb[0].mxu0
    %v2216 = vadd.f32 %v1392, %v2215
    %v2217 = vpop.f32.mrb[0].mxu0
    %2218 = vmatprep.mubr.f32.mxu0 0.0
    %2219 = vmatmul.mubr.f32.gmra.mrb[0].mxu0 %v1621
    %v2220 = vpop.f32.mrb[0].mxu0
    %v2221 = vadd.f32 %v1392, %v2220
    %v2222 = vpop.f32.mrb[0].mxu0
    %2223 = vmatprep.mubr.f32.mxu0 0.0
    %2224 = vmatmul.mubr.f32.gmra.mrb[0].mxu0 %v1624
    %v2225 = vpop.f32.mrb[0].mxu0
    %v2226 = vadd.f32 %v1392, %v2225
    %v2227 = vpop.f32.mrb[0].mxu0
    %2228 = vmatprep.mubr.f32.mxu0 0.0
    %2229 = vmatmul.mubr.f32.gmra.mrb[0].mxu0 %v1627
    %v2230 = vpop.f32.mrb[0].mxu0
    %v2231 = vadd.f32 %v1392, %v2230
    %v2232 = vpop.f32.mrb[0].mxu0
    %2233 = vmatprep.mubr.f32.mxu0 0.0
    %2234 = vmatmul.mubr.f32.gmra.mrb[0].mxu0 %v1630
    %v2235 = vpop.f32.mrb[0].mxu0
    %v2236 = vadd.f32 %v1392, %v2235
    %v2237 = vpop.f32.mrb[0].mxu0
    %2238 = vmatprep.mubr.f32.mxu0 0.0
    %2239 = vmatmul.mubr.f32.gmra.mrb[0].mxu0 %v1633
    %v2240 = vpop.f32.mrb[0].mxu0
    %v2241 = vadd.f32 %v1392, %v2240
    %v2242 = vpop.f32.mrb[0].mxu0
    %2243 = vmatprep.mubr.f32.mxu0 0.0
    %2244 = vmatmul.mubr.f32.gmra.mrb[0].mxu0 %v1636
    %v2245 = vpop.f32.mrb[0].mxu0
    %v2246 = vadd.f32 %v1392, %v2245
    %v2247 = vpop.f32.mrb[0].mxu0
    %2248 = vmatprep.mubr.f32.mxu0 0.0
    %2249 = vmatmul.mubr.f32.gmra.mrb[0].mxu0 %v1639
    %v2250 = vpop.f32.mrb[0].mxu0
    %v2251 = vadd.f32 %v1392, %v2250
    %v2252 = vpop.f32.mrb[0].mxu0
    %2253 = vmatprep.mubr.f32.mxu0 0.0
    %2254 = vmatmul.mubr.f32.gmra.mrb[0].mxu0 %v1642
    %v2255 = vpop.f32.mrb[0].mxu0
    %v2256 = vadd.f32 %v1392, %v2255
    %v2257 = vpop.f32.mrb[0].mxu0
    %2258 = vmatprep.mubr.f32.mxu0 0.0
    %2259 = vmatmul.mubr.f32.gmra.mrb[0].mxu0 %v1645
    %v2260 = vpop.f32.mrb[0].mxu0
    %v2261 = vadd.f32 %v1392, %v2260
    %v2262 = vpop.f32.mrb[0].mxu0
    %2263 = vmatprep.mubr.f32.mxu0 0.0
    %2264 = vmatmul.mubr.f32.gmra.mrb[0].mxu0 %v1648
    %v2265 = vpop.f32.mrb[0].mxu0
    %v2266 = vadd.f32 %v1392, %v2265
    %v2267 = vpop.f32.mrb[0].mxu0
    %2268 = vmatprep.mubr.f32.mxu0 0.0
    %2269 = vmatmul.mubr.f32.gmra.mrb[0].mxu0 %v1651
    %v2270 = vpop.f32.mrb[0].mxu0
    %v2271 = vadd.f32 %v1392, %v2270
    %v2272 = vpop.f32.mrb[0].mxu0
    %2273 = vmatprep.mubr.f32.mxu0 0.0
    %2274 = vmatmul.mubr.f32.gmra.mrb[0].mxu0 %v1654
    %v2275 = vpop.f32.mrb[0].mxu0
    %v2276 = vadd.f32 %v1392, %v2275
    %v2277 = vpop.f32.mrb[0].mxu0
    %2278 = vmatprep.mubr.f32.mxu0 0.0
    %2279 = vmatmul.mubr.f32.gmra.mrb[0].mxu0 %v1657
    %v2280 = vpop.f32.mrb[0].mxu0
    %v2281 = vadd.f32 %v1392, %v2280
    %v2282 = vpop.f32.mrb[0].mxu0
    %2283 = vmatprep.mubr.f32.mxu0 0.0
    %2284 = vmatmul.mubr.f32.gmra.mrb[0].mxu0 %v1660
    %v2285 = vpop.f32.mrb[0].mxu0
    %v2286 = vadd.f32 %v1392, %v2285
    %v2287 = vpop.f32.mrb[0].mxu0
    %2288 = vmatprep.mubr.f32.mxu0 0.0
    %2289 = vmatmul.mubr.f32.gmra.mrb[0].mxu0 %v1663
    %v2290 = vpop.f32.mrb[0].mxu0
    %v2291 = vadd.f32 %v1392, %v2290
    %v2292 = vpop.f32.mrb[0].mxu0
    %2293 = vmatprep.mubr.f32.mxu0 0.0
    %2294 = vmatmul.mubr.f32.gmra.mrb[0].mxu0 %v1666
    %v2295 = vpop.f32.mrb[0].mxu0
    %v2296 = vadd.f32 %v1392, %v2295
    %v2297 = vpop.f32.mrb[0].mxu0
    %2298 = vmatprep.mubr.f32.mxu0 0.0
    %2299 = vmatmul.mubr.f32.gmra.mrb[0].mxu0 %v1669
    %v2300 = vpop.f32.mrb[0].mxu0
    %v2301 = vadd.f32 %v1392, %v2300
    %v2302 = vpop.f32.mrb[0].mxu0
    %2303 = vmatprep.mubr.f32.mxu0 0.0
    %2304 = vmatmul.mubr.f32.gmra.mrb[0].mxu0 %v1672
    %v2305 = vpop.f32.mrb[0].mxu0
    %v2306 = vadd.f32 %v1392, %v2305
    %v2307 = vpop.f32.mrb[0].mxu0
    %2308 = vmatprep.mubr.f32.mxu0 0.0
    %2309 = vmatmul.mubr.f32.gmra.mrb[0].mxu0 %v1675
    %v2310 = vpop.f32.mrb[0].mxu0
    %v2311 = vadd.f32 %v1392, %v2310
    %v2312 = vpop.f32.mrb[0].mxu0
    %2313 = vmatprep.mubr.f32.mxu0 0.0
    %2314 = vmatmul.mubr.f32.gmra.mrb[0].mxu0 %v1678
    %v2315 = vpop.f32.mrb[0].mxu0
    %v2316 = vadd.f32 %v1392, %v2315
    %v2317 = vpop.f32.mrb[0].mxu0
    %2318 = vmatprep.mubr.f32.mxu0 0.0
    %2319 = vmatmul.mubr.f32.gmra.mrb[0].mxu0 %v1681
    %v2320 = vpop.f32.mrb[0].mxu0
    %v2321 = vadd.f32 %v1392, %v2320
    %v2322 = vpop.f32.mrb[0].mxu0
    %2323 = vmatprep.mubr.f32.mxu0 0.0
    %2324 = vmatmul.mubr.f32.gmra.mrb[0].mxu0 %v1684
    %v2325 = vpop.f32.mrb[0].mxu0
    %v2326 = vadd.f32 %v1392, %v2325
    %v2327 = vpop.f32.mrb[0].mxu0
    %2328 = vmatprep.mubr.f32.mxu0 0.0
    %2329 = vmatmul.mubr.f32.gmra.mrb[0].mxu0 %v1687
    %v2330 = vpop.f32.mrb[0].mxu0
    %v2331 = vadd.f32 %v1392, %v2330
    %v2332 = vpop.f32.mrb[0].mxu0
    %2333 = vmatprep.mubr.f32.mxu0 0.0
    %2334 = vmatmul.mubr.f32.gmra.mrb[0].mxu0 %v1690
    %v2335 = vpop.f32.mrb[0].mxu0
    %v2336 = vadd.f32 %v1392, %v2335
    %v2337 = vpop.f32.mrb[0].mxu0
    %2338 = vmatprep.mubr.f32.mxu0 0.0
    %2339 = vmatmul.mubr.f32.gmra.mrb[0].mxu0 %v1693
    %v2340 = vpop.f32.mrb[0].mxu0
    %v2341 = vadd.f32 %v1392, %v2340
    %v2342 = vpop.f32.mrb[0].mxu0
    %2343 = vmatprep.mubr.f32.mxu0 0.0
    %2344 = vmatmul.mubr.f32.gmra.mrb[0].mxu0 %v1696
    %v2345 = vpop.f32.mrb[0].mxu0
    %v2346 = vadd.f32 %v1392, %v2345
    %v2347 = vpop.f32.mrb[0].mxu0
    %2348 = vmatprep.mubr.f32.mxu0 0.0
    %2349 = vmatmul.mubr.f32.gmra.mrb[0].mxu0 %v1699
    %v2350 = vpop.f32.mrb[0].mxu0
    %v2351 = vadd.f32 %v1392, %v2350
    %v2352 = vpop.f32.mrb[0].mxu0
    %2353 = vmatprep.mubr.f32.mxu0 0.0
    %2354 = vmatmul.mubr.f32.gmra.mrb[0].mxu0 %v1702
    %v2355 = vpop.f32.mrb[0].mxu0
    %v2356 = vadd.f32 %v1392, %v2355
    %v2357 = vpop.f32.mrb[0].mxu0
    %2358 = vmatprep.mubr.f32.mxu0 0.0
    %2359 = vmatmul.mubr.f32.gmra.mrb[0].mxu0 %v1705
    %v2360 = vpop.f32.mrb[0].mxu0
    %v2361 = vadd.f32 %v1392, %v2360
    %v2362 = vpop.f32.mrb[0].mxu0
    %2363 = vmatprep.mubr.f32.mxu0 0.0
    %2364 = vmatmul.mubr.f32.gmra.mrb[0].mxu0 %v1708
    %v2365 = vpop.f32.mrb[0].mxu0
    %v2366 = vadd.f32 %v1392, %v2365
    %v2367 = vpop.f32.mrb[0].mxu0
    %2368 = vmatprep.mubr.f32.mxu0 0.0
    %2369 = vmatmul.mubr.f32.gmra.mrb[0].mxu0 %v1711
    %v2370 = vpop.f32.mrb[0].mxu0
    %v2371 = vadd.f32 %v1392, %v2370
    %v2372 = vpop.f32.mrb[0].mxu0
    %2373 = vmatprep.mubr.f32.mxu0 0.0
    %2374 = vmatmul.mubr.f32.gmra.mrb[0].mxu0 %v1714
    %v2375 = vpop.f32.mrb[0].mxu0
    %v2376 = vadd.f32 %v1392, %v2375
    %v2377 = vpop.f32.mrb[0].mxu0
    %2378 = vmatprep.mubr.f32.mxu0 0.0
    %2379 = vmatmul.mubr.f32.gmra.mrb[0].mxu0 %v1717
    %v2380 = vpop.f32.mrb[0].mxu0
    %v2381 = vadd.f32 %v1392, %v2380
    %v2382 = vpop.f32.mrb[0].mxu0
    %2383 = vmatprep.mubr.f32.mxu0 0.0
    %2384 = vmatmul.mubr.f32.gmra.mrb[0].mxu0 %v1720
    %v2385 = vpop.f32.mrb[0].mxu0
    %v2386 = vadd.f32 %v1392, %v2385
    %v2387 = vpop.f32.mrb[0].mxu0
    %2388 = vmatprep.mubr.f32.mxu0 0.0
    %2389 = vmatmul.mubr.f32.gmra.mrb[0].mxu0 %v1723
    %v2390 = vpop.f32.mrb[0].mxu0
    %v2391 = vadd.f32 %v1392, %v2390
    %v2392 = vpop.f32.mrb[0].mxu0
    %2393 = vmatprep.mubr.f32.mxu0 0.0
    %2394 = vmatmul.mubr.f32.gmra.mrb[0].mxu0 %v1726
    %v2395 = vpop.f32.mrb[0].mxu0
    %v2396 = vadd.f32 %v1392, %v2395
    %v2397 = vpop.f32.mrb[0].mxu0
    %2398 = vmatprep.mubr.f32.mxu0 0.0
    %2399 = vmatmul.mubr.f32.gmra.mrb[0].mxu0 %v1729
    %v2400 = vpop.f32.mrb[0].mxu0
    %v2401 = vadd.f32 %v1392, %v2400
    %v2402 = vpop.f32.mrb[0].mxu0
    %2403 = vmatprep.mubr.f32.mxu0 0.0
    %2404 = vmatmul.mubr.f32.gmra.mrb[0].mxu0 %v1732
    %v2405 = vpop.f32.mrb[0].mxu0
    %v2406 = vadd.f32 %v1392, %v2405
    %v2407 = vpop.f32.mrb[0].mxu0
    %2408 = vmatprep.mubr.f32.mxu0 0.0
    %2409 = vmatmul.mubr.f32.gmra.mrb[0].mxu0 %v1735
    %v2410 = vpop.f32.mrb[0].mxu0
    %v2411 = vadd.f32 %v1392, %v2410
    %v2412 = vpop.f32.mrb[0].mxu0
    %2413 = vmatprep.mubr.f32.mxu0 0.0
    %2414 = vmatmul.mubr.f32.gmra.mrb[0].mxu0 %v1738
    %v2415 = vpop.f32.mrb[0].mxu0
    %v2416 = vadd.f32 %v1392, %v2415
    %v2417 = vpop.f32.mrb[0].mxu0
    %2418 = vmatprep.mubr.f32.mxu0 0.0
    %2419 = vmatmul.mubr.f32.gmra.mrb[0].mxu0 %v1741
    %v2420 = vpop.f32.mrb[0].mxu0
    %v2421 = vadd.f32 %v1392, %v2420
    %v2422 = vpop.f32.mrb[0].mxu0
    %2423 = vmatprep.mubr.f32.mxu0 0.0
    %2424 = vmatmul.mubr.f32.gmra.mrb[0].mxu0 %v1744
    %v2425 = vpop.f32.mrb[0].mxu0
    %v2426 = vadd.f32 %v1392, %v2425
    %v2427 = vpop.f32.mrb[0].mxu0
    %2428 = vmatprep.mubr.f32.mxu0 0.0
    %2429 = vmatmul.mubr.f32.gmra.mrb[0].mxu0 %v1747
    %v2430 = vpop.f32.mrb[0].mxu0
    %v2431 = vadd.f32 %v1392, %v2430
    %v2432 = vpop.f32.mrb[0].mxu0
    %2433 = vmatprep.mubr.f32.mxu0 0.0
    %2434 = vmatmul.mubr.f32.gmra.mrb[0].mxu0 %v1750
    %v2435 = vpop.f32.mrb[0].mxu0
    %v2436 = vadd.f32 %v1392, %v2435
    %v2437 = vpop.f32.mrb[0].mxu0
    %2438 = vmatprep.mubr.f32.mxu0 0.0
    %2439 = vmatmul.mubr.f32.gmra.mrb[0].mxu0 %v1753
    %v2440 = vpop.f32.mrb[0].mxu0
    %v2441 = vadd.f32 %v1392, %v2440
    %v2442 = vpop.f32.mrb[0].mxu0
    %2443 = vmatprep.mubr.f32.mxu0 0.0
    %2444 = vmatmul.mubr.f32.gmra.mrb[0].mxu0 %v1756
    %v2445 = vpop.f32.mrb[0].mxu0
    %v2446 = vadd.f32 %v1392, %v2445
    %v2447 = vpop.f32.mrb[0].mxu0
    %2448 = vmatprep.mubr.f32.mxu0 0.0
    %2449 = vmatmul.mubr.f32.gmra.mrb[0].mxu0 %v1759
    %v2450 = vpop.f32.mrb[0].mxu0
    %v2451 = vadd.f32 %v1392, %v2450
    %v2452 = vpop.f32.mrb[0].mxu0
    %2453 = vmatprep.mubr.f32.mxu0 0.0
    %2454 = vmatmul.mubr.f32.gmra.mrb[0].mxu0 %v1762
    %v2455 = vpop.f32.mrb[0].mxu0
    %v2456 = vadd.f32 %v1392, %v2455
    %v2457 = vpop.f32.mrb[0].mxu0
    %2458 = vmatprep.mubr.f32.mxu0 0.0
    %2459 = vmatmul.mubr.f32.gmra.mrb[0].mxu0 %v1765
    %v2460 = vpop.f32.mrb[0].mxu0
    %v2461 = vadd.f32 %v1392, %v2460
    %v2462 = vpop.f32.mrb[0].mxu0
    %2463 = vmatprep.mubr.f32.mxu0 0.0
    %2464 = vmatmul.mubr.f32.gmra.mrb[0].mxu0 %v1768
    %v2465 = vpop.f32.mrb[0].mxu0
    %v2466 = vadd.f32 %v1392, %v2465
    %v2467 = vpop.f32.mrb[0].mxu0
    %2468 = vmatprep.mubr.f32.mxu0 0.0
    %2469 = vmatmul.mubr.f32.gmra.mrb[0].mxu0 %v1771
    %v2470 = vpop.f32.mrb[0].mxu0
    %v2471 = vadd.f32 %v1392, %v2470
    %v2472 = vpop.f32.mrb[0].mxu0
    %2473 = vmatprep.mubr.f32.mxu0 0.0
    %2474 = vmatmul.mubr.f32.gmra.mrb[0].mxu0 %v1774
    %v2475 = vpop.f32.mrb[0].mxu0
    %v2476 = vadd.f32 %v1392, %v2475
    %v2477 = vpop.f32.mrb[0].mxu0
    %2478 = vmatprep.mubr.f32.mxu0 0.0
    %2479 = vmatmul.mubr.f32.gmra.mrb[0].mxu0 %v1777
    %v2480 = vpop.f32.mrb[0].mxu0
    %v2481 = vadd.f32 %v1392, %v2480
    %v2482 = vpop.f32.mrb[0].mxu0
    %2483 = vdwg.mxu0
    %v2484 = vmax.f32 %v1846, 0.0
    %v2485 = vmax.f32 %v1851, 0.0
    %v2486 = vmax.f32 %v1856, 0.0
    %v2487 = vmax.f32 %v1861, 0.0
    %v2488 = vmax.f32 %v1866, 0.0
    %v2489 = vmax.f32 %v1871, 0.0
    %v2490 = vmax.f32 %v1876, 0.0
    %v2491 = vmax.f32 %v1881, 0.0
    %v2492 = vmax.f32 %v1886, 0.0
    %v2493 = vmax.f32 %v1891, 0.0
    %v2494 = vmax.f32 %v1896, 0.0
    %v2495 = vmax.f32 %v1901, 0.0
    %v2496 = vmax.f32 %v1906, 0.0
    %v2497 = vmax.f32 %v1911, 0.0
    %v2498 = vmax.f32 %v1916, 0.0
    %v2499 = vmax.f32 %v1921, 0.0
    %v2500 = vmax.f32 %v1926, 0.0
    %v2501 = vmax.f32 %v1931, 0.0
    %v2502 = vmax.f32 %v1936, 0.0
    %v2503 = vmax.f32 %v1941, 0.0
    %v2504 = vmax.f32 %v1946, 0.0
    %v2505 = vmax.f32 %v1951, 0.0
    %v2506 = vmax.f32 %v1956, 0.0
    %v2507 = vmax.f32 %v1961, 0.0
    %v2508 = vmax.f32 %v1966, 0.0
    %v2509 = vmax.f32 %v1971, 0.0
    %v2510 = vmax.f32 %v1976, 0.0
    %v2511 = vmax.f32 %v1981, 0.0
    %v2512 = vmax.f32 %v1986, 0.0
    %v2513 = vmax.f32 %v1991, 0.0
    %v2514 = vmax.f32 %v1996, 0.0
    %v2515 = vmax.f32 %v2001, 0.0
    %v2516 = vmax.f32 %v2006, 0.0
    %v2517 = vmax.f32 %v2011, 0.0
    %v2518 = vmax.f32 %v2016, 0.0
    %v2519 = vmax.f32 %v2021, 0.0
    %v2520 = vmax.f32 %v2026, 0.0
    %v2521 = vmax.f32 %v2031, 0.0
    %v2522 = vmax.f32 %v2036, 0.0
    %v2523 = vmax.f32 %v2041, 0.0
    %v2524 = vmax.f32 %v2046, 0.0
    %v2525 = vmax.f32 %v2051, 0.0
    %v2526 = vmax.f32 %v2056, 0.0
    %v2527 = vmax.f32 %v2061, 0.0
    %v2528 = vmax.f32 %v2066, 0.0
    %v2529 = vmax.f32 %v2071, 0.0
    %v2530 = vmax.f32 %v2076, 0.0
    %v2531 = vmax.f32 %v2081, 0.0
    %v2532 = vmax.f32 %v2086, 0.0
    %v2533 = vmax.f32 %v2091, 0.0
    %v2534 = vmax.f32 %v2096, 0.0
    %v2535 = vmax.f32 %v2101, 0.0
    %v2536 = vmax.f32 %v2106, 0.0
    %v2537 = vmax.f32 %v2111, 0.0
    %v2538 = vmax.f32 %v2116, 0.0
    %v2539 = vmax.f32 %v2121, 0.0
    %v2540 = vmax.f32 %v2126, 0.0
    %v2541 = vmax.f32 %v2131, 0.0
    %v2542 = vmax.f32 %v2136, 0.0
    %v2543 = vmax.f32 %v2141, 0.0
    %v2544 = vmax.f32 %v2146, 0.0
    %v2545 = vmax.f32 %v2151, 0.0
    %v2546 = vmax.f32 %v2156, 0.0
    %v2547 = vmax.f32 %v2161, 0.0
    %v2548 = vmax.f32 %v2166, 0.0
    %v2549 = vmax.f32 %v2171, 0.0
    %v2550 = vmax.f32 %v2176, 0.0
    %v2551 = vmax.f32 %v2181, 0.0
    %v2552 = vmax.f32 %v2186, 0.0
    %v2553 = vmax.f32 %v2191, 0.0
    %v2554 = vmax.f32 %v2196, 0.0
    %v2555 = vmax.f32 %v2201, 0.0
    %v2556 = vmax.f32 %v2206, 0.0
    %v2557 = vmax.f32 %v2211, 0.0
    %v2558 = vmax.f32 %v2216, 0.0
    %v2559 = vmax.f32 %v2221, 0.0
    %v2560 = vmax.f32 %v2226, 0.0
    %v2561 = vmax.f32 %v2231, 0.0
    %v2562 = vmax.f32 %v2236, 0.0
    %v2563 = vmax.f32 %v2241, 0.0
    %v2564 = vmax.f32 %v2246, 0.0
    %v2565 = vmax.f32 %v2251, 0.0
    %v2566 = vmax.f32 %v2256, 0.0
    %v2567 = vmax.f32 %v2261, 0.0
    %v2568 = vmax.f32 %v2266, 0.0
    %v2569 = vmax.f32 %v2271, 0.0
    %v2570 = vmax.f32 %v2276, 0.0
    %v2571 = vmax.f32 %v2281, 0.0
    %v2572 = vmax.f32 %v2286, 0.0
    %v2573 = vmax.f32 %v2291, 0.0
    %v2574 = vmax.f32 %v2296, 0.0
    %v2575 = vmax.f32 %v2301, 0.0
    %v2576 = vmax.f32 %v2306, 0.0
    %v2577 = vmax.f32 %v2311, 0.0
    %v2578 = vmax.f32 %v2316, 0.0
    %v2579 = vmax.f32 %v2321, 0.0
    %v2580 = vmax.f32 %v2326, 0.0
    %v2581 = vmax.f32 %v2331, 0.0
    %v2582 = vmax.f32 %v2336, 0.0
    %v2583 = vmax.f32 %v2341, 0.0
    %v2584 = vmax.f32 %v2346, 0.0
    %v2585 = vmax.f32 %v2351, 0.0
    %v2586 = vmax.f32 %v2356, 0.0
    %v2587 = vmax.f32 %v2361, 0.0
    %v2588 = vmax.f32 %v2366, 0.0
    %v2589 = vmax.f32 %v2371, 0.0
    %v2590 = vmax.f32 %v2376, 0.0
    %v2591 = vmax.f32 %v2381, 0.0
    %v2592 = vmax.f32 %v2386, 0.0
    %v2593 = vmax.f32 %v2391, 0.0
    %v2594 = vmax.f32 %v2396, 0.0
    %v2595 = vmax.f32 %v2401, 0.0
    %v2596 = vmax.f32 %v2406, 0.0
    %v2597 = vmax.f32 %v2411, 0.0
    %v2598 = vmax.f32 %v2416, 0.0
    %v2599 = vmax.f32 %v2421, 0.0
    %v2600 = vmax.f32 %v2426, 0.0
    %v2601 = vmax.f32 %v2431, 0.0
    %v2602 = vmax.f32 %v2436, 0.0
    %v2603 = vmax.f32 %v2441, 0.0
    %v2604 = vmax.f32 %v2446, 0.0
    %v2605 = vmax.f32 %v2451, 0.0
    %v2606 = vmax.f32 %v2456, 0.0
    %v2607 = vmax.f32 %v2461, 0.0
    %v2608 = vmax.f32 %v2466, 0.0
    %v2609 = vmax.f32 %v2471, 0.0
    %v2610 = vmax.f32 %v2476, 0.0
    %v2611 = vmax.f32 %v2481, 0.0
    %v2612 = vld [vmem:[%s5] sm:$0x1]
    %v2614 = vlaneseq
    %v2615 = vshrl.u32 %v2614, 7
    %v2616 = vsub.s32 0, %v2615
    %v2617 = vrot.slane %v2612, %v2616
    %v2619 = vmul.f32 %v2484, %v2617
    %v2620 = vmul.f32 %v2485, %v2617
    %v2621 = vmul.f32 %v2486, %v2617
    %v2622 = vmul.f32 %v2487, %v2617
    %v2623 = vmul.f32 %v2488, %v2617
    %v2624 = vmul.f32 %v2489, %v2617
    %v2625 = vmul.f32 %v2490, %v2617
    %v2626 = vmul.f32 %v2491, %v2617
    %v2627 = vmul.f32 %v2492, %v2617
    %v2628 = vmul.f32 %v2493, %v2617
    %v2629 = vmul.f32 %v2494, %v2617
    %v2630 = vmul.f32 %v2495, %v2617
    %v2631 = vmul.f32 %v2496, %v2617
    %v2632 = vmul.f32 %v2497, %v2617
    %v2633 = vmul.f32 %v2498, %v2617
    %v2634 = vmul.f32 %v2499, %v2617
    %v2635 = vmul.f32 %v2500, %v2617
    %v2636 = vmul.f32 %v2501, %v2617
    %v2637 = vmul.f32 %v2502, %v2617
    %v2638 = vmul.f32 %v2503, %v2617
    %v2639 = vmul.f32 %v2504, %v2617
    %v2640 = vmul.f32 %v2505, %v2617
    %v2641 = vmul.f32 %v2506, %v2617
    %v2642 = vmul.f32 %v2507, %v2617
    %v2643 = vmul.f32 %v2508, %v2617
    %v2644 = vmul.f32 %v2509, %v2617
    %v2645 = vmul.f32 %v2510, %v2617
    %v2646 = vmul.f32 %v2511, %v2617
    %v2647 = vmul.f32 %v2512, %v2617
    %v2648 = vmul.f32 %v2513, %v2617
    %v2649 = vmul.f32 %v2514, %v2617
    %v2650 = vmul.f32 %v2515, %v2617
    %v2651 = vmul.f32 %v2516, %v2617
    %v2652 = vmul.f32 %v2517, %v2617
    %v2653 = vmul.f32 %v2518, %v2617
    %v2654 = vmul.f32 %v2519, %v2617
    %v2655 = vmul.f32 %v2520, %v2617
    %v2656 = vmul.f32 %v2521, %v2617
    %v2657 = vmul.f32 %v2522, %v2617
    %v2658 = vmul.f32 %v2523, %v2617
    %v2659 = vmul.f32 %v2524, %v2617
    %v2660 = vmul.f32 %v2525, %v2617
    %v2661 = vmul.f32 %v2526, %v2617
    %v2662 = vmul.f32 %v2527, %v2617
    %v2663 = vmul.f32 %v2528, %v2617
    %v2664 = vmul.f32 %v2529, %v2617
    %v2665 = vmul.f32 %v2530, %v2617
    %v2666 = vmul.f32 %v2531, %v2617
    %v2667 = vmul.f32 %v2532, %v2617
    %v2668 = vmul.f32 %v2533, %v2617
    %v2669 = vmul.f32 %v2534, %v2617
    %v2670 = vmul.f32 %v2535, %v2617
    %v2671 = vmul.f32 %v2536, %v2617
    %v2672 = vmul.f32 %v2537, %v2617
    %v2673 = vmul.f32 %v2538, %v2617
    %v2674 = vmul.f32 %v2539, %v2617
    %v2675 = vmul.f32 %v2540, %v2617
    %v2676 = vmul.f32 %v2541, %v2617
    %v2677 = vmul.f32 %v2542, %v2617
    %v2678 = vmul.f32 %v2543, %v2617
    %v2679 = vmul.f32 %v2544, %v2617
    %v2680 = vmul.f32 %v2545, %v2617
    %v2681 = vmul.f32 %v2546, %v2617
    %v2682 = vmul.f32 %v2547, %v2617
    %v2683 = vmul.f32 %v2548, %v2617
    %v2684 = vmul.f32 %v2549, %v2617
    %v2685 = vmul.f32 %v2550, %v2617
    %v2686 = vmul.f32 %v2551, %v2617
    %v2687 = vmul.f32 %v2552, %v2617
    %v2688 = vmul.f32 %v2553, %v2617
    %v2689 = vmul.f32 %v2554, %v2617
    %v2690 = vmul.f32 %v2555, %v2617
    %v2691 = vmul.f32 %v2556, %v2617
    %v2692 = vmul.f32 %v2557, %v2617
    %v2693 = vmul.f32 %v2558, %v2617
    %v2694 = vmul.f32 %v2559, %v2617
    %v2695 = vmul.f32 %v2560, %v2617
    %v2696 = vmul.f32 %v2561, %v2617
    %v2697 = vmul.f32 %v2562, %v2617
    %v2698 = vmul.f32 %v2563, %v2617
    %v2699 = vmul.f32 %v2564, %v2617
    %v2700 = vmul.f32 %v2565, %v2617
    %v2701 = vmul.f32 %v2566, %v2617
    %v2702 = vmul.f32 %v2567, %v2617
    %v2703 = vmul.f32 %v2568, %v2617
    %v2704 = vmul.f32 %v2569, %v2617
    %v2705 = vmul.f32 %v2570, %v2617
    %v2706 = vmul.f32 %v2571, %v2617
    %v2707 = vmul.f32 %v2572, %v2617
    %v2708 = vmul.f32 %v2573, %v2617
    %v2709 = vmul.f32 %v2574, %v2617
    %v2710 = vmul.f32 %v2575, %v2617
    %v2711 = vmul.f32 %v2576, %v2617
    %v2712 = vmul.f32 %v2577, %v2617
    %v2713 = vmul.f32 %v2578, %v2617
    %v2714 = vmul.f32 %v2579, %v2617
    %v2715 = vmul.f32 %v2580, %v2617
    %v2716 = vmul.f32 %v2581, %v2617
    %v2717 = vmul.f32 %v2582, %v2617
    %v2718 = vmul.f32 %v2583, %v2617
    %v2719 = vmul.f32 %v2584, %v2617
    %v2720 = vmul.f32 %v2585, %v2617
    %v2721 = vmul.f32 %v2586, %v2617
    %v2722 = vmul.f32 %v2587, %v2617
    %v2723 = vmul.f32 %v2588, %v2617
    %v2724 = vmul.f32 %v2589, %v2617
    %v2725 = vmul.f32 %v2590, %v2617
    %v2726 = vmul.f32 %v2591, %v2617
    %v2727 = vmul.f32 %v2592, %v2617
    %v2728 = vmul.f32 %v2593, %v2617
    %v2729 = vmul.f32 %v2594, %v2617
    %v2730 = vmul.f32 %v2595, %v2617
    %v2731 = vmul.f32 %v2596, %v2617
    %v2732 = vmul.f32 %v2597, %v2617
    %v2733 = vmul.f32 %v2598, %v2617
    %v2734 = vmul.f32 %v2599, %v2617
    %v2735 = vmul.f32 %v2600, %v2617
    %v2736 = vmul.f32 %v2601, %v2617
    %v2737 = vmul.f32 %v2602, %v2617
    %v2738 = vmul.f32 %v2603, %v2617
    %v2739 = vmul.f32 %v2604, %v2617
    %v2740 = vmul.f32 %v2605, %v2617
    %v2741 = vmul.f32 %v2606, %v2617
    %v2742 = vmul.f32 %v2607, %v2617
    %v2743 = vmul.f32 %v2608, %v2617
    %v2744 = vmul.f32 %v2609, %v2617
    %v2745 = vmul.f32 %v2610, %v2617
    %v2746 = vmul.f32 %v2611, %v2617
    %v2747 = vsel %vm1394, %v2619, 0.0
    %2748 = vadd.xlane.f32.xlu0 %v2747
    %v2749 = vpop.xlane.xlu0 %2748
    %v2750 = vsel %vm1394, %v2620, 0.0
    %2751 = vadd.xlane.f32.xlu0 %v2750
    %v2752 = vpop.xlane.xlu0 %2751
    %v2753 = vsel %vm1394, %v2621, 0.0
    %2754 = vadd.xlane.f32.xlu0 %v2753
    %v2755 = vpop.xlane.xlu0 %2754
    %v2756 = vsel %vm1394, %v2622, 0.0
    %2757 = vadd.xlane.f32.xlu0 %v2756
    %v2758 = vpop.xlane.xlu0 %2757
    %v2759 = vsel %vm1394, %v2623, 0.0
    %2760 = vadd.xlane.f32.xlu0 %v2759
    %v2761 = vpop.xlane.xlu0 %2760
    %v2762 = vsel %vm1394, %v2624, 0.0
    %2763 = vadd.xlane.f32.xlu0 %v2762
    %v2764 = vpop.xlane.xlu0 %2763
    %v2765 = vsel %vm1394, %v2625, 0.0
    %2766 = vadd.xlane.f32.xlu0 %v2765
    %v2767 = vpop.xlane.xlu0 %2766
    %v2768 = vsel %vm1394, %v2626, 0.0
    %2769 = vadd.xlane.f32.xlu0 %v2768
    %v2770 = vpop.xlane.xlu0 %2769
    %v2771 = vsel %vm1394, %v2627, 0.0
    %2772 = vadd.xlane.f32.xlu0 %v2771
    %v2773 = vpop.xlane.xlu0 %2772
    %v2774 = vsel %vm1394, %v2628, 0.0
    %2775 = vadd.xlane.f32.xlu0 %v2774
    %v2776 = vpop.xlane.xlu0 %2775
    %v2777 = vsel %vm1394, %v2629, 0.0
    %2778 = vadd.xlane.f32.xlu0 %v2777
    %v2779 = vpop.xlane.xlu0 %2778
    %v2780 = vsel %vm1394, %v2630, 0.0
    %2781 = vadd.xlane.f32.xlu0 %v2780
    %v2782 = vpop.xlane.xlu0 %2781
    %v2783 = vsel %vm1394, %v2631, 0.0
    %2784 = vadd.xlane.f32.xlu0 %v2783
    %v2785 = vpop.xlane.xlu0 %2784
    %v2786 = vsel %vm1394, %v2632, 0.0
    %2787 = vadd.xlane.f32.xlu0 %v2786
    %v2788 = vpop.xlane.xlu0 %2787
    %v2789 = vsel %vm1394, %v2633, 0.0
    %2790 = vadd.xlane.f32.xlu0 %v2789
    %v2791 = vpop.xlane.xlu0 %2790
    %v2792 = vsel %vm1394, %v2634, 0.0
    %2793 = vadd.xlane.f32.xlu0 %v2792
    %v2794 = vpop.xlane.xlu0 %2793
    %v2795 = vsel %vm1394, %v2635, 0.0
    %2796 = vadd.xlane.f32.xlu0 %v2795
    %v2797 = vpop.xlane.xlu0 %2796
    %v2798 = vsel %vm1394, %v2636, 0.0
    %2799 = vadd.xlane.f32.xlu0 %v2798
    %v2800 = vpop.xlane.xlu0 %2799
    %v2801 = vsel %vm1394, %v2637, 0.0
    %2802 = vadd.xlane.f32.xlu0 %v2801
    %v2803 = vpop.xlane.xlu0 %2802
    %v2804 = vsel %vm1394, %v2638, 0.0
    %2805 = vadd.xlane.f32.xlu0 %v2804
    %v2806 = vpop.xlane.xlu0 %2805
    %v2807 = vsel %vm1394, %v2639, 0.0
    %2808 = vadd.xlane.f32.xlu0 %v2807
    %v2809 = vpop.xlane.xlu0 %2808
    %v2810 = vsel %vm1394, %v2640, 0.0
    %2811 = vadd.xlane.f32.xlu0 %v2810
    %v2812 = vpop.xlane.xlu0 %2811
    %v2813 = vsel %vm1394, %v2641, 0.0
    %2814 = vadd.xlane.f32.xlu0 %v2813
    %v2815 = vpop.xlane.xlu0 %2814
    %v2816 = vsel %vm1394, %v2642, 0.0
    %2817 = vadd.xlane.f32.xlu0 %v2816
    %v2818 = vpop.xlane.xlu0 %2817
    %v2819 = vsel %vm1394, %v2643, 0.0
    %2820 = vadd.xlane.f32.xlu0 %v2819
    %v2821 = vpop.xlane.xlu0 %2820
    %v2822 = vsel %vm1394, %v2644, 0.0
    %2823 = vadd.xlane.f32.xlu0 %v2822
    %v2824 = vpop.xlane.xlu0 %2823
    %v2825 = vsel %vm1394, %v2645, 0.0
    %2826 = vadd.xlane.f32.xlu0 %v2825
    %v2827 = vpop.xlane.xlu0 %2826
    %v2828 = vsel %vm1394, %v2646, 0.0
    %2829 = vadd.xlane.f32.xlu0 %v2828
    %v2830 = vpop.xlane.xlu0 %2829
    %v2831 = vsel %vm1394, %v2647, 0.0
    %2832 = vadd.xlane.f32.xlu0 %v2831
    %v2833 = vpop.xlane.xlu0 %2832
    %v2834 = vsel %vm1394, %v2648, 0.0
    %2835 = vadd.xlane.f32.xlu0 %v2834
    %v2836 = vpop.xlane.xlu0 %2835
    %v2837 = vsel %vm1394, %v2649, 0.0
    %2838 = vadd.xlane.f32.xlu0 %v2837
    %v2839 = vpop.xlane.xlu0 %2838
    %v2840 = vsel %vm1394, %v2650, 0.0
    %2841 = vadd.xlane.f32.xlu0 %v2840
    %v2842 = vpop.xlane.xlu0 %2841
    %v2843 = vsel %vm1394, %v2651, 0.0
    %2844 = vadd.xlane.f32.xlu0 %v2843
    %v2845 = vpop.xlane.xlu0 %2844
    %v2846 = vsel %vm1394, %v2652, 0.0
    %2847 = vadd.xlane.f32.xlu0 %v2846
    %v2848 = vpop.xlane.xlu0 %2847
    %v2849 = vsel %vm1394, %v2653, 0.0
    %2850 = vadd.xlane.f32.xlu0 %v2849
    %v2851 = vpop.xlane.xlu0 %2850
    %v2852 = vsel %vm1394, %v2654, 0.0
    %2853 = vadd.xlane.f32.xlu0 %v2852
    %v2854 = vpop.xlane.xlu0 %2853
    %v2855 = vsel %vm1394, %v2655, 0.0
    %2856 = vadd.xlane.f32.xlu0 %v2855
    %v2857 = vpop.xlane.xlu0 %2856
    %v2858 = vsel %vm1394, %v2656, 0.0
    %2859 = vadd.xlane.f32.xlu0 %v2858
    %v2860 = vpop.xlane.xlu0 %2859
    %v2861 = vsel %vm1394, %v2657, 0.0
    %2862 = vadd.xlane.f32.xlu0 %v2861
    %v2863 = vpop.xlane.xlu0 %2862
    %v2864 = vsel %vm1394, %v2658, 0.0
    %2865 = vadd.xlane.f32.xlu0 %v2864
    %v2866 = vpop.xlane.xlu0 %2865
    %v2867 = vsel %vm1394, %v2659, 0.0
    %2868 = vadd.xlane.f32.xlu0 %v2867
    %v2869 = vpop.xlane.xlu0 %2868
    %v2870 = vsel %vm1394, %v2660, 0.0
    %2871 = vadd.xlane.f32.xlu0 %v2870
    %v2872 = vpop.xlane.xlu0 %2871
    %v2873 = vsel %vm1394, %v2661, 0.0
    %2874 = vadd.xlane.f32.xlu0 %v2873
    %v2875 = vpop.xlane.xlu0 %2874
    %v2876 = vsel %vm1394, %v2662, 0.0
    %2877 = vadd.xlane.f32.xlu0 %v2876
    %v2878 = vpop.xlane.xlu0 %2877
    %v2879 = vsel %vm1394, %v2663, 0.0
    %2880 = vadd.xlane.f32.xlu0 %v2879
    %v2881 = vpop.xlane.xlu0 %2880
    %v2882 = vsel %vm1394, %v2664, 0.0
    %2883 = vadd.xlane.f32.xlu0 %v2882
    %v2884 = vpop.xlane.xlu0 %2883
    %v2885 = vsel %vm1394, %v2665, 0.0
    %2886 = vadd.xlane.f32.xlu0 %v2885
    %v2887 = vpop.xlane.xlu0 %2886
    %v2888 = vsel %vm1394, %v2666, 0.0
    %2889 = vadd.xlane.f32.xlu0 %v2888
    %v2890 = vpop.xlane.xlu0 %2889
    %v2891 = vsel %vm1394, %v2667, 0.0
    %2892 = vadd.xlane.f32.xlu0 %v2891
    %v2893 = vpop.xlane.xlu0 %2892
    %v2894 = vsel %vm1394, %v2668, 0.0
    %2895 = vadd.xlane.f32.xlu0 %v2894
    %v2896 = vpop.xlane.xlu0 %2895
    %v2897 = vsel %vm1394, %v2669, 0.0
    %2898 = vadd.xlane.f32.xlu0 %v2897
    %v2899 = vpop.xlane.xlu0 %2898
    %v2900 = vsel %vm1394, %v2670, 0.0
    %2901 = vadd.xlane.f32.xlu0 %v2900
    %v2902 = vpop.xlane.xlu0 %2901
    %v2903 = vsel %vm1394, %v2671, 0.0
    %2904 = vadd.xlane.f32.xlu0 %v2903
    %v2905 = vpop.xlane.xlu0 %2904
    %v2906 = vsel %vm1394, %v2672, 0.0
    %2907 = vadd.xlane.f32.xlu0 %v2906
    %v2908 = vpop.xlane.xlu0 %2907
    %v2909 = vsel %vm1394, %v2673, 0.0
    %2910 = vadd.xlane.f32.xlu0 %v2909
    %v2911 = vpop.xlane.xlu0 %2910
    %v2912 = vsel %vm1394, %v2674, 0.0
    %2913 = vadd.xlane.f32.xlu0 %v2912
    %v2914 = vpop.xlane.xlu0 %2913
    %v2915 = vsel %vm1394, %v2675, 0.0
    %2916 = vadd.xlane.f32.xlu0 %v2915
    %v2917 = vpop.xlane.xlu0 %2916
    %v2918 = vsel %vm1394, %v2676, 0.0
    %2919 = vadd.xlane.f32.xlu0 %v2918
    %v2920 = vpop.xlane.xlu0 %2919
    %v2921 = vsel %vm1394, %v2677, 0.0
    %2922 = vadd.xlane.f32.xlu0 %v2921
    %v2923 = vpop.xlane.xlu0 %2922
    %v2924 = vsel %vm1394, %v2678, 0.0
    %2925 = vadd.xlane.f32.xlu0 %v2924
    %v2926 = vpop.xlane.xlu0 %2925
    %v2927 = vsel %vm1394, %v2679, 0.0
    %2928 = vadd.xlane.f32.xlu0 %v2927
    %v2929 = vpop.xlane.xlu0 %2928
    %v2930 = vsel %vm1394, %v2680, 0.0
    %2931 = vadd.xlane.f32.xlu0 %v2930
    %v2932 = vpop.xlane.xlu0 %2931
    %v2933 = vsel %vm1394, %v2681, 0.0
    %2934 = vadd.xlane.f32.xlu0 %v2933
    %v2935 = vpop.xlane.xlu0 %2934
    %v2936 = vsel %vm1394, %v2682, 0.0
    %2937 = vadd.xlane.f32.xlu0 %v2936
    %v2938 = vpop.xlane.xlu0 %2937
    %v2939 = vsel %vm1394, %v2683, 0.0
    %2940 = vadd.xlane.f32.xlu0 %v2939
    %v2941 = vpop.xlane.xlu0 %2940
    %v2942 = vsel %vm1394, %v2684, 0.0
    %2943 = vadd.xlane.f32.xlu0 %v2942
    %v2944 = vpop.xlane.xlu0 %2943
    %v2945 = vsel %vm1394, %v2685, 0.0
    %2946 = vadd.xlane.f32.xlu0 %v2945
    %v2947 = vpop.xlane.xlu0 %2946
    %v2948 = vsel %vm1394, %v2686, 0.0
    %2949 = vadd.xlane.f32.xlu0 %v2948
    %v2950 = vpop.xlane.xlu0 %2949
    %v2951 = vsel %vm1394, %v2687, 0.0
    %2952 = vadd.xlane.f32.xlu0 %v2951
    %v2953 = vpop.xlane.xlu0 %2952
    %v2954 = vsel %vm1394, %v2688, 0.0
    %2955 = vadd.xlane.f32.xlu0 %v2954
    %v2956 = vpop.xlane.xlu0 %2955
    %v2957 = vsel %vm1394, %v2689, 0.0
    %2958 = vadd.xlane.f32.xlu0 %v2957
    %v2959 = vpop.xlane.xlu0 %2958
    %v2960 = vsel %vm1394, %v2690, 0.0
    %2961 = vadd.xlane.f32.xlu0 %v2960
    %v2962 = vpop.xlane.xlu0 %2961
    %v2963 = vsel %vm1394, %v2691, 0.0
    %2964 = vadd.xlane.f32.xlu0 %v2963
    %v2965 = vpop.xlane.xlu0 %2964
    %v2966 = vsel %vm1394, %v2692, 0.0
    %2967 = vadd.xlane.f32.xlu0 %v2966
    %v2968 = vpop.xlane.xlu0 %2967
    %v2969 = vsel %vm1394, %v2693, 0.0
    %2970 = vadd.xlane.f32.xlu0 %v2969
    %v2971 = vpop.xlane.xlu0 %2970
    %v2972 = vsel %vm1394, %v2694, 0.0
    %2973 = vadd.xlane.f32.xlu0 %v2972
    %v2974 = vpop.xlane.xlu0 %2973
    %v2975 = vsel %vm1394, %v2695, 0.0
    %2976 = vadd.xlane.f32.xlu0 %v2975
    %v2977 = vpop.xlane.xlu0 %2976
    %v2978 = vsel %vm1394, %v2696, 0.0
    %2979 = vadd.xlane.f32.xlu0 %v2978
    %v2980 = vpop.xlane.xlu0 %2979
    %v2981 = vsel %vm1394, %v2697, 0.0
    %2982 = vadd.xlane.f32.xlu0 %v2981
    %v2983 = vpop.xlane.xlu0 %2982
    %v2984 = vsel %vm1394, %v2698, 0.0
    %2985 = vadd.xlane.f32.xlu0 %v2984
    %v2986 = vpop.xlane.xlu0 %2985
    %v2987 = vsel %vm1394, %v2699, 0.0
    %2988 = vadd.xlane.f32.xlu0 %v2987
    %v2989 = vpop.xlane.xlu0 %2988
    %v2990 = vsel %vm1394, %v2700, 0.0
    %2991 = vadd.xlane.f32.xlu0 %v2990
    %v2992 = vpop.xlane.xlu0 %2991
    %v2993 = vsel %vm1394, %v2701, 0.0
    %2994 = vadd.xlane.f32.xlu0 %v2993
    %v2995 = vpop.xlane.xlu0 %2994
    %v2996 = vsel %vm1394, %v2702, 0.0
    %2997 = vadd.xlane.f32.xlu0 %v2996
    %v2998 = vpop.xlane.xlu0 %2997
    %v2999 = vsel %vm1394, %v2703, 0.0
    %3000 = vadd.xlane.f32.xlu0 %v2999
    %v3001 = vpop.xlane.xlu0 %3000
    %v3002 = vsel %vm1394, %v2704, 0.0
    %3003 = vadd.xlane.f32.xlu0 %v3002
    %v3004 = vpop.xlane.xlu0 %3003
    %v3005 = vsel %vm1394, %v2705, 0.0
    %3006 = vadd.xlane.f32.xlu0 %v3005
    %v3007 = vpop.xlane.xlu0 %3006
    %v3008 = vsel %vm1394, %v2706, 0.0
    %3009 = vadd.xlane.f32.xlu0 %v3008
    %v3010 = vpop.xlane.xlu0 %3009
    %v3011 = vsel %vm1394, %v2707, 0.0
    %3012 = vadd.xlane.f32.xlu0 %v3011
    %v3013 = vpop.xlane.xlu0 %3012
    %v3014 = vsel %vm1394, %v2708, 0.0
    %3015 = vadd.xlane.f32.xlu0 %v3014
    %v3016 = vpop.xlane.xlu0 %3015
    %v3017 = vsel %vm1394, %v2709, 0.0
    %3018 = vadd.xlane.f32.xlu0 %v3017
    %v3019 = vpop.xlane.xlu0 %3018
    %v3020 = vsel %vm1394, %v2710, 0.0
    %3021 = vadd.xlane.f32.xlu0 %v3020
    %v3022 = vpop.xlane.xlu0 %3021
    %v3023 = vsel %vm1394, %v2711, 0.0
    %3024 = vadd.xlane.f32.xlu0 %v3023
    %v3025 = vpop.xlane.xlu0 %3024
    %v3026 = vsel %vm1394, %v2712, 0.0
    %3027 = vadd.xlane.f32.xlu0 %v3026
    %v3028 = vpop.xlane.xlu0 %3027
    %v3029 = vsel %vm1394, %v2713, 0.0
    %3030 = vadd.xlane.f32.xlu0 %v3029
    %v3031 = vpop.xlane.xlu0 %3030
    %v3032 = vsel %vm1394, %v2714, 0.0
    %3033 = vadd.xlane.f32.xlu0 %v3032
    %v3034 = vpop.xlane.xlu0 %3033
    %v3035 = vsel %vm1394, %v2715, 0.0
    %3036 = vadd.xlane.f32.xlu0 %v3035
    %v3037 = vpop.xlane.xlu0 %3036
    %v3038 = vsel %vm1394, %v2716, 0.0
    %3039 = vadd.xlane.f32.xlu0 %v3038
    %v3040 = vpop.xlane.xlu0 %3039
    %v3041 = vsel %vm1394, %v2717, 0.0
    %3042 = vadd.xlane.f32.xlu0 %v3041
    %v3043 = vpop.xlane.xlu0 %3042
    %v3044 = vsel %vm1394, %v2718, 0.0
    %3045 = vadd.xlane.f32.xlu0 %v3044
    %v3046 = vpop.xlane.xlu0 %3045
    %v3047 = vsel %vm1394, %v2719, 0.0
    %3048 = vadd.xlane.f32.xlu0 %v3047
    %v3049 = vpop.xlane.xlu0 %3048
    %v3050 = vsel %vm1394, %v2720, 0.0
    %3051 = vadd.xlane.f32.xlu0 %v3050
    %v3052 = vpop.xlane.xlu0 %3051
    %v3053 = vsel %vm1394, %v2721, 0.0
    %3054 = vadd.xlane.f32.xlu0 %v3053
    %v3055 = vpop.xlane.xlu0 %3054
    %v3056 = vsel %vm1394, %v2722, 0.0
    %3057 = vadd.xlane.f32.xlu0 %v3056
    %v3058 = vpop.xlane.xlu0 %3057
    %v3059 = vsel %vm1394, %v2723, 0.0
    %3060 = vadd.xlane.f32.xlu0 %v3059
    %v3061 = vpop.xlane.xlu0 %3060
    %v3062 = vsel %vm1394, %v2724, 0.0
    %3063 = vadd.xlane.f32.xlu0 %v3062
    %v3064 = vpop.xlane.xlu0 %3063
    %v3065 = vsel %vm1394, %v2725, 0.0
    %3066 = vadd.xlane.f32.xlu0 %v3065
    %v3067 = vpop.xlane.xlu0 %3066
    %v3068 = vsel %vm1394, %v2726, 0.0
    %3069 = vadd.xlane.f32.xlu0 %v3068
    %v3070 = vpop.xlane.xlu0 %3069
    %v3071 = vsel %vm1394, %v2727, 0.0
    %3072 = vadd.xlane.f32.xlu0 %v3071
    %v3073 = vpop.xlane.xlu0 %3072
    %v3074 = vsel %vm1394, %v2728, 0.0
    %3075 = vadd.xlane.f32.xlu0 %v3074
    %v3076 = vpop.xlane.xlu0 %3075
    %v3077 = vsel %vm1394, %v2729, 0.0
    %3078 = vadd.xlane.f32.xlu0 %v3077
    %v3079 = vpop.xlane.xlu0 %3078
    %v3080 = vsel %vm1394, %v2730, 0.0
    %3081 = vadd.xlane.f32.xlu0 %v3080
    %v3082 = vpop.xlane.xlu0 %3081
    %v3083 = vsel %vm1394, %v2731, 0.0
    %3084 = vadd.xlane.f32.xlu0 %v3083
    %v3085 = vpop.xlane.xlu0 %3084
    %v3086 = vsel %vm1394, %v2732, 0.0
    %3087 = vadd.xlane.f32.xlu0 %v3086
    %v3088 = vpop.xlane.xlu0 %3087
    %v3089 = vsel %vm1394, %v2733, 0.0
    %3090 = vadd.xlane.f32.xlu0 %v3089
    %v3091 = vpop.xlane.xlu0 %3090
    %v3092 = vsel %vm1394, %v2734, 0.0
    %3093 = vadd.xlane.f32.xlu0 %v3092
    %v3094 = vpop.xlane.xlu0 %3093
    %v3095 = vsel %vm1394, %v2735, 0.0
    %3096 = vadd.xlane.f32.xlu0 %v3095
    %v3097 = vpop.xlane.xlu0 %3096
    %v3098 = vsel %vm1394, %v2736, 0.0
    %3099 = vadd.xlane.f32.xlu0 %v3098
    %v3100 = vpop.xlane.xlu0 %3099
    %v3101 = vsel %vm1394, %v2737, 0.0
    %3102 = vadd.xlane.f32.xlu0 %v3101
    %v3103 = vpop.xlane.xlu0 %3102
    %v3104 = vsel %vm1394, %v2738, 0.0
    %3105 = vadd.xlane.f32.xlu0 %v3104
    %v3106 = vpop.xlane.xlu0 %3105
    %v3107 = vsel %vm1394, %v2739, 0.0
    %3108 = vadd.xlane.f32.xlu0 %v3107
    %v3109 = vpop.xlane.xlu0 %3108
    %v3110 = vsel %vm1394, %v2740, 0.0
    %3111 = vadd.xlane.f32.xlu0 %v3110
    %v3112 = vpop.xlane.xlu0 %3111
    %v3113 = vsel %vm1394, %v2741, 0.0
    %3114 = vadd.xlane.f32.xlu0 %v3113
    %v3115 = vpop.xlane.xlu0 %3114
    %v3116 = vsel %vm1394, %v2742, 0.0
    %3117 = vadd.xlane.f32.xlu0 %v3116
    %v3118 = vpop.xlane.xlu0 %3117
    %v3119 = vsel %vm1394, %v2743, 0.0
    %3120 = vadd.xlane.f32.xlu0 %v3119
    %v3121 = vpop.xlane.xlu0 %3120
    %v3122 = vsel %vm1394, %v2744, 0.0
    %3123 = vadd.xlane.f32.xlu0 %v3122
    %v3124 = vpop.xlane.xlu0 %3123
    %v3125 = vsel %vm1394, %v2745, 0.0
    %3126 = vadd.xlane.f32.xlu0 %v3125
    %v3127 = vpop.xlane.xlu0 %3126
    %v3128 = vsel %vm1394, %v2746, 0.0
    %3129 = vadd.xlane.f32.xlu0 %v3128
    %v3130 = vpop.xlane.xlu0 %3129
    %v3131 = vld [vmem:[#allocation2] sm:$0x1]
    %v3133 = vlaneseq
    %v3134 = vshrl.u32 %v3133, 7
    %v3135 = vsub.s32 0, %v3134
    %v3136 = vrot.slane %v3131, %v3135
    %3137 = vset.pattern.permute.xlu0 0
    %3138 = vperm.xlu0 %3137, %v3136
    %v3139 = vpop.permute.xlu0 %3138
    %v3141 = vadd.f32 %v2749, %v3139
    %v3142 = vadd.f32 %v2752, %v3139
    %v3143 = vadd.f32 %v2755, %v3139
    %v3144 = vadd.f32 %v2758, %v3139
    %v3145 = vadd.f32 %v2761, %v3139
    %v3146 = vadd.f32 %v2764, %v3139
    %v3147 = vadd.f32 %v2767, %v3139
    %v3148 = vadd.f32 %v2770, %v3139
    %v3149 = vadd.f32 %v2773, %v3139
    %v3150 = vadd.f32 %v2776, %v3139
    %v3151 = vadd.f32 %v2779, %v3139
    %v3152 = vadd.f32 %v2782, %v3139
    %v3153 = vadd.f32 %v2785, %v3139
    %v3154 = vadd.f32 %v2788, %v3139
    %v3155 = vadd.f32 %v2791, %v3139
    %v3156 = vadd.f32 %v2794, %v3139
    %v3157 = vadd.f32 %v2797, %v3139
    %v3158 = vadd.f32 %v2800, %v3139
    %v3159 = vadd.f32 %v2803, %v3139
    %v3160 = vadd.f32 %v2806, %v3139
    %v3161 = vadd.f32 %v2809, %v3139
    %v3162 = vadd.f32 %v2812, %v3139
    %v3163 = vadd.f32 %v2815, %v3139
    %v3164 = vadd.f32 %v2818, %v3139
    %v3165 = vadd.f32 %v2821, %v3139
    %v3166 = vadd.f32 %v2824, %v3139
    %v3167 = vadd.f32 %v2827, %v3139
    %v3168 = vadd.f32 %v2830, %v3139
    %v3169 = vadd.f32 %v2833, %v3139
    %v3170 = vadd.f32 %v2836, %v3139
    %v3171 = vadd.f32 %v2839, %v3139
    %v3172 = vadd.f32 %v2842, %v3139
    %v3173 = vadd.f32 %v2845, %v3139
    %v3174 = vadd.f32 %v2848, %v3139
    %v3175 = vadd.f32 %v2851, %v3139
    %v3176 = vadd.f32 %v2854, %v3139
    %v3177 = vadd.f32 %v2857, %v3139
    %v3178 = vadd.f32 %v2860, %v3139
    %v3179 = vadd.f32 %v2863, %v3139
    %v3180 = vadd.f32 %v2866, %v3139
    %v3181 = vadd.f32 %v2869, %v3139
    %v3182 = vadd.f32 %v2872, %v3139
    %v3183 = vadd.f32 %v2875, %v3139
    %v3184 = vadd.f32 %v2878, %v3139
    %v3185 = vadd.f32 %v2881, %v3139
    %v3186 = vadd.f32 %v2884, %v3139
    %v3187 = vadd.f32 %v2887, %v3139
    %v3188 = vadd.f32 %v2890, %v3139
    %v3189 = vadd.f32 %v2893, %v3139
    %v3190 = vadd.f32 %v2896, %v3139
    %v3191 = vadd.f32 %v2899, %v3139
    %v3192 = vadd.f32 %v2902, %v3139
    %v3193 = vadd.f32 %v2905, %v3139
    %v3194 = vadd.f32 %v2908, %v3139
    %v3195 = vadd.f32 %v2911, %v3139
    %v3196 = vadd.f32 %v2914, %v3139
    %v3197 = vadd.f32 %v2917, %v3139
    %v3198 = vadd.f32 %v2920, %v3139
    %v3199 = vadd.f32 %v2923, %v3139
    %v3200 = vadd.f32 %v2926, %v3139
    %v3201 = vadd.f32 %v2929, %v3139
    %v3202 = vadd.f32 %v2932, %v3139
    %v3203 = vadd.f32 %v2935, %v3139
    %v3204 = vadd.f32 %v2938, %v3139
    %v3205 = vadd.f32 %v2941, %v3139
    %v3206 = vadd.f32 %v2944, %v3139
    %v3207 = vadd.f32 %v2947, %v3139
    %v3208 = vadd.f32 %v2950, %v3139
    %v3209 = vadd.f32 %v2953, %v3139
    %v3210 = vadd.f32 %v2956, %v3139
    %v3211 = vadd.f32 %v2959, %v3139
    %v3212 = vadd.f32 %v2962, %v3139
    %v3213 = vadd.f32 %v2965, %v3139
    %v3214 = vadd.f32 %v2968, %v3139
    %v3215 = vadd.f32 %v2971, %v3139
    %v3216 = vadd.f32 %v2974, %v3139
    %v3217 = vadd.f32 %v2977, %v3139
    %v3218 = vadd.f32 %v2980, %v3139
    %v3219 = vadd.f32 %v2983, %v3139
    %v3220 = vadd.f32 %v2986, %v3139
    %v3221 = vadd.f32 %v2989, %v3139
    %v3222 = vadd.f32 %v2992, %v3139
    %v3223 = vadd.f32 %v2995, %v3139
    %v3224 = vadd.f32 %v2998, %v3139
    %v3225 = vadd.f32 %v3001, %v3139
    %v3226 = vadd.f32 %v3004, %v3139
    %v3227 = vadd.f32 %v3007, %v3139
    %v3228 = vadd.f32 %v3010, %v3139
    %v3229 = vadd.f32 %v3013, %v3139
    %v3230 = vadd.f32 %v3016, %v3139
    %v3231 = vadd.f32 %v3019, %v3139
    %v3232 = vadd.f32 %v3022, %v3139
    %v3233 = vadd.f32 %v3025, %v3139
    %v3234 = vadd.f32 %v3028, %v3139
    %v3235 = vadd.f32 %v3031, %v3139
    %v3236 = vadd.f32 %v3034, %v3139
    %v3237 = vadd.f32 %v3037, %v3139
    %v3238 = vadd.f32 %v3040, %v3139
    %v3239 = vadd.f32 %v3043, %v3139
    %v3240 = vadd.f32 %v3046, %v3139
    %v3241 = vadd.f32 %v3049, %v3139
    %v3242 = vadd.f32 %v3052, %v3139
    %v3243 = vadd.f32 %v3055, %v3139
    %v3244 = vadd.f32 %v3058, %v3139
    %v3245 = vadd.f32 %v3061, %v3139
    %v3246 = vadd.f32 %v3064, %v3139
    %v3247 = vadd.f32 %v3067, %v3139
    %v3248 = vadd.f32 %v3070, %v3139
    %v3249 = vadd.f32 %v3073, %v3139
    %v3250 = vadd.f32 %v3076, %v3139
    %v3251 = vadd.f32 %v3079, %v3139
    %v3252 = vadd.f32 %v3082, %v3139
    %v3253 = vadd.f32 %v3085, %v3139
    %v3254 = vadd.f32 %v3088, %v3139
    %v3255 = vadd.f32 %v3091, %v3139
    %v3256 = vadd.f32 %v3094, %v3139
    %v3257 = vadd.f32 %v3097, %v3139
    %v3258 = vadd.f32 %v3100, %v3139
    %v3259 = vadd.f32 %v3103, %v3139
    %v3260 = vadd.f32 %v3106, %v3139
    %v3261 = vadd.f32 %v3109, %v3139
    %v3262 = vadd.f32 %v3112, %v3139
    %v3263 = vadd.f32 %v3115, %v3139
    %v3264 = vadd.f32 %v3118, %v3139
    %v3265 = vadd.f32 %v3121, %v3139
    %v3266 = vadd.f32 %v3124, %v3139
    %v3267 = vadd.f32 %v3127, %v3139
    %v3268 = vadd.f32 %v3130, %v3139
    %v3397 = vlaneseq
    %v3398 = vand.u32 %v3397, 127
    %v3399 = vlaneseq
    %v3400 = vshrl.u32 %v3399, 7
    %v3401 = vsub.s32 %v3398, %v3400
    %v3402 = vrot.slane %v3141, %v3401
    %v3403 = vadd.s32 %v3398, 4294967288
    %v3404 = vlaneseq
    %v3405 = vshrl.u32 %v3404, 7
    %v3406 = vsub.s32 %v3403, %v3405
    %v3407 = vrot.slane %v3142, %v3406
    %vm3408 = vcmask 130112
    %v3409 = vsel %vm3408, %v3407, %v3402
    %v3410 = vadd.s32 %v3398, 4294967280
    %v3411 = vlaneseq
    %v3412 = vshrl.u32 %v3411, 7
    %v3413 = vsub.s32 %v3410, %v3412
    %v3414 = vrot.slane %v3143, %v3413
    %vm3415 = vcmask 195712
    %v3416 = vsel %vm3415, %v3414, %v3409
    %v3417 = vadd.s32 %v3398, 4294967272
    %v3418 = vlaneseq
    %v3419 = vshrl.u32 %v3418, 7
    %v3420 = vsub.s32 %v3417, %v3419
    %v3421 = vrot.slane %v3144, %v3420
    %vm3422 = vcmask 261312
    %v3423 = vsel %vm3422, %v3421, %v3416
    %v3424 = vadd.s32 %v3398, 4294967264
    %v3425 = vlaneseq
    %v3426 = vshrl.u32 %v3425, 7
    %v3427 = vsub.s32 %v3424, %v3426
    %v3428 = vrot.slane %v3145, %v3427
    %vm3429 = vcmask 326912
    %v3430 = vsel %vm3429, %v3428, %v3423
    %v3431 = vadd.s32 %v3398, 4294967256
    %v3432 = vlaneseq
    %v3433 = vshrl.u32 %v3432, 7
    %v3434 = vsub.s32 %v3431, %v3433
    %v3435 = vrot.slane %v3146, %v3434
    %vm3436 = vcmask 392512
    %v3437 = vsel %vm3436, %v3435, %v3430
    %v3438 = vadd.s32 %v3398, 4294967248
    %v3439 = vlaneseq
    %v3440 = vshrl.u32 %v3439, 7
    %v3441 = vsub.s32 %v3438, %v3440
    %v3442 = vrot.slane %v3147, %v3441
    %vm3443 = vcmask 458112
    %v3444 = vsel %vm3443, %v3442, %v3437
    %v3445 = vadd.s32 %v3398, 4294967240
    %v3446 = vlaneseq
    %v3447 = vshrl.u32 %v3446, 7
    %v3448 = vsub.s32 %v3445, %v3447
    %v3449 = vrot.slane %v3148, %v3448
    %vm3450 = vcmask 523712
    %v3451 = vsel %vm3450, %v3449, %v3444
    %v3452 = vadd.s32 %v3398, 4294967232
    %v3453 = vlaneseq
    %v3454 = vshrl.u32 %v3453, 7
    %v3455 = vsub.s32 %v3452, %v3454
    %v3456 = vrot.slane %v3149, %v3455
    %vm3457 = vcmask 589312
    %v3458 = vsel %vm3457, %v3456, %v3451
    %v3459 = vadd.s32 %v3398, 4294967224
    %v3460 = vlaneseq
    %v3461 = vshrl.u32 %v3460, 7
    %v3462 = vsub.s32 %v3459, %v3461
    %v3463 = vrot.slane %v3150, %v3462
    %vm3464 = vcmask 654912
    %v3465 = vsel %vm3464, %v3463, %v3458
    %v3466 = vadd.s32 %v3398, 4294967216
    %v3467 = vlaneseq
    %v3468 = vshrl.u32 %v3467, 7
    %v3469 = vsub.s32 %v3466, %v3468
    %v3470 = vrot.slane %v3151, %v3469
    %vm3471 = vcmask 720512
    %v3472 = vsel %vm3471, %v3470, %v3465
    %v3473 = vadd.s32 %v3398, 4294967208
    %v3474 = vlaneseq
    %v3475 = vshrl.u32 %v3474, 7
    %v3476 = vsub.s32 %v3473, %v3475
    %v3477 = vrot.slane %v3152, %v3476
    %vm3478 = vcmask 786112
    %v3479 = vsel %vm3478, %v3477, %v3472
    %v3480 = vadd.s32 %v3398, 4294967200
    %v3481 = vlaneseq
    %v3482 = vshrl.u32 %v3481, 7
    %v3483 = vsub.s32 %v3480, %v3482
    %v3484 = vrot.slane %v3153, %v3483
    %vm3485 = vcmask 851712
    %v3486 = vsel %vm3485, %v3484, %v3479
    %v3487 = vadd.s32 %v3398, 4294967192
    %v3488 = vlaneseq
    %v3489 = vshrl.u32 %v3488, 7
    %v3490 = vsub.s32 %v3487, %v3489
    %v3491 = vrot.slane %v3154, %v3490
    %vm3492 = vcmask 917312
    %v3493 = vsel %vm3492, %v3491, %v3486
    %v3494 = vadd.s32 %v3398, 4294967184
    %v3495 = vlaneseq
    %v3496 = vshrl.u32 %v3495, 7
    %v3497 = vsub.s32 %v3494, %v3496
    %v3498 = vrot.slane %v3155, %v3497
    %vm3499 = vcmask 982912
    %v3500 = vsel %vm3499, %v3498, %v3493
    %v3501 = vadd.s32 %v3398, 4294967176
    %v3502 = vlaneseq
    %v3503 = vshrl.u32 %v3502, 7
    %v3504 = vsub.s32 %v3501, %v3503
    %v3505 = vrot.slane %v3156, %v3504
    %vm3506 = vcmask 1048512
    %v3507 = vsel %vm3506, %v3505, %v3500
    %v3508 = vlaneseq
    %v3509 = vshrl.u32 %v3508, 7
    %v3510 = vsub.s32 %v3398, %v3509
    %v3511 = vrot.slane %v3157, %v3510
    %v3512 = vlaneseq
    %v3513 = vshrl.u32 %v3512, 7
    %v3514 = vsub.s32 %v3403, %v3513
    %v3515 = vrot.slane %v3158, %v3514
    %v3516 = vsel %vm3408, %v3515, %v3511
    %v3517 = vlaneseq
    %v3518 = vshrl.u32 %v3517, 7
    %v3519 = vsub.s32 %v3410, %v3518
    %v3520 = vrot.slane %v3159, %v3519
    %v3521 = vsel %vm3415, %v3520, %v3516
    %v3522 = vlaneseq
    %v3523 = vshrl.u32 %v3522, 7
    %v3524 = vsub.s32 %v3417, %v3523
    %v3525 = vrot.slane %v3160, %v3524
    %v3526 = vsel %vm3422, %v3525, %v3521
    %v3527 = vlaneseq
    %v3528 = vshrl.u32 %v3527, 7
    %v3529 = vsub.s32 %v3424, %v3528
    %v3530 = vrot.slane %v3161, %v3529
    %v3531 = vsel %vm3429, %v3530, %v3526
    %v3532 = vlaneseq
    %v3533 = vshrl.u32 %v3532, 7
    %v3534 = vsub.s32 %v3431, %v3533
    %v3535 = vrot.slane %v3162, %v3534
    %v3536 = vsel %vm3436, %v3535, %v3531
    %v3537 = vlaneseq
    %v3538 = vshrl.u32 %v3537, 7
    %v3539 = vsub.s32 %v3438, %v3538
    %v3540 = vrot.slane %v3163, %v3539
    %v3541 = vsel %vm3443, %v3540, %v3536
    %v3542 = vlaneseq
    %v3543 = vshrl.u32 %v3542, 7
    %v3544 = vsub.s32 %v3445, %v3543
    %v3545 = vrot.slane %v3164, %v3544
    %v3546 = vsel %vm3450, %v3545, %v3541
    %v3547 = vlaneseq
    %v3548 = vshrl.u32 %v3547, 7
    %v3549 = vsub.s32 %v3452, %v3548
    %v3550 = vrot.slane %v3165, %v3549
    %v3551 = vsel %vm3457, %v3550, %v3546
    %v3552 = vlaneseq
    %v3553 = vshrl.u32 %v3552, 7
    %v3554 = vsub.s32 %v3459, %v3553
    %v3555 = vrot.slane %v3166, %v3554
    %v3556 = vsel %vm3464, %v3555, %v3551
    %v3557 = vlaneseq
    %v3558 = vshrl.u32 %v3557, 7
    %v3559 = vsub.s32 %v3466, %v3558
    %v3560 = vrot.slane %v3167, %v3559
    %v3561 = vsel %vm3471, %v3560, %v3556
    %v3562 = vlaneseq
    %v3563 = vshrl.u32 %v3562, 7
    %v3564 = vsub.s32 %v3473, %v3563
    %v3565 = vrot.slane %v3168, %v3564
    %v3566 = vsel %vm3478, %v3565, %v3561
    %v3567 = vlaneseq
    %v3568 = vshrl.u32 %v3567, 7
    %v3569 = vsub.s32 %v3480, %v3568
    %v3570 = vrot.slane %v3169, %v3569
    %v3571 = vsel %vm3485, %v3570, %v3566
    %v3572 = vlaneseq
    %v3573 = vshrl.u32 %v3572, 7
    %v3574 = vsub.s32 %v3487, %v3573
    %v3575 = vrot.slane %v3170, %v3574
    %v3576 = vsel %vm3492, %v3575, %v3571
    %v3577 = vlaneseq
    %v3578 = vshrl.u32 %v3577, 7
    %v3579 = vsub.s32 %v3494, %v3578
    %v3580 = vrot.slane %v3171, %v3579
    %v3581 = vsel %vm3499, %v3580, %v3576
    %v3582 = vlaneseq
    %v3583 = vshrl.u32 %v3582, 7
    %v3584 = vsub.s32 %v3501, %v3583
    %v3585 = vrot.slane %v3172, %v3584
    %v3586 = vsel %vm3506, %v3585, %v3581
    %v3587 = vlaneseq
    %v3588 = vshrl.u32 %v3587, 7
    %v3589 = vsub.s32 %v3398, %v3588
    %v3590 = vrot.slane %v3173, %v3589
    %v3591 = vlaneseq
    %v3592 = vshrl.u32 %v3591, 7
    %v3593 = vsub.s32 %v3403, %v3592
    %v3594 = vrot.slane %v3174, %v3593
    %v3595 = vsel %vm3408, %v3594, %v3590
    %v3596 = vlaneseq
    %v3597 = vshrl.u32 %v3596, 7
    %v3598 = vsub.s32 %v3410, %v3597
    %v3599 = vrot.slane %v3175, %v3598
    %v3600 = vsel %vm3415, %v3599, %v3595
    %v3601 = vlaneseq
    %v3602 = vshrl.u32 %v3601, 7
    %v3603 = vsub.s32 %v3417, %v3602
    %v3604 = vrot.slane %v3176, %v3603
    %v3605 = vsel %vm3422, %v3604, %v3600
    %v3606 = vlaneseq
    %v3607 = vshrl.u32 %v3606, 7
    %v3608 = vsub.s32 %v3424, %v3607
    %v3609 = vrot.slane %v3177, %v3608
    %v3610 = vsel %vm3429, %v3609, %v3605
    %v3611 = vlaneseq
    %v3612 = vshrl.u32 %v3611, 7
    %v3613 = vsub.s32 %v3431, %v3612
    %v3614 = vrot.slane %v3178, %v3613
    %v3615 = vsel %vm3436, %v3614, %v3610
    %v3616 = vlaneseq
    %v3617 = vshrl.u32 %v3616, 7
    %v3618 = vsub.s32 %v3438, %v3617
    %v3619 = vrot.slane %v3179, %v3618
    %v3620 = vsel %vm3443, %v3619, %v3615
    %v3621 = vlaneseq
    %v3622 = vshrl.u32 %v3621, 7
    %v3623 = vsub.s32 %v3445, %v3622
    %v3624 = vrot.slane %v3180, %v3623
    %v3625 = vsel %vm3450, %v3624, %v3620
    %v3626 = vlaneseq
    %v3627 = vshrl.u32 %v3626, 7
    %v3628 = vsub.s32 %v3452, %v3627
    %v3629 = vrot.slane %v3181, %v3628
    %v3630 = vsel %vm3457, %v3629, %v3625
    %v3631 = vlaneseq
    %v3632 = vshrl.u32 %v3631, 7
    %v3633 = vsub.s32 %v3459, %v3632
    %v3634 = vrot.slane %v3182, %v3633
    %v3635 = vsel %vm3464, %v3634, %v3630
    %v3636 = vlaneseq
    %v3637 = vshrl.u32 %v3636, 7
    %v3638 = vsub.s32 %v3466, %v3637
    %v3639 = vrot.slane %v3183, %v3638
    %v3640 = vsel %vm3471, %v3639, %v3635
    %v3641 = vlaneseq
    %v3642 = vshrl.u32 %v3641, 7
    %v3643 = vsub.s32 %v3473, %v3642
    %v3644 = vrot.slane %v3184, %v3643
    %v3645 = vsel %vm3478, %v3644, %v3640
    %v3646 = vlaneseq
    %v3647 = vshrl.u32 %v3646, 7
    %v3648 = vsub.s32 %v3480, %v3647
    %v3649 = vrot.slane %v3185, %v3648
    %v3650 = vsel %vm3485, %v3649, %v3645
    %v3651 = vlaneseq
    %v3652 = vshrl.u32 %v3651, 7
    %v3653 = vsub.s32 %v3487, %v3652
    %v3654 = vrot.slane %v3186, %v3653
    %v3655 = vsel %vm3492, %v3654, %v3650
    %v3656 = vlaneseq
    %v3657 = vshrl.u32 %v3656, 7
    %v3658 = vsub.s32 %v3494, %v3657
    %v3659 = vrot.slane %v3187, %v3658
    %v3660 = vsel %vm3499, %v3659, %v3655
    %v3661 = vlaneseq
    %v3662 = vshrl.u32 %v3661, 7
    %v3663 = vsub.s32 %v3501, %v3662
    %v3664 = vrot.slane %v3188, %v3663
    %v3665 = vsel %vm3506, %v3664, %v3660
    %v3666 = vlaneseq
    %v3667 = vshrl.u32 %v3666, 7
    %v3668 = vsub.s32 %v3398, %v3667
    %v3669 = vrot.slane %v3189, %v3668
    %v3670 = vlaneseq
    %v3671 = vshrl.u32 %v3670, 7
    %v3672 = vsub.s32 %v3403, %v3671
    %v3673 = vrot.slane %v3190, %v3672
    %v3674 = vsel %vm3408, %v3673, %v3669
    %v3675 = vlaneseq
    %v3676 = vshrl.u32 %v3675, 7
    %v3677 = vsub.s32 %v3410, %v3676
    %v3678 = vrot.slane %v3191, %v3677
    %v3679 = vsel %vm3415, %v3678, %v3674
    %v3680 = vlaneseq
    %v3681 = vshrl.u32 %v3680, 7
    %v3682 = vsub.s32 %v3417, %v3681
    %v3683 = vrot.slane %v3192, %v3682
    %v3684 = vsel %vm3422, %v3683, %v3679
    %v3685 = vlaneseq
    %v3686 = vshrl.u32 %v3685, 7
    %v3687 = vsub.s32 %v3424, %v3686
    %v3688 = vrot.slane %v3193, %v3687
    %v3689 = vsel %vm3429, %v3688, %v3684
    %v3690 = vlaneseq
    %v3691 = vshrl.u32 %v3690, 7
    %v3692 = vsub.s32 %v3431, %v3691
    %v3693 = vrot.slane %v3194, %v3692
    %v3694 = vsel %vm3436, %v3693, %v3689
    %v3695 = vlaneseq
    %v3696 = vshrl.u32 %v3695, 7
    %v3697 = vsub.s32 %v3438, %v3696
    %v3698 = vrot.slane %v3195, %v3697
    %v3699 = vsel %vm3443, %v3698, %v3694
    %v3700 = vlaneseq
    %v3701 = vshrl.u32 %v3700, 7
    %v3702 = vsub.s32 %v3445, %v3701
    %v3703 = vrot.slane %v3196, %v3702
    %v3704 = vsel %vm3450, %v3703, %v3699
    %v3705 = vlaneseq
    %v3706 = vshrl.u32 %v3705, 7
    %v3707 = vsub.s32 %v3452, %v3706
    %v3708 = vrot.slane %v3197, %v3707
    %v3709 = vsel %vm3457, %v3708, %v3704
    %v3710 = vlaneseq
    %v3711 = vshrl.u32 %v3710, 7
    %v3712 = vsub.s32 %v3459, %v3711
    %v3713 = vrot.slane %v3198, %v3712
    %v3714 = vsel %vm3464, %v3713, %v3709
    %v3715 = vlaneseq
    %v3716 = vshrl.u32 %v3715, 7
    %v3717 = vsub.s32 %v3466, %v3716
    %v3718 = vrot.slane %v3199, %v3717
    %v3719 = vsel %vm3471, %v3718, %v3714
    %v3720 = vlaneseq
    %v3721 = vshrl.u32 %v3720, 7
    %v3722 = vsub.s32 %v3473, %v3721
    %v3723 = vrot.slane %v3200, %v3722
    %v3724 = vsel %vm3478, %v3723, %v3719
    %v3725 = vlaneseq
    %v3726 = vshrl.u32 %v3725, 7
    %v3727 = vsub.s32 %v3480, %v3726
    %v3728 = vrot.slane %v3201, %v3727
    %v3729 = vsel %vm3485, %v3728, %v3724
    %v3730 = vlaneseq
    %v3731 = vshrl.u32 %v3730, 7
    %v3732 = vsub.s32 %v3487, %v3731
    %v3733 = vrot.slane %v3202, %v3732
    %v3734 = vsel %vm3492, %v3733, %v3729
    %v3735 = vlaneseq
    %v3736 = vshrl.u32 %v3735, 7
    %v3737 = vsub.s32 %v3494, %v3736
    %v3738 = vrot.slane %v3203, %v3737
    %v3739 = vsel %vm3499, %v3738, %v3734
    %v3740 = vlaneseq
    %v3741 = vshrl.u32 %v3740, 7
    %v3742 = vsub.s32 %v3501, %v3741
    %v3743 = vrot.slane %v3204, %v3742
    %v3744 = vsel %vm3506, %v3743, %v3739
    %v3745 = vlaneseq
    %v3746 = vshrl.u32 %v3745, 7
    %v3747 = vsub.s32 %v3398, %v3746
    %v3748 = vrot.slane %v3205, %v3747
    %v3749 = vlaneseq
    %v3750 = vshrl.u32 %v3749, 7
    %v3751 = vsub.s32 %v3403, %v3750
    %v3752 = vrot.slane %v3206, %v3751
    %v3753 = vsel %vm3408, %v3752, %v3748
    %v3754 = vlaneseq
    %v3755 = vshrl.u32 %v3754, 7
    %v3756 = vsub.s32 %v3410, %v3755
    %v3757 = vrot.slane %v3207, %v3756
    %v3758 = vsel %vm3415, %v3757, %v3753
    %v3759 = vlaneseq
    %v3760 = vshrl.u32 %v3759, 7
    %v3761 = vsub.s32 %v3417, %v3760
    %v3762 = vrot.slane %v3208, %v3761
    %v3763 = vsel %vm3422, %v3762, %v3758
    %v3764 = vlaneseq
    %v3765 = vshrl.u32 %v3764, 7
    %v3766 = vsub.s32 %v3424, %v3765
    %v3767 = vrot.slane %v3209, %v3766
    %v3768 = vsel %vm3429, %v3767, %v3763
    %v3769 = vlaneseq
    %v3770 = vshrl.u32 %v3769, 7
    %v3771 = vsub.s32 %v3431, %v3770
    %v3772 = vrot.slane %v3210, %v3771
    %v3773 = vsel %vm3436, %v3772, %v3768
    %v3774 = vlaneseq
    %v3775 = vshrl.u32 %v3774, 7
    %v3776 = vsub.s32 %v3438, %v3775
    %v3777 = vrot.slane %v3211, %v3776
    %v3778 = vsel %vm3443, %v3777, %v3773
    %v3779 = vlaneseq
    %v3780 = vshrl.u32 %v3779, 7
    %v3781 = vsub.s32 %v3445, %v3780
    %v3782 = vrot.slane %v3212, %v3781
    %v3783 = vsel %vm3450, %v3782, %v3778
    %v3784 = vlaneseq
    %v3785 = vshrl.u32 %v3784, 7
    %v3786 = vsub.s32 %v3452, %v3785
    %v3787 = vrot.slane %v3213, %v3786
    %v3788 = vsel %vm3457, %v3787, %v3783
    %v3789 = vlaneseq
    %v3790 = vshrl.u32 %v3789, 7
    %v3791 = vsub.s32 %v3459, %v3790
    %v3792 = vrot.slane %v3214, %v3791
    %v3793 = vsel %vm3464, %v3792, %v3788
    %v3794 = vlaneseq
    %v3795 = vshrl.u32 %v3794, 7
    %v3796 = vsub.s32 %v3466, %v3795
    %v3797 = vrot.slane %v3215, %v3796
    %v3798 = vsel %vm3471, %v3797, %v3793
    %v3799 = vlaneseq
    %v3800 = vshrl.u32 %v3799, 7
    %v3801 = vsub.s32 %v3473, %v3800
    %v3802 = vrot.slane %v3216, %v3801
    %v3803 = vsel %vm3478, %v3802, %v3798
    %v3804 = vlaneseq
    %v3805 = vshrl.u32 %v3804, 7
    %v3806 = vsub.s32 %v3480, %v3805
    %v3807 = vrot.slane %v3217, %v3806
    %v3808 = vsel %vm3485, %v3807, %v3803
    %v3809 = vlaneseq
    %v3810 = vshrl.u32 %v3809, 7
    %v3811 = vsub.s32 %v3487, %v3810
    %v3812 = vrot.slane %v3218, %v3811
    %v3813 = vsel %vm3492, %v3812, %v3808
    %v3814 = vlaneseq
    %v3815 = vshrl.u32 %v3814, 7
    %v3816 = vsub.s32 %v3494, %v3815
    %v3817 = vrot.slane %v3219, %v3816
    %v3818 = vsel %vm3499, %v3817, %v3813
    %v3819 = vlaneseq
    %v3820 = vshrl.u32 %v3819, 7
    %v3821 = vsub.s32 %v3501, %v3820
    %v3822 = vrot.slane %v3220, %v3821
    %v3823 = vsel %vm3506, %v3822, %v3818
    %v3824 = vlaneseq
    %v3825 = vshrl.u32 %v3824, 7
    %v3826 = vsub.s32 %v3398, %v3825
    %v3827 = vrot.slane %v3221, %v3826
    %v3828 = vlaneseq
    %v3829 = vshrl.u32 %v3828, 7
    %v3830 = vsub.s32 %v3403, %v3829
    %v3831 = vrot.slane %v3222, %v3830
    %v3832 = vsel %vm3408, %v3831, %v3827
    %v3833 = vlaneseq
    %v3834 = vshrl.u32 %v3833, 7
    %v3835 = vsub.s32 %v3410, %v3834
    %v3836 = vrot.slane %v3223, %v3835
    %v3837 = vsel %vm3415, %v3836, %v3832
    %v3838 = vlaneseq
    %v3839 = vshrl.u32 %v3838, 7
    %v3840 = vsub.s32 %v3417, %v3839
    %v3841 = vrot.slane %v3224, %v3840
    %v3842 = vsel %vm3422, %v3841, %v3837
    %v3843 = vlaneseq
    %v3844 = vshrl.u32 %v3843, 7
    %v3845 = vsub.s32 %v3424, %v3844
    %v3846 = vrot.slane %v3225, %v3845
    %v3847 = vsel %vm3429, %v3846, %v3842
    %v3848 = vlaneseq
    %v3849 = vshrl.u32 %v3848, 7
    %v3850 = vsub.s32 %v3431, %v3849
    %v3851 = vrot.slane %v3226, %v3850
    %v3852 = vsel %vm3436, %v3851, %v3847
    %v3853 = vlaneseq
    %v3854 = vshrl.u32 %v3853, 7
    %v3855 = vsub.s32 %v3438, %v3854
    %v3856 = vrot.slane %v3227, %v3855
    %v3857 = vsel %vm3443, %v3856, %v3852
    %v3858 = vlaneseq
    %v3859 = vshrl.u32 %v3858, 7
    %v3860 = vsub.s32 %v3445, %v3859
    %v3861 = vrot.slane %v3228, %v3860
    %v3862 = vsel %vm3450, %v3861, %v3857
    %v3863 = vlaneseq
    %v3864 = vshrl.u32 %v3863, 7
    %v3865 = vsub.s32 %v3452, %v3864
    %v3866 = vrot.slane %v3229, %v3865
    %v3867 = vsel %vm3457, %v3866, %v3862
    %v3868 = vlaneseq
    %v3869 = vshrl.u32 %v3868, 7
    %v3870 = vsub.s32 %v3459, %v3869
    %v3871 = vrot.slane %v3230, %v3870
    %v3872 = vsel %vm3464, %v3871, %v3867
    %v3873 = vlaneseq
    %v3874 = vshrl.u32 %v3873, 7
    %v3875 = vsub.s32 %v3466, %v3874
    %v3876 = vrot.slane %v3231, %v3875
    %v3877 = vsel %vm3471, %v3876, %v3872
    %v3878 = vlaneseq
    %v3879 = vshrl.u32 %v3878, 7
    %v3880 = vsub.s32 %v3473, %v3879
    %v3881 = vrot.slane %v3232, %v3880
    %v3882 = vsel %vm3478, %v3881, %v3877
    %v3883 = vlaneseq
    %v3884 = vshrl.u32 %v3883, 7
    %v3885 = vsub.s32 %v3480, %v3884
    %v3886 = vrot.slane %v3233, %v3885
    %v3887 = vsel %vm3485, %v3886, %v3882
    %v3888 = vlaneseq
    %v3889 = vshrl.u32 %v3888, 7
    %v3890 = vsub.s32 %v3487, %v3889
    %v3891 = vrot.slane %v3234, %v3890
    %v3892 = vsel %vm3492, %v3891, %v3887
    %v3893 = vlaneseq
    %v3894 = vshrl.u32 %v3893, 7
    %v3895 = vsub.s32 %v3494, %v3894
    %v3896 = vrot.slane %v3235, %v3895
    %v3897 = vsel %vm3499, %v3896, %v3892
    %v3898 = vlaneseq
    %v3899 = vshrl.u32 %v3898, 7
    %v3900 = vsub.s32 %v3501, %v3899
    %v3901 = vrot.slane %v3236, %v3900
    %v3902 = vsel %vm3506, %v3901, %v3897
    %v3903 = vlaneseq
    %v3904 = vshrl.u32 %v3903, 7
    %v3905 = vsub.s32 %v3398, %v3904
    %v3906 = vrot.slane %v3237, %v3905
    %v3907 = vlaneseq
    %v3908 = vshrl.u32 %v3907, 7
    %v3909 = vsub.s32 %v3403, %v3908
    %v3910 = vrot.slane %v3238, %v3909
    %v3911 = vsel %vm3408, %v3910, %v3906
    %v3912 = vlaneseq
    %v3913 = vshrl.u32 %v3912, 7
    %v3914 = vsub.s32 %v3410, %v3913
    %v3915 = vrot.slane %v3239, %v3914
    %v3916 = vsel %vm3415, %v3915, %v3911
    %v3917 = vlaneseq
    %v3918 = vshrl.u32 %v3917, 7
    %v3919 = vsub.s32 %v3417, %v3918
    %v3920 = vrot.slane %v3240, %v3919
    %v3921 = vsel %vm3422, %v3920, %v3916
    %v3922 = vlaneseq
    %v3923 = vshrl.u32 %v3922, 7
    %v3924 = vsub.s32 %v3424, %v3923
    %v3925 = vrot.slane %v3241, %v3924
    %v3926 = vsel %vm3429, %v3925, %v3921
    %v3927 = vlaneseq
    %v3928 = vshrl.u32 %v3927, 7
    %v3929 = vsub.s32 %v3431, %v3928
    %v3930 = vrot.slane %v3242, %v3929
    %v3931 = vsel %vm3436, %v3930, %v3926
    %v3932 = vlaneseq
    %v3933 = vshrl.u32 %v3932, 7
    %v3934 = vsub.s32 %v3438, %v3933
    %v3935 = vrot.slane %v3243, %v3934
    %v3936 = vsel %vm3443, %v3935, %v3931
    %v3937 = vlaneseq
    %v3938 = vshrl.u32 %v3937, 7
    %v3939 = vsub.s32 %v3445, %v3938
    %v3940 = vrot.slane %v3244, %v3939
    %v3941 = vsel %vm3450, %v3940, %v3936
    %v3942 = vlaneseq
    %v3943 = vshrl.u32 %v3942, 7
    %v3944 = vsub.s32 %v3452, %v3943
    %v3945 = vrot.slane %v3245, %v3944
    %v3946 = vsel %vm3457, %v3945, %v3941
    %v3947 = vlaneseq
    %v3948 = vshrl.u32 %v3947, 7
    %v3949 = vsub.s32 %v3459, %v3948
    %v3950 = vrot.slane %v3246, %v3949
    %v3951 = vsel %vm3464, %v3950, %v3946
    %v3952 = vlaneseq
    %v3953 = vshrl.u32 %v3952, 7
    %v3954 = vsub.s32 %v3466, %v3953
    %v3955 = vrot.slane %v3247, %v3954
    %v3956 = vsel %vm3471, %v3955, %v3951
    %v3957 = vlaneseq
    %v3958 = vshrl.u32 %v3957, 7
    %v3959 = vsub.s32 %v3473, %v3958
    %v3960 = vrot.slane %v3248, %v3959
    %v3961 = vsel %vm3478, %v3960, %v3956
    %v3962 = vlaneseq
    %v3963 = vshrl.u32 %v3962, 7
    %v3964 = vsub.s32 %v3480, %v3963
    %v3965 = vrot.slane %v3249, %v3964
    %v3966 = vsel %vm3485, %v3965, %v3961
    %v3967 = vlaneseq
    %v3968 = vshrl.u32 %v3967, 7
    %v3969 = vsub.s32 %v3487, %v3968
    %v3970 = vrot.slane %v3250, %v3969
    %v3971 = vsel %vm3492, %v3970, %v3966
    %v3972 = vlaneseq
    %v3973 = vshrl.u32 %v3972, 7
    %v3974 = vsub.s32 %v3494, %v3973
    %v3975 = vrot.slane %v3251, %v3974
    %v3976 = vsel %vm3499, %v3975, %v3971
    %v3977 = vlaneseq
    %v3978 = vshrl.u32 %v3977, 7
    %v3979 = vsub.s32 %v3501, %v3978
    %v3980 = vrot.slane %v3252, %v3979
    %v3981 = vsel %vm3506, %v3980, %v3976
    %v3982 = vlaneseq
    %v3983 = vshrl.u32 %v3982, 7
    %v3984 = vsub.s32 %v3398, %v3983
    %v3985 = vrot.slane %v3253, %v3984
    %v3986 = vlaneseq
    %v3987 = vshrl.u32 %v3986, 7
    %v3988 = vsub.s32 %v3403, %v3987
    %v3989 = vrot.slane %v3254, %v3988
    %v3990 = vsel %vm3408, %v3989, %v3985
    %v3991 = vlaneseq
    %v3992 = vshrl.u32 %v3991, 7
    %v3993 = vsub.s32 %v3410, %v3992
    %v3994 = vrot.slane %v3255, %v3993
    %v3995 = vsel %vm3415, %v3994, %v3990
    %v3996 = vlaneseq
    %v3997 = vshrl.u32 %v3996, 7
    %v3998 = vsub.s32 %v3417, %v3997
    %v3999 = vrot.slane %v3256, %v3998
    %v4000 = vsel %vm3422, %v3999, %v3995
    %v4001 = vlaneseq
    %v4002 = vshrl.u32 %v4001, 7
    %v4003 = vsub.s32 %v3424, %v4002
    %v4004 = vrot.slane %v3257, %v4003
    %v4005 = vsel %vm3429, %v4004, %v4000
    %v4006 = vlaneseq
    %v4007 = vshrl.u32 %v4006, 7
    %v4008 = vsub.s32 %v3431, %v4007
    %v4009 = vrot.slane %v3258, %v4008
    %v4010 = vsel %vm3436, %v4009, %v4005
    %v4011 = vlaneseq
    %v4012 = vshrl.u32 %v4011, 7
    %v4013 = vsub.s32 %v3438, %v4012
    %v4014 = vrot.slane %v3259, %v4013
    %v4015 = vsel %vm3443, %v4014, %v4010
    %v4016 = vlaneseq
    %v4017 = vshrl.u32 %v4016, 7
    %v4018 = vsub.s32 %v3445, %v4017
    %v4019 = vrot.slane %v3260, %v4018
    %v4020 = vsel %vm3450, %v4019, %v4015
    %v4021 = vlaneseq
    %v4022 = vshrl.u32 %v4021, 7
    %v4023 = vsub.s32 %v3452, %v4022
    %v4024 = vrot.slane %v3261, %v4023
    %v4025 = vsel %vm3457, %v4024, %v4020
    %v4026 = vlaneseq
    %v4027 = vshrl.u32 %v4026, 7
    %v4028 = vsub.s32 %v3459, %v4027
    %v4029 = vrot.slane %v3262, %v4028
    %v4030 = vsel %vm3464, %v4029, %v4025
    %v4031 = vlaneseq
    %v4032 = vshrl.u32 %v4031, 7
    %v4033 = vsub.s32 %v3466, %v4032
    %v4034 = vrot.slane %v3263, %v4033
    %v4035 = vsel %vm3471, %v4034, %v4030
    %v4036 = vlaneseq
    %v4037 = vshrl.u32 %v4036, 7
    %v4038 = vsub.s32 %v3473, %v4037
    %v4039 = vrot.slane %v3264, %v4038
    %v4040 = vsel %vm3478, %v4039, %v4035
    %v4041 = vlaneseq
    %v4042 = vshrl.u32 %v4041, 7
    %v4043 = vsub.s32 %v3480, %v4042
    %v4044 = vrot.slane %v3265, %v4043
    %v4045 = vsel %vm3485, %v4044, %v4040
    %v4046 = vlaneseq
    %v4047 = vshrl.u32 %v4046, 7
    %v4048 = vsub.s32 %v3487, %v4047
    %v4049 = vrot.slane %v3266, %v4048
    %v4050 = vsel %vm3492, %v4049, %v4045
    %v4051 = vlaneseq
    %v4052 = vshrl.u32 %v4051, 7
    %v4053 = vsub.s32 %v3494, %v4052
    %v4054 = vrot.slane %v3267, %v4053
    %v4055 = vsel %vm3499, %v4054, %v4050
    %v4056 = vlaneseq
    %v4057 = vshrl.u32 %v4056, 7
    %v4058 = vsub.s32 %v3501, %v4057
    %v4059 = vrot.slane %v3268, %v4058
    %v4060 = vsel %vm3506, %v4059, %v4055
    %vm4061 = vcmask 1041409
    %v4062 = vsel %vm4061, %v3586, %v3507
    %vm4063 = vcmask 1042434
    %v4064 = vsel %vm4063, %v3665, %v4062
    %vm4065 = vcmask 1043459
    %v4066 = vsel %vm4065, %v3744, %v4064
    %vm4067 = vcmask 1044484
    %v4068 = vsel %vm4067, %v3823, %v4066
    %vm4069 = vcmask 1045509
    %v4070 = vsel %vm4069, %v3902, %v4068
    %vm4071 = vcmask 1046534
    %v4072 = vsel %vm4071, %v3981, %v4070
    %vm4073 = vcmask 1047559
    %v4074 = vsel %vm4073, %v4060, %v4072
    %4076 = vst [vmem:[#allocation3] sm:$0xff] %v4074
    // Predicated region
    $region30: #{tpu_custom_call.1} parent=1 // pred_check
      _
    $region31: #{tpu_custom_call.1} parent=1 // pred_check_branch
      %4078 = sbr.rel (0) target = $region33
    $region32: #{tpu_custom_call.1} parent=1 // pred_region
      %s4080 = ssub.s32 128, 128
      %4081 = vsyncadd [#allocation4], %s4080
      %s4083 = sshll.u32 [#allocation3], 4
      %s4084 = int_to_ptr.vmem [resolvable:$true] %s4083
      %4086 = dma.vmem_to_hbm [thread:$0]  %s4084, 128, %s7, [#allocation4]
    $region33: #{tpu_custom_call.1} parent=1 // pred_fallthru
      _
    // Predicated region
    $region34: #{tpu_custom_call.1} parent=1 // pred_check
      _
    $region35: #{tpu_custom_call.1} parent=1 // pred_check_branch
      %4088 = sbr.rel (0) target = $region37
    $region36: #{tpu_custom_call.1} parent=1 // pred_region
      %4089 = dma.done [#allocation4], 128
    $region37: #{tpu_custom_call.1} parent=1 // pred_fallthru
      _
    %4090 = vsyncpa [#allocation4], 1

</llo_original>
